<compile_context>
chip_gen: v7x
topology: tpu7x:2x2x1
jax: 0.10.0
libtpu: 0.0.40
codegen_flags: <defaults>
</compile_context>

<pallas_src>
import jax
import jax.numpy as jnp
from jax.experimental import pallas as pl
from jax.experimental.pallas import tpu as pltpu


# ----------------------------------------------------------------------------
# Fused kernel: num_layers GRU layers + Linear, whole sequence in one invocation.
#
# Ref layout (all full blocks, resident in VMEM):
#   x_ref   : (B*S, In)        batch-major rows (row = b*S + t)
#   h0_ref  : (L, B, Hp)       zero-padded initial hidden
#   per layer l: wi (in_l, 3Hp), wh (Hp, 3Hp), bi (1, 3Hp), bh (1, 3Hp)
#   wlin    : (Hp, Op), blin (1, Op)
#   outputs : out2d (B*S, Op), hN (L, B, Hp)
#   scratch : y_scr (B*S, Hp)  current layer's output sequence (batch-major rows)
#
# PyTorch GRU cell (gate order r, z, n):
#   r = sigmoid(gx_r + gh_r); z = sigmoid(gx_z + gh_z)
#   n = tanh(gx_n + r * gh_n); h' = (1 - z) * n + z * h
# ----------------------------------------------------------------------------
def _decoder_kernel(x_ref, h0_ref, *refs):
    L, B, Hp = h0_ref.shape
    BS, _ = x_ref.shape
    S = BS // B
    f32 = jnp.float32

    layer_w = refs[:4 * L]
    wlin_ref, blin_ref, out_ref, hN_ref, y_scr = refs[4 * L:]

    def run_gru_layer(layer_in_2d, l):
        """layer_in_2d: (B*S, in_l) value, rows ordered b*S + t.
        Writes the layer's output sequence into y_scr and final hidden into hN_ref[l]."""
        wi = layer_w[4 * l + 0][...]          # (in_l, 3Hp)
        wh = layer_w[4 * l + 1][...]          # (Hp, 3Hp)
        bi = layer_w[4 * l + 2][...]          # (1, 3Hp)
        bh = layer_w[4 * l + 3][...]          # (1, 3Hp)

        # Hoisted input projection for every (b, t): one wide MXU call per layer.
        gx_all = jnp.dot(layer_in_2d, wi, preferred_element_type=f32) + bi  # (B*S, 3Hp)

        h = h0_ref[l]                          # (B, Hp) recurrent carry (in vregs)
        for t in range(S):                     # static unroll over the short sequence
            # gather the (B, 3Hp) input-gate slab for step t (rows b*S + t)
            gx = jnp.concatenate(
                [gx_all[b * S + t:b * S + t + 1, :] for b in range(B)], axis=0)
            gh = jnp.dot(h, wh, preferred_element_type=f32) + bh            # (B, 3Hp)

            r = jax.nn.sigmoid(gx[:, :Hp] + gh[:, :Hp])
            z = jax.nn.sigmoid(gx[:, Hp:2 * Hp] + gh[:, Hp:2 * Hp])
            n = jnp.tanh(gx[:, 2 * Hp:] + r * gh[:, 2 * Hp:])
            h = (1.0 - z) * n + z * h                                       # (B, Hp)

            # stash this step's output (batch-major rows) for the next layer / Linear
            for b in range(B):
                y_scr[b * S + t:b * S + t + 1, :] = h[b:b + 1, :]
        hN_ref[l] = h                          # final hidden written once per layer

    run_gru_layer(x_ref[...], 0)
    for l in range(1, L):
        run_gru_layer(y_scr[...], l)

    # Dropout == identity (eval), then the Linear fused over all (B*S) rows at once.
    y_all = y_scr[...]                                                      # (B*S, Hp)
    out_ref[...] = (jnp.dot(y_all, wlin_ref[...], preferred_element_type=f32)
                    + blin_ref[...])


def _full_block(shape):
    zeros = (0,) * len(shape)
    return pl.BlockSpec(shape, lambda i, _z=zeros: _z)


# ----------------------------------------------------------------------------
# Public forward (PyTorch-equivalent semantics, batch_first=True)
#   inp    : (B, S, hidden_size)
#   hidden : (num_layers, B, H)   with H = output_size * 30
#   returns (output (B, S, output_size), hidden_out (num_layers, B, H))
# ----------------------------------------------------------------------------
def decoder_rnn_forward(inp, hidden, params, output_size):
    B, S, In = inp.shape
    layers = params["layers"]
    wlin, blin = params["linear"]
    L = len(layers)
    Hp = layers[0][1].shape[0]        # padded hidden width (128)
    Op = wlin.shape[1]                # padded output width (128)
    H = output_size * 30

    x2d = inp.reshape(B * S, In)                                   # free reshape
    h0p = jnp.pad(hidden, ((0, 0), (0, 0), (0, Hp - hidden.shape[-1])))

    flat_w = []
    for (wi, wh, bi, bh) in layers:
        flat_w += [wi, wh, bi, bh]
    inputs = [x2d, h0p] + flat_w + [wlin, blin]

    out2d, hNp = pl.pallas_call(
        _decoder_kernel,
        out_shape=(
            jax.ShapeDtypeStruct((B * S, Op), jnp.float32),
            jax.ShapeDtypeStruct((L, B, Hp), jnp.float32),
        ),
        grid_spec=pltpu.PrefetchScalarGridSpec(
            num_scalar_prefetch=0,
            grid=(1,),
            in_specs=[_full_block(a.shape) for a in inputs],
            out_specs=[_full_block((B * S, Op)), _full_block((L, B, Hp))],
            scratch_shapes=[pltpu.VMEM((B * S, Hp), jnp.float32)],
        ),
        compiler_params=pltpu.CompilerParams(
            dimension_semantics=("arbitrary",)),
    )(*inputs)

    out = out2d[:, :output_size].reshape(B, S, output_size)
    hidden_out = hNp[..., :H]
    return out, hidden_out


# ----------------------------------------------------------------------------
# Parameter construction: fused (r,z,n) gates, transposed, zero-padded to 128 lanes.
# ----------------------------------------------------------------------------
def _pad_cols_per_gate(w, H, Hp):
    # w: (rows, 3H) with gate order (r, z, n) -> (rows, 3Hp), zero padded per gate
    r, z, n = jnp.split(w, 3, axis=1)
    pad = lambda a: jnp.pad(a, ((0, 0), (0, Hp - H)))
    return jnp.concatenate([pad(r), pad(z), pad(n)], axis=1)


def init_params(key, hidden_size, output_size, num_layers, lane=128):
    H = output_size * 30
    Hp = ((H + lane - 1) // lane) * lane            # 120 -> 128
    Op = ((output_size + lane - 1) // lane) * lane  # 4   -> 128
    k = 1.0 / (H ** 0.5)

    def unif(rk, shape):
        return jax.random.uniform(rk, shape, jnp.float32, -k, k)

    layers = []
    for l in range(num_layers):
        in_real = hidden_size if l == 0 else H
        in_pad = hidden_size if l == 0 else Hp
        kk = jax.random.split(jax.random.fold_in(key, l), 4)
        # PyTorch weight_ih_l{l}: (3H, in) -> stored transposed, gate-fused (in, 3H)
        wi = _pad_cols_per_gate(unif(kk[0], (in_real, 3 * H)), H, Hp)
        wh = _pad_cols_per_gate(unif(kk[1], (H, 3 * H)), H, Hp)
        bi = _pad_cols_per_gate(unif(kk[2], (1, 3 * H)), H, Hp)
        bh = _pad_cols_per_gate(unif(kk[3], (1, 3 * H)), H, Hp)
        wi = jnp.pad(wi, ((0, in_pad - in_real), (0, 0)))
        wh = jnp.pad(wh, ((0, Hp - H), (0, 0)))
        layers.append((wi, wh, bi, bh))

    kw, kb = jax.random.split(jax.random.fold_in(key, 10_000))
    wlin = jnp.pad(jax.random.uniform(kw, (H, output_size), jnp.float32, -k, k),
                   ((0, Hp - H), (0, Op - output_size)))
    blin = jnp.pad(jax.random.uniform(kb, (1, output_size), jnp.float32, -k, k),
                   ((0, 0), (0, Op - output_size)))
    return {"layers": layers, "linear": (wlin, blin)}


# ----------------------------------------------------------------------------
# Pure-JAX reference (same padded params) for a correctness cross-check.
# ----------------------------------------------------------------------------
def decoder_rnn_reference(inp, hidden, params, output_size):
    B, S, _ = inp.shape
    layers = params["layers"]
    wlin, blin = params["linear"]
    Hp = layers[0][1].shape[0]
    H = output_size * 30
    h0p = jnp.pad(hidden, ((0, 0), (0, 0), (0, Hp - H)))
    cur = inp
    h_fin = []
    for l, (wi, wh, bi, bh) in enumerate(layers):
        h = h0p[l]
        ys = []
        for t in range(S):
            gx = cur[:, t, :] @ wi + bi
            gh = h @ wh + bh
            r = jax.nn.sigmoid(gx[:, :Hp] + gh[:, :Hp])
            z = jax.nn.sigmoid(gx[:, Hp:2 * Hp] + gh[:, Hp:2 * Hp])
            n = jnp.tanh(gx[:, 2 * Hp:] + r * gh[:, 2 * Hp:])
            h = (1.0 - z) * n + z * h
            ys.append(h)
        cur = jnp.stack(ys, axis=1)
        h_fin.append(h)
    out = (cur.reshape(B * S, Hp) @ wlin + blin).reshape(B, S, -1)[..., :output_size]
    hid = jnp.stack(h_fin, axis=0)[..., :H]
    return out, hid


if __name__ == "__main__":
    hidden_size = 32     # GRU input feature size
    output_size = 4      # final output feature size; GRU hidden = 4 * 30 = 120
    num_layers = 2
    batch = 2
    seq = 8
    H = output_size * 30

    key = jax.random.PRNGKey(0)
    k_x, k_h, k_p = jax.random.split(key, 3)
    x = jax.random.normal(k_x, (batch, seq, hidden_size), jnp.float32)
    h0 = jax.random.normal(k_h, (num_layers, batch, H), jnp.float32)
    params = init_params(k_p, hidden_size, output_size, num_layers)

    out, hidden_out = decoder_rnn_forward(x, h0, params, output_size)
    out = jax.block_until_ready(out)
    hidden_out = jax.block_until_ready(hidden_out)

    assert out.shape == (batch, seq, output_size), out.shape
    assert hidden_out.shape == (num_layers, batch, H), hidden_out.shape
    assert bool(jnp.all(jnp.isfinite(out))) and bool(jnp.all(jnp.isfinite(hidden_out)))

    ref_out, ref_hid = decoder_rnn_reference(x, h0, params, output_size)
    err_o = float(jnp.max(jnp.abs(out - ref_out)))
    err_h = float(jnp.max(jnp.abs(hidden_out - ref_hid)))
    assert err_o < 1e-3 and err_h < 1e-3, (err_o, err_h)

    print("KERNEL_OK")
</pallas_src>

<mosaic_0001>
module attributes {stable_mosaic.version = 11 : i64} {
  func.func @_decoder_kernel(%arg0: i32, %arg1: memref<16x32xf32, #tpu.memory_space<vmem>>, %arg2: memref<2x2x128xf32, #tpu.memory_space<vmem>>, %arg3: memref<32x384xf32, #tpu.memory_space<vmem>>, %arg4: memref<128x384xf32, #tpu.memory_space<vmem>>, %arg5: memref<1x384xf32, #tpu.memory_space<vmem>>, %arg6: memref<1x384xf32, #tpu.memory_space<vmem>>, %arg7: memref<128x384xf32, #tpu.memory_space<vmem>>, %arg8: memref<128x384xf32, #tpu.memory_space<vmem>>, %arg9: memref<1x384xf32, #tpu.memory_space<vmem>>, %arg10: memref<1x384xf32, #tpu.memory_space<vmem>>, %arg11: memref<128x128xf32, #tpu.memory_space<vmem>>, %arg12: memref<1x128xf32, #tpu.memory_space<vmem>>, %arg13: memref<16x128xf32, #tpu.memory_space<vmem>>, %arg14: memref<2x2x128xf32, #tpu.memory_space<vmem>>, %arg15: memref<16x128xf32, #tpu.memory_space<vmem>>) attributes {dimension_semantics = [#tpu.dimension_semantics<arbitrary>], iteration_bounds = array<i64: 1>, scalar_prefetch = 0 : i64, scratch_operands = 1 : i64, tpu.core_type = #tpu.core_type<tc>, window_params = [{pipeline_mode = #tpu.pipeline_mode<synchronous>, transform_indices = @transform_0, window_bounds = array<i64: 16, 32>}, {pipeline_mode = #tpu.pipeline_mode<synchronous>, transform_indices = @transform_1, window_bounds = array<i64: 2, 2, 128>}, {pipeline_mode = #tpu.pipeline_mode<synchronous>, transform_indices = @transform_2, window_bounds = array<i64: 32, 384>}, {pipeline_mode = #tpu.pipeline_mode<synchronous>, transform_indices = @transform_3, window_bounds = array<i64: 128, 384>}, {pipeline_mode = #tpu.pipeline_mode<synchronous>, transform_indices = @transform_4, window_bounds = array<i64: 1, 384>}, {pipeline_mode = #tpu.pipeline_mode<synchronous>, transform_indices = @transform_5, window_bounds = array<i64: 1, 384>}, {pipeline_mode = #tpu.pipeline_mode<synchronous>, transform_indices = @transform_6, window_bounds = array<i64: 128, 384>}, {pipeline_mode = #tpu.pipeline_mode<synchronous>, transform_indices = @transform_7, window_bounds = array<i64: 128, 384>}, {pipeline_mode = #tpu.pipeline_mode<synchronous>, transform_indices = @transform_8, window_bounds = array<i64: 1, 384>}, {pipeline_mode = #tpu.pipeline_mode<synchronous>, transform_indices = @transform_9, window_bounds = array<i64: 1, 384>}, {pipeline_mode = #tpu.pipeline_mode<synchronous>, transform_indices = @transform_10, window_bounds = array<i64: 128, 128>}, {pipeline_mode = #tpu.pipeline_mode<synchronous>, transform_indices = @transform_11, window_bounds = array<i64: 1, 128>}, {pipeline_mode = #tpu.pipeline_mode<synchronous>, transform_indices = @transform_12, window_bounds = array<i64: 16, 128>}, {pipeline_mode = #tpu.pipeline_mode<synchronous>, transform_indices = @transform_13, window_bounds = array<i64: 2, 2, 128>}]} {
    %c0 = arith.constant 0 : index
    %c0_0 = arith.constant 0 : index
    %0 = vector.load %arg1[%c0, %c0_0] : memref<16x32xf32, #tpu.memory_space<vmem>>, vector<16x32xf32>
    %c0_1 = arith.constant 0 : index
    %c0_2 = arith.constant 0 : index
    %1 = vector.load %arg3[%c0_1, %c0_2] : memref<32x384xf32, #tpu.memory_space<vmem>>, vector<32x384xf32>
    %c0_3 = arith.constant 0 : index
    %c0_4 = arith.constant 0 : index
    %2 = vector.load %arg4[%c0_3, %c0_4] : memref<128x384xf32, #tpu.memory_space<vmem>>, vector<128x384xf32>
    %c0_5 = arith.constant 0 : index
    %c0_6 = arith.constant 0 : index
    %3 = vector.load %arg5[%c0_5, %c0_6] : memref<1x384xf32, #tpu.memory_space<vmem>>, vector<1x384xf32>
    %c0_7 = arith.constant 0 : index
    %c0_8 = arith.constant 0 : index
    %4 = vector.load %arg6[%c0_7, %c0_8] : memref<1x384xf32, #tpu.memory_space<vmem>>, vector<1x384xf32>
    %cst = arith.constant dense<0.000000e+00> : vector<16x384xf32>
    %5 = tpu.matmul %0, %1, %cst {dimension_numbers = #tpu.dot_dimension_numbers<[1], [0], [0], [1], [0, 0, 1, 1], [], []>} : vector<16x32xf32>, vector<32x384xf32>, vector<16x384xf32> -> vector<16x384xf32>
    %6 = vector.broadcast %3 : vector<1x384xf32> to vector<16x384xf32>
    %7 = arith.addf %5, %6 : vector<16x384xf32>
    %c0_9 = arith.constant 0 : index
    %c0_10 = arith.constant 0 : index
    %c0_11 = arith.constant 0 : index
    %8 = vector.load %arg2[%c0_9, %c0_10, %c0_11] : memref<2x2x128xf32, #tpu.memory_space<vmem>>, vector<1x2x128xf32>
    %9 = vector.shape_cast %8 : vector<1x2x128xf32> to vector<2x128xf32>
    %10 = vector.extract_strided_slice %7 {offsets = [0, 0], sizes = [1, 384], strides = [1, 1]} : vector<16x384xf32> to vector<1x384xf32>
    %11 = vector.extract_strided_slice %7 {offsets = [8, 0], sizes = [1, 384], strides = [1, 1]} : vector<16x384xf32> to vector<1x384xf32>
    %12 = tpu.concatenate %10, %11 in 0 : vector<1x384xf32>, vector<1x384xf32> -> vector<2x384xf32>
    %cst_12 = arith.constant dense<0.000000e+00> : vector<2x384xf32>
    %13 = tpu.matmul %9, %2, %cst_12 {dimension_numbers = #tpu.dot_dimension_numbers<[1], [0], [0], [1], [0, 0, 1, 1], [], []>} : vector<2x128xf32>, vector<128x384xf32>, vector<2x384xf32> -> vector<2x384xf32>
    %14 = vector.broadcast %4 : vector<1x384xf32> to vector<2x384xf32>
    %15 = arith.addf %13, %14 : vector<2x384xf32>
    %16 = vector.extract_strided_slice %12 {offsets = [0, 0], sizes = [2, 128], strides = [1, 1]} : vector<2x384xf32> to vector<2x128xf32>
    %17 = vector.extract_strided_slice %15 {offsets = [0, 0], sizes = [2, 128], strides = [1, 1]} : vector<2x384xf32> to vector<2x128xf32>
    %18 = arith.addf %16, %17 : vector<2x128xf32>
    %19 = arith.negf %18 : vector<2x128xf32>
    %20 = math.exp %19 : vector<2x128xf32>
    %cst_13 = arith.constant 1.000000e+00 : f32
    %21 = vector.broadcast %cst_13 : f32 to vector<2x128xf32>
    %22 = arith.addf %21, %20 : vector<2x128xf32>
    %23 = arith.divf %21, %22 : vector<2x128xf32>
    %24 = vector.extract_strided_slice %12 {offsets = [0, 128], sizes = [2, 128], strides = [1, 1]} : vector<2x384xf32> to vector<2x128xf32>
    %25 = vector.extract_strided_slice %15 {offsets = [0, 128], sizes = [2, 128], strides = [1, 1]} : vector<2x384xf32> to vector<2x128xf32>
    %26 = arith.addf %24, %25 : vector<2x128xf32>
    %27 = arith.negf %26 : vector<2x128xf32>
    %28 = math.exp %27 : vector<2x128xf32>
    %cst_14 = arith.constant 1.000000e+00 : f32
    %29 = vector.broadcast %cst_14 : f32 to vector<2x128xf32>
    %30 = arith.addf %29, %28 : vector<2x128xf32>
    %31 = arith.divf %29, %30 : vector<2x128xf32>
    %32 = vector.extract_strided_slice %12 {offsets = [0, 256], sizes = [2, 128], strides = [1, 1]} : vector<2x384xf32> to vector<2x128xf32>
    %33 = vector.extract_strided_slice %15 {offsets = [0, 256], sizes = [2, 128], strides = [1, 1]} : vector<2x384xf32> to vector<2x128xf32>
    %34 = arith.mulf %23, %33 : vector<2x128xf32>
    %35 = arith.addf %32, %34 : vector<2x128xf32>
    %36 = math.tanh %35 : vector<2x128xf32>
    %cst_15 = arith.constant 1.000000e+00 : f32
    %37 = vector.broadcast %cst_15 : f32 to vector<2x128xf32>
    %38 = arith.subf %37, %31 : vector<2x128xf32>
    %39 = arith.mulf %38, %36 : vector<2x128xf32>
    %40 = arith.mulf %31, %9 : vector<2x128xf32>
    %41 = arith.addf %39, %40 : vector<2x128xf32>
    %42 = vector.extract_strided_slice %41 {offsets = [0, 0], sizes = [1, 128], strides = [1, 1]} : vector<2x128xf32> to vector<1x128xf32>
    %c0_16 = arith.constant 0 : index
    %c0_17 = arith.constant 0 : index
    %43 = vector.load %arg15[%c0_16, %c0_17] : memref<16x128xf32, #tpu.memory_space<vmem>>, vector<1x128xf32>
    tpu.vector_store %arg15[%c0_16, %c0_17], %42 {strides = array<i32>} : memref<16x128xf32, #tpu.memory_space<vmem>>, vector<1x128xf32>,
    %44 = vector.extract_strided_slice %41 {offsets = [1, 0], sizes = [1, 128], strides = [1, 1]} : vector<2x128xf32> to vector<1x128xf32>
    %c8 = arith.constant 8 : index
    %c0_18 = arith.constant 0 : index
    %45 = vector.load %arg15[%c8, %c0_18] : memref<16x128xf32, #tpu.memory_space<vmem>>, vector<1x128xf32>
    tpu.vector_store %arg15[%c8, %c0_18], %44 {strides = array<i32>} : memref<16x128xf32, #tpu.memory_space<vmem>>, vector<1x128xf32>,
    %46 = vector.extract_strided_slice %7 {offsets = [1, 0], sizes = [1, 384], strides = [1, 1]} : vector<16x384xf32> to vector<1x384xf32>
    %47 = vector.extract_strided_slice %7 {offsets = [9, 0], sizes = [1, 384], strides = [1, 1]} : vector<16x384xf32> to vector<1x384xf32>
    %48 = tpu.concatenate %46, %47 in 0 : vector<1x384xf32>, vector<1x384xf32> -> vector<2x384xf32>
    %cst_19 = arith.constant dense<0.000000e+00> : vector<2x384xf32>
    %49 = tpu.matmul %41, %2, %cst_19 {dimension_numbers = #tpu.dot_dimension_numbers<[1], [0], [0], [1], [0, 0, 1, 1], [], []>} : vector<2x128xf32>, vector<128x384xf32>, vector<2x384xf32> -> vector<2x384xf32>
    %50 = vector.broadcast %4 : vector<1x384xf32> to vector<2x384xf32>
    %51 = arith.addf %49, %50 : vector<2x384xf32>
    %52 = vector.extract_strided_slice %48 {offsets = [0, 0], sizes = [2, 128], strides = [1, 1]} : vector<2x384xf32> to vector<2x128xf32>
    %53 = vector.extract_strided_slice %51 {offsets = [0, 0], sizes = [2, 128], strides = [1, 1]} : vector<2x384xf32> to vector<2x128xf32>
    %54 = arith.addf %52, %53 : vector<2x128xf32>
    %55 = arith.negf %54 : vector<2x128xf32>
    %56 = math.exp %55 : vector<2x128xf32>
    %cst_20 = arith.constant 1.000000e+00 : f32
    %57 = vector.broadcast %cst_20 : f32 to vector<2x128xf32>
    %58 = arith.addf %57, %56 : vector<2x128xf32>
    %59 = arith.divf %57, %58 : vector<2x128xf32>
    %60 = vector.extract_strided_slice %48 {offsets = [0, 128], sizes = [2, 128], strides = [1, 1]} : vector<2x384xf32> to vector<2x128xf32>
    %61 = vector.extract_strided_slice %51 {offsets = [0, 128], sizes = [2, 128], strides = [1, 1]} : vector<2x384xf32> to vector<2x128xf32>
    %62 = arith.addf %60, %61 : vector<2x128xf32>
    %63 = arith.negf %62 : vector<2x128xf32>
    %64 = math.exp %63 : vector<2x128xf32>
    %cst_21 = arith.constant 1.000000e+00 : f32
    %65 = vector.broadcast %cst_21 : f32 to vector<2x128xf32>
    %66 = arith.addf %65, %64 : vector<2x128xf32>
    %67 = arith.divf %65, %66 : vector<2x128xf32>
    %68 = vector.extract_strided_slice %48 {offsets = [0, 256], sizes = [2, 128], strides = [1, 1]} : vector<2x384xf32> to vector<2x128xf32>
    %69 = vector.extract_strided_slice %51 {offsets = [0, 256], sizes = [2, 128], strides = [1, 1]} : vector<2x384xf32> to vector<2x128xf32>
    %70 = arith.mulf %59, %69 : vector<2x128xf32>
    %71 = arith.addf %68, %70 : vector<2x128xf32>
    %72 = math.tanh %71 : vector<2x128xf32>
    %cst_22 = arith.constant 1.000000e+00 : f32
    %73 = vector.broadcast %cst_22 : f32 to vector<2x128xf32>
    %74 = arith.subf %73, %67 : vector<2x128xf32>
    %75 = arith.mulf %74, %72 : vector<2x128xf32>
    %76 = arith.mulf %67, %41 : vector<2x128xf32>
    %77 = arith.addf %75, %76 : vector<2x128xf32>
    %78 = vector.extract_strided_slice %77 {offsets = [0, 0], sizes = [1, 128], strides = [1, 1]} : vector<2x128xf32> to vector<1x128xf32>
    %c1 = arith.constant 1 : index
    %c0_23 = arith.constant 0 : index
    %79 = vector.load %arg15[%c1, %c0_23] : memref<16x128xf32, #tpu.memory_space<vmem>>, vector<1x128xf32>
    tpu.vector_store %arg15[%c1, %c0_23], %78 {strides = array<i32>} : memref<16x128xf32, #tpu.memory_space<vmem>>, vector<1x128xf32>,
    %80 = vector.extract_strided_slice %77 {offsets = [1, 0], sizes = [1, 128], strides = [1, 1]} : vector<2x128xf32> to vector<1x128xf32>
    %c9 = arith.constant 9 : index
    %c0_24 = arith.constant 0 : index
    %81 = vector.load %arg15[%c9, %c0_24] : memref<16x128xf32, #tpu.memory_space<vmem>>, vector<1x128xf32>
    tpu.vector_store %arg15[%c9, %c0_24], %80 {strides = array<i32>} : memref<16x128xf32, #tpu.memory_space<vmem>>, vector<1x128xf32>,
    %82 = vector.extract_strided_slice %7 {offsets = [2, 0], sizes = [1, 384], strides = [1, 1]} : vector<16x384xf32> to vector<1x384xf32>
    %83 = vector.extract_strided_slice %7 {offsets = [10, 0], sizes = [1, 384], strides = [1, 1]} : vector<16x384xf32> to vector<1x384xf32>
    %84 = tpu.concatenate %82, %83 in 0 : vector<1x384xf32>, vector<1x384xf32> -> vector<2x384xf32>
    %cst_25 = arith.constant dense<0.000000e+00> : vector<2x384xf32>
    %85 = tpu.matmul %77, %2, %cst_25 {dimension_numbers = #tpu.dot_dimension_numbers<[1], [0], [0], [1], [0, 0, 1, 1], [], []>} : vector<2x128xf32>, vector<128x384xf32>, vector<2x384xf32> -> vector<2x384xf32>
    %86 = vector.broadcast %4 : vector<1x384xf32> to vector<2x384xf32>
    %87 = arith.addf %85, %86 : vector<2x384xf32>
    %88 = vector.extract_strided_slice %84 {offsets = [0, 0], sizes = [2, 128], strides = [1, 1]} : vector<2x384xf32> to vector<2x128xf32>
    %89 = vector.extract_strided_slice %87 {offsets = [0, 0], sizes = [2, 128], strides = [1, 1]} : vector<2x384xf32> to vector<2x128xf32>
    %90 = arith.addf %88, %89 : vector<2x128xf32>
    %91 = arith.negf %90 : vector<2x128xf32>
    %92 = math.exp %91 : vector<2x128xf32>
    %cst_26 = arith.constant 1.000000e+00 : f32
    %93 = vector.broadcast %cst_26 : f32 to vector<2x128xf32>
    %94 = arith.addf %93, %92 : vector<2x128xf32>
    %95 = arith.divf %93, %94 : vector<2x128xf32>
    %96 = vector.extract_strided_slice %84 {offsets = [0, 128], sizes = [2, 128], strides = [1, 1]} : vector<2x384xf32> to vector<2x128xf32>
    %97 = vector.extract_strided_slice %87 {offsets = [0, 128], sizes = [2, 128], strides = [1, 1]} : vector<2x384xf32> to vector<2x128xf32>
    %98 = arith.addf %96, %97 : vector<2x128xf32>
    %99 = arith.negf %98 : vector<2x128xf32>
    %100 = math.exp %99 : vector<2x128xf32>
    %cst_27 = arith.constant 1.000000e+00 : f32
    %101 = vector.broadcast %cst_27 : f32 to vector<2x128xf32>
    %102 = arith.addf %101, %100 : vector<2x128xf32>
    %103 = arith.divf %101, %102 : vector<2x128xf32>
    %104 = vector.extract_strided_slice %84 {offsets = [0, 256], sizes = [2, 128], strides = [1, 1]} : vector<2x384xf32> to vector<2x128xf32>
    %105 = vector.extract_strided_slice %87 {offsets = [0, 256], sizes = [2, 128], strides = [1, 1]} : vector<2x384xf32> to vector<2x128xf32>
    %106 = arith.mulf %95, %105 : vector<2x128xf32>
    %107 = arith.addf %104, %106 : vector<2x128xf32>
    %108 = math.tanh %107 : vector<2x128xf32>
    %cst_28 = arith.constant 1.000000e+00 : f32
    %109 = vector.broadcast %cst_28 : f32 to vector<2x128xf32>
    %110 = arith.subf %109, %103 : vector<2x128xf32>
    %111 = arith.mulf %110, %108 : vector<2x128xf32>
    %112 = arith.mulf %103, %77 : vector<2x128xf32>
    %113 = arith.addf %111, %112 : vector<2x128xf32>
    %114 = vector.extract_strided_slice %113 {offsets = [0, 0], sizes = [1, 128], strides = [1, 1]} : vector<2x128xf32> to vector<1x128xf32>
    %c2 = arith.constant 2 : index
    %c0_29 = arith.constant 0 : index
    %115 = vector.load %arg15[%c2, %c0_29] : memref<16x128xf32, #tpu.memory_space<vmem>>, vector<1x128xf32>
    tpu.vector_store %arg15[%c2, %c0_29], %114 {strides = array<i32>} : memref<16x128xf32, #tpu.memory_space<vmem>>, vector<1x128xf32>,
    %116 = vector.extract_strided_slice %113 {offsets = [1, 0], sizes = [1, 128], strides = [1, 1]} : vector<2x128xf32> to vector<1x128xf32>
    %c10 = arith.constant 10 : index
    %c0_30 = arith.constant 0 : index
    %117 = vector.load %arg15[%c10, %c0_30] : memref<16x128xf32, #tpu.memory_space<vmem>>, vector<1x128xf32>
    tpu.vector_store %arg15[%c10, %c0_30], %116 {strides = array<i32>} : memref<16x128xf32, #tpu.memory_space<vmem>>, vector<1x128xf32>,
    %118 = vector.extract_strided_slice %7 {offsets = [3, 0], sizes = [1, 384], strides = [1, 1]} : vector<16x384xf32> to vector<1x384xf32>
    %119 = vector.extract_strided_slice %7 {offsets = [11, 0], sizes = [1, 384], strides = [1, 1]} : vector<16x384xf32> to vector<1x384xf32>
    %120 = tpu.concatenate %118, %119 in 0 : vector<1x384xf32>, vector<1x384xf32> -> vector<2x384xf32>
    %cst_31 = arith.constant dense<0.000000e+00> : vector<2x384xf32>
    %121 = tpu.matmul %113, %2, %cst_31 {dimension_numbers = #tpu.dot_dimension_numbers<[1], [0], [0], [1], [0, 0, 1, 1], [], []>} : vector<2x128xf32>, vector<128x384xf32>, vector<2x384xf32> -> vector<2x384xf32>
    %122 = vector.broadcast %4 : vector<1x384xf32> to vector<2x384xf32>
    %123 = arith.addf %121, %122 : vector<2x384xf32>
    %124 = vector.extract_strided_slice %120 {offsets = [0, 0], sizes = [2, 128], strides = [1, 1]} : vector<2x384xf32> to vector<2x128xf32>
    %125 = vector.extract_strided_slice %123 {offsets = [0, 0], sizes = [2, 128], strides = [1, 1]} : vector<2x384xf32> to vector<2x128xf32>
    %126 = arith.addf %124, %125 : vector<2x128xf32>
    %127 = arith.negf %126 : vector<2x128xf32>
    %128 = math.exp %127 : vector<2x128xf32>
    %cst_32 = arith.constant 1.000000e+00 : f32
    %129 = vector.broadcast %cst_32 : f32 to vector<2x128xf32>
    %130 = arith.addf %129, %128 : vector<2x128xf32>
    %131 = arith.divf %129, %130 : vector<2x128xf32>
    %132 = vector.extract_strided_slice %120 {offsets = [0, 128], sizes = [2, 128], strides = [1, 1]} : vector<2x384xf32> to vector<2x128xf32>
    %133 = vector.extract_strided_slice %123 {offsets = [0, 128], sizes = [2, 128], strides = [1, 1]} : vector<2x384xf32> to vector<2x128xf32>
    %134 = arith.addf %132, %133 : vector<2x128xf32>
    %135 = arith.negf %134 : vector<2x128xf32>
    %136 = math.exp %135 : vector<2x128xf32>
    %cst_33 = arith.constant 1.000000e+00 : f32
    %137 = vector.broadcast %cst_33 : f32 to vector<2x128xf32>
    %138 = arith.addf %137, %136 : vector<2x128xf32>
    %139 = arith.divf %137, %138 : vector<2x128xf32>
    %140 = vector.extract_strided_slice %120 {offsets = [0, 256], sizes = [2, 128], strides = [1, 1]} : vector<2x384xf32> to vector<2x128xf32>
    %141 = vector.extract_strided_slice %123 {offsets = [0, 256], sizes = [2, 128], strides = [1, 1]} : vector<2x384xf32> to vector<2x128xf32>
    %142 = arith.mulf %131, %141 : vector<2x128xf32>
    %143 = arith.addf %140, %142 : vector<2x128xf32>
    %144 = math.tanh %143 : vector<2x128xf32>
    %cst_34 = arith.constant 1.000000e+00 : f32
    %145 = vector.broadcast %cst_34 : f32 to vector<2x128xf32>
    %146 = arith.subf %145, %139 : vector<2x128xf32>
    %147 = arith.mulf %146, %144 : vector<2x128xf32>
    %148 = arith.mulf %139, %113 : vector<2x128xf32>
    %149 = arith.addf %147, %148 : vector<2x128xf32>
    %150 = vector.extract_strided_slice %149 {offsets = [0, 0], sizes = [1, 128], strides = [1, 1]} : vector<2x128xf32> to vector<1x128xf32>
    %c3 = arith.constant 3 : index
    %c0_35 = arith.constant 0 : index
    %151 = vector.load %arg15[%c3, %c0_35] : memref<16x128xf32, #tpu.memory_space<vmem>>, vector<1x128xf32>
    tpu.vector_store %arg15[%c3, %c0_35], %150 {strides = array<i32>} : memref<16x128xf32, #tpu.memory_space<vmem>>, vector<1x128xf32>,
    %152 = vector.extract_strided_slice %149 {offsets = [1, 0], sizes = [1, 128], strides = [1, 1]} : vector<2x128xf32> to vector<1x128xf32>
    %c11 = arith.constant 11 : index
    %c0_36 = arith.constant 0 : index
    %153 = vector.load %arg15[%c11, %c0_36] : memref<16x128xf32, #tpu.memory_space<vmem>>, vector<1x128xf32>
    tpu.vector_store %arg15[%c11, %c0_36], %152 {strides = array<i32>} : memref<16x128xf32, #tpu.memory_space<vmem>>, vector<1x128xf32>,
    %154 = vector.extract_strided_slice %7 {offsets = [4, 0], sizes = [1, 384], strides = [1, 1]} : vector<16x384xf32> to vector<1x384xf32>
    %155 = vector.extract_strided_slice %7 {offsets = [12, 0], sizes = [1, 384], strides = [1, 1]} : vector<16x384xf32> to vector<1x384xf32>
    %156 = tpu.concatenate %154, %155 in 0 : vector<1x384xf32>, vector<1x384xf32> -> vector<2x384xf32>
    %cst_37 = arith.constant dense<0.000000e+00> : vector<2x384xf32>
    %157 = tpu.matmul %149, %2, %cst_37 {dimension_numbers = #tpu.dot_dimension_numbers<[1], [0], [0], [1], [0, 0, 1, 1], [], []>} : vector<2x128xf32>, vector<128x384xf32>, vector<2x384xf32> -> vector<2x384xf32>
    %158 = vector.broadcast %4 : vector<1x384xf32> to vector<2x384xf32>
    %159 = arith.addf %157, %158 : vector<2x384xf32>
    %160 = vector.extract_strided_slice %156 {offsets = [0, 0], sizes = [2, 128], strides = [1, 1]} : vector<2x384xf32> to vector<2x128xf32>
    %161 = vector.extract_strided_slice %159 {offsets = [0, 0], sizes = [2, 128], strides = [1, 1]} : vector<2x384xf32> to vector<2x128xf32>
    %162 = arith.addf %160, %161 : vector<2x128xf32>
    %163 = arith.negf %162 : vector<2x128xf32>
    %164 = math.exp %163 : vector<2x128xf32>
    %cst_38 = arith.constant 1.000000e+00 : f32
    %165 = vector.broadcast %cst_38 : f32 to vector<2x128xf32>
    %166 = arith.addf %165, %164 : vector<2x128xf32>
    %167 = arith.divf %165, %166 : vector<2x128xf32>
    %168 = vector.extract_strided_slice %156 {offsets = [0, 128], sizes = [2, 128], strides = [1, 1]} : vector<2x384xf32> to vector<2x128xf32>
    %169 = vector.extract_strided_slice %159 {offsets = [0, 128], sizes = [2, 128], strides = [1, 1]} : vector<2x384xf32> to vector<2x128xf32>
    %170 = arith.addf %168, %169 : vector<2x128xf32>
    %171 = arith.negf %170 : vector<2x128xf32>
    %172 = math.exp %171 : vector<2x128xf32>
    %cst_39 = arith.constant 1.000000e+00 : f32
    %173 = vector.broadcast %cst_39 : f32 to vector<2x128xf32>
    %174 = arith.addf %173, %172 : vector<2x128xf32>
    %175 = arith.divf %173, %174 : vector<2x128xf32>
    %176 = vector.extract_strided_slice %156 {offsets = [0, 256], sizes = [2, 128], strides = [1, 1]} : vector<2x384xf32> to vector<2x128xf32>
    %177 = vector.extract_strided_slice %159 {offsets = [0, 256], sizes = [2, 128], strides = [1, 1]} : vector<2x384xf32> to vector<2x128xf32>
    %178 = arith.mulf %167, %177 : vector<2x128xf32>
    %179 = arith.addf %176, %178 : vector<2x128xf32>
    %180 = math.tanh %179 : vector<2x128xf32>
    %cst_40 = arith.constant 1.000000e+00 : f32
    %181 = vector.broadcast %cst_40 : f32 to vector<2x128xf32>
    %182 = arith.subf %181, %175 : vector<2x128xf32>
    %183 = arith.mulf %182, %180 : vector<2x128xf32>
    %184 = arith.mulf %175, %149 : vector<2x128xf32>
    %185 = arith.addf %183, %184 : vector<2x128xf32>
    %186 = vector.extract_strided_slice %185 {offsets = [0, 0], sizes = [1, 128], strides = [1, 1]} : vector<2x128xf32> to vector<1x128xf32>
    %c4 = arith.constant 4 : index
    %c0_41 = arith.constant 0 : index
    %187 = vector.load %arg15[%c4, %c0_41] : memref<16x128xf32, #tpu.memory_space<vmem>>, vector<1x128xf32>
    tpu.vector_store %arg15[%c4, %c0_41], %186 {strides = array<i32>} : memref<16x128xf32, #tpu.memory_space<vmem>>, vector<1x128xf32>,
    %188 = vector.extract_strided_slice %185 {offsets = [1, 0], sizes = [1, 128], strides = [1, 1]} : vector<2x128xf32> to vector<1x128xf32>
    %c12 = arith.constant 12 : index
    %c0_42 = arith.constant 0 : index
    %189 = vector.load %arg15[%c12, %c0_42] : memref<16x128xf32, #tpu.memory_space<vmem>>, vector<1x128xf32>
    tpu.vector_store %arg15[%c12, %c0_42], %188 {strides = array<i32>} : memref<16x128xf32, #tpu.memory_space<vmem>>, vector<1x128xf32>,
    %190 = vector.extract_strided_slice %7 {offsets = [5, 0], sizes = [1, 384], strides = [1, 1]} : vector<16x384xf32> to vector<1x384xf32>
    %191 = vector.extract_strided_slice %7 {offsets = [13, 0], sizes = [1, 384], strides = [1, 1]} : vector<16x384xf32> to vector<1x384xf32>
    %192 = tpu.concatenate %190, %191 in 0 : vector<1x384xf32>, vector<1x384xf32> -> vector<2x384xf32>
    %cst_43 = arith.constant dense<0.000000e+00> : vector<2x384xf32>
    %193 = tpu.matmul %185, %2, %cst_43 {dimension_numbers = #tpu.dot_dimension_numbers<[1], [0], [0], [1], [0, 0, 1, 1], [], []>} : vector<2x128xf32>, vector<128x384xf32>, vector<2x384xf32> -> vector<2x384xf32>
    %194 = vector.broadcast %4 : vector<1x384xf32> to vector<2x384xf32>
    %195 = arith.addf %193, %194 : vector<2x384xf32>
    %196 = vector.extract_strided_slice %192 {offsets = [0, 0], sizes = [2, 128], strides = [1, 1]} : vector<2x384xf32> to vector<2x128xf32>
    %197 = vector.extract_strided_slice %195 {offsets = [0, 0], sizes = [2, 128], strides = [1, 1]} : vector<2x384xf32> to vector<2x128xf32>
    %198 = arith.addf %196, %197 : vector<2x128xf32>
    %199 = arith.negf %198 : vector<2x128xf32>
    %200 = math.exp %199 : vector<2x128xf32>
    %cst_44 = arith.constant 1.000000e+00 : f32
    %201 = vector.broadcast %cst_44 : f32 to vector<2x128xf32>
    %202 = arith.addf %201, %200 : vector<2x128xf32>
    %203 = arith.divf %201, %202 : vector<2x128xf32>
    %204 = vector.extract_strided_slice %192 {offsets = [0, 128], sizes = [2, 128], strides = [1, 1]} : vector<2x384xf32> to vector<2x128xf32>
    %205 = vector.extract_strided_slice %195 {offsets = [0, 128], sizes = [2, 128], strides = [1, 1]} : vector<2x384xf32> to vector<2x128xf32>
    %206 = arith.addf %204, %205 : vector<2x128xf32>
    %207 = arith.negf %206 : vector<2x128xf32>
    %208 = math.exp %207 : vector<2x128xf32>
    %cst_45 = arith.constant 1.000000e+00 : f32
    %209 = vector.broadcast %cst_45 : f32 to vector<2x128xf32>
    %210 = arith.addf %209, %208 : vector<2x128xf32>
    %211 = arith.divf %209, %210 : vector<2x128xf32>
    %212 = vector.extract_strided_slice %192 {offsets = [0, 256], sizes = [2, 128], strides = [1, 1]} : vector<2x384xf32> to vector<2x128xf32>
    %213 = vector.extract_strided_slice %195 {offsets = [0, 256], sizes = [2, 128], strides = [1, 1]} : vector<2x384xf32> to vector<2x128xf32>
    %214 = arith.mulf %203, %213 : vector<2x128xf32>
    %215 = arith.addf %212, %214 : vector<2x128xf32>
    %216 = math.tanh %215 : vector<2x128xf32>
    %cst_46 = arith.constant 1.000000e+00 : f32
    %217 = vector.broadcast %cst_46 : f32 to vector<2x128xf32>
    %218 = arith.subf %217, %211 : vector<2x128xf32>
    %219 = arith.mulf %218, %216 : vector<2x128xf32>
    %220 = arith.mulf %211, %185 : vector<2x128xf32>
    %221 = arith.addf %219, %220 : vector<2x128xf32>
    %222 = vector.extract_strided_slice %221 {offsets = [0, 0], sizes = [1, 128], strides = [1, 1]} : vector<2x128xf32> to vector<1x128xf32>
    %c5 = arith.constant 5 : index
    %c0_47 = arith.constant 0 : index
    %223 = vector.load %arg15[%c5, %c0_47] : memref<16x128xf32, #tpu.memory_space<vmem>>, vector<1x128xf32>
    tpu.vector_store %arg15[%c5, %c0_47], %222 {strides = array<i32>} : memref<16x128xf32, #tpu.memory_space<vmem>>, vector<1x128xf32>,
    %224 = vector.extract_strided_slice %221 {offsets = [1, 0], sizes = [1, 128], strides = [1, 1]} : vector<2x128xf32> to vector<1x128xf32>
    %c13 = arith.constant 13 : index
    %c0_48 = arith.constant 0 : index
    %225 = vector.load %arg15[%c13, %c0_48] : memref<16x128xf32, #tpu.memory_space<vmem>>, vector<1x128xf32>
    tpu.vector_store %arg15[%c13, %c0_48], %224 {strides = array<i32>} : memref<16x128xf32, #tpu.memory_space<vmem>>, vector<1x128xf32>,
    %226 = vector.extract_strided_slice %7 {offsets = [6, 0], sizes = [1, 384], strides = [1, 1]} : vector<16x384xf32> to vector<1x384xf32>
    %227 = vector.extract_strided_slice %7 {offsets = [14, 0], sizes = [1, 384], strides = [1, 1]} : vector<16x384xf32> to vector<1x384xf32>
    %228 = tpu.concatenate %226, %227 in 0 : vector<1x384xf32>, vector<1x384xf32> -> vector<2x384xf32>
    %cst_49 = arith.constant dense<0.000000e+00> : vector<2x384xf32>
    %229 = tpu.matmul %221, %2, %cst_49 {dimension_numbers = #tpu.dot_dimension_numbers<[1], [0], [0], [1], [0, 0, 1, 1], [], []>} : vector<2x128xf32>, vector<128x384xf32>, vector<2x384xf32> -> vector<2x384xf32>
    %230 = vector.broadcast %4 : vector<1x384xf32> to vector<2x384xf32>
    %231 = arith.addf %229, %230 : vector<2x384xf32>
    %232 = vector.extract_strided_slice %228 {offsets = [0, 0], sizes = [2, 128], strides = [1, 1]} : vector<2x384xf32> to vector<2x128xf32>
    %233 = vector.extract_strided_slice %231 {offsets = [0, 0], sizes = [2, 128], strides = [1, 1]} : vector<2x384xf32> to vector<2x128xf32>
    %234 = arith.addf %232, %233 : vector<2x128xf32>
    %235 = arith.negf %234 : vector<2x128xf32>
    %236 = math.exp %235 : vector<2x128xf32>
    %cst_50 = arith.constant 1.000000e+00 : f32
    %237 = vector.broadcast %cst_50 : f32 to vector<2x128xf32>
    %238 = arith.addf %237, %236 : vector<2x128xf32>
    %239 = arith.divf %237, %238 : vector<2x128xf32>
    %240 = vector.extract_strided_slice %228 {offsets = [0, 128], sizes = [2, 128], strides = [1, 1]} : vector<2x384xf32> to vector<2x128xf32>
    %241 = vector.extract_strided_slice %231 {offsets = [0, 128], sizes = [2, 128], strides = [1, 1]} : vector<2x384xf32> to vector<2x128xf32>
    %242 = arith.addf %240, %241 : vector<2x128xf32>
    %243 = arith.negf %242 : vector<2x128xf32>
    %244 = math.exp %243 : vector<2x128xf32>
    %cst_51 = arith.constant 1.000000e+00 : f32
    %245 = vector.broadcast %cst_51 : f32 to vector<2x128xf32>
    %246 = arith.addf %245, %244 : vector<2x128xf32>
    %247 = arith.divf %245, %246 : vector<2x128xf32>
    %248 = vector.extract_strided_slice %228 {offsets = [0, 256], sizes = [2, 128], strides = [1, 1]} : vector<2x384xf32> to vector<2x128xf32>
    %249 = vector.extract_strided_slice %231 {offsets = [0, 256], sizes = [2, 128], strides = [1, 1]} : vector<2x384xf32> to vector<2x128xf32>
    %250 = arith.mulf %239, %249 : vector<2x128xf32>
    %251 = arith.addf %248, %250 : vector<2x128xf32>
    %252 = math.tanh %251 : vector<2x128xf32>
    %cst_52 = arith.constant 1.000000e+00 : f32
    %253 = vector.broadcast %cst_52 : f32 to vector<2x128xf32>
    %254 = arith.subf %253, %247 : vector<2x128xf32>
    %255 = arith.mulf %254, %252 : vector<2x128xf32>
    %256 = arith.mulf %247, %221 : vector<2x128xf32>
    %257 = arith.addf %255, %256 : vector<2x128xf32>
    %258 = vector.extract_strided_slice %257 {offsets = [0, 0], sizes = [1, 128], strides = [1, 1]} : vector<2x128xf32> to vector<1x128xf32>
    %c6 = arith.constant 6 : index
    %c0_53 = arith.constant 0 : index
    %259 = vector.load %arg15[%c6, %c0_53] : memref<16x128xf32, #tpu.memory_space<vmem>>, vector<1x128xf32>
    tpu.vector_store %arg15[%c6, %c0_53], %258 {strides = array<i32>} : memref<16x128xf32, #tpu.memory_space<vmem>>, vector<1x128xf32>,
    %260 = vector.extract_strided_slice %257 {offsets = [1, 0], sizes = [1, 128], strides = [1, 1]} : vector<2x128xf32> to vector<1x128xf32>
    %c14 = arith.constant 14 : index
    %c0_54 = arith.constant 0 : index
    %261 = vector.load %arg15[%c14, %c0_54] : memref<16x128xf32, #tpu.memory_space<vmem>>, vector<1x128xf32>
    tpu.vector_store %arg15[%c14, %c0_54], %260 {strides = array<i32>} : memref<16x128xf32, #tpu.memory_space<vmem>>, vector<1x128xf32>,
    %262 = vector.extract_strided_slice %7 {offsets = [7, 0], sizes = [1, 384], strides = [1, 1]} : vector<16x384xf32> to vector<1x384xf32>
    %263 = vector.extract_strided_slice %7 {offsets = [15, 0], sizes = [1, 384], strides = [1, 1]} : vector<16x384xf32> to vector<1x384xf32>
    %264 = tpu.concatenate %262, %263 in 0 : vector<1x384xf32>, vector<1x384xf32> -> vector<2x384xf32>
    %cst_55 = arith.constant dense<0.000000e+00> : vector<2x384xf32>
    %265 = tpu.matmul %257, %2, %cst_55 {dimension_numbers = #tpu.dot_dimension_numbers<[1], [0], [0], [1], [0, 0, 1, 1], [], []>} : vector<2x128xf32>, vector<128x384xf32>, vector<2x384xf32> -> vector<2x384xf32>
    %266 = vector.broadcast %4 : vector<1x384xf32> to vector<2x384xf32>
    %267 = arith.addf %265, %266 : vector<2x384xf32>
    %268 = vector.extract_strided_slice %264 {offsets = [0, 0], sizes = [2, 128], strides = [1, 1]} : vector<2x384xf32> to vector<2x128xf32>
    %269 = vector.extract_strided_slice %267 {offsets = [0, 0], sizes = [2, 128], strides = [1, 1]} : vector<2x384xf32> to vector<2x128xf32>
    %270 = arith.addf %268, %269 : vector<2x128xf32>
    %271 = arith.negf %270 : vector<2x128xf32>
    %272 = math.exp %271 : vector<2x128xf32>
    %cst_56 = arith.constant 1.000000e+00 : f32
    %273 = vector.broadcast %cst_56 : f32 to vector<2x128xf32>
    %274 = arith.addf %273, %272 : vector<2x128xf32>
    %275 = arith.divf %273, %274 : vector<2x128xf32>
    %276 = vector.extract_strided_slice %264 {offsets = [0, 128], sizes = [2, 128], strides = [1, 1]} : vector<2x384xf32> to vector<2x128xf32>
    %277 = vector.extract_strided_slice %267 {offsets = [0, 128], sizes = [2, 128], strides = [1, 1]} : vector<2x384xf32> to vector<2x128xf32>
    %278 = arith.addf %276, %277 : vector<2x128xf32>
    %279 = arith.negf %278 : vector<2x128xf32>
    %280 = math.exp %279 : vector<2x128xf32>
    %cst_57 = arith.constant 1.000000e+00 : f32
    %281 = vector.broadcast %cst_57 : f32 to vector<2x128xf32>
    %282 = arith.addf %281, %280 : vector<2x128xf32>
    %283 = arith.divf %281, %282 : vector<2x128xf32>
    %284 = vector.extract_strided_slice %264 {offsets = [0, 256], sizes = [2, 128], strides = [1, 1]} : vector<2x384xf32> to vector<2x128xf32>
    %285 = vector.extract_strided_slice %267 {offsets = [0, 256], sizes = [2, 128], strides = [1, 1]} : vector<2x384xf32> to vector<2x128xf32>
    %286 = arith.mulf %275, %285 : vector<2x128xf32>
    %287 = arith.addf %284, %286 : vector<2x128xf32>
    %288 = math.tanh %287 : vector<2x128xf32>
    %cst_58 = arith.constant 1.000000e+00 : f32
    %289 = vector.broadcast %cst_58 : f32 to vector<2x128xf32>
    %290 = arith.subf %289, %283 : vector<2x128xf32>
    %291 = arith.mulf %290, %288 : vector<2x128xf32>
    %292 = arith.mulf %283, %257 : vector<2x128xf32>
    %293 = arith.addf %291, %292 : vector<2x128xf32>
    %294 = vector.extract_strided_slice %293 {offsets = [0, 0], sizes = [1, 128], strides = [1, 1]} : vector<2x128xf32> to vector<1x128xf32>
    %c7 = arith.constant 7 : index
    %c0_59 = arith.constant 0 : index
    %295 = vector.load %arg15[%c7, %c0_59] : memref<16x128xf32, #tpu.memory_space<vmem>>, vector<1x128xf32>
    tpu.vector_store %arg15[%c7, %c0_59], %294 {strides = array<i32>} : memref<16x128xf32, #tpu.memory_space<vmem>>, vector<1x128xf32>,
    %296 = vector.extract_strided_slice %293 {offsets = [1, 0], sizes = [1, 128], strides = [1, 1]} : vector<2x128xf32> to vector<1x128xf32>
    %c15 = arith.constant 15 : index
    %c0_60 = arith.constant 0 : index
    %297 = vector.load %arg15[%c15, %c0_60] : memref<16x128xf32, #tpu.memory_space<vmem>>, vector<1x128xf32>
    tpu.vector_store %arg15[%c15, %c0_60], %296 {strides = array<i32>} : memref<16x128xf32, #tpu.memory_space<vmem>>, vector<1x128xf32>,
    %c0_61 = arith.constant 0 : index
    %c0_62 = arith.constant 0 : index
    %c0_63 = arith.constant 0 : index
    %298 = vector.load %arg14[%c0_61, %c0_62, %c0_63] : memref<2x2x128xf32, #tpu.memory_space<vmem>>, vector<1x2x128xf32>
    %299 = vector.shape_cast %298 : vector<1x2x128xf32> to vector<2x128xf32>
    %300 = vector.shape_cast %293 : vector<2x128xf32> to vector<1x2x128xf32>
    tpu.vector_store %arg14[%c0_61, %c0_62, %c0_63], %300 {strides = array<i32>} : memref<2x2x128xf32, #tpu.memory_space<vmem>>, vector<1x2x128xf32>,
    %c0_64 = arith.constant 0 : index
    %c0_65 = arith.constant 0 : index
    %301 = vector.load %arg15[%c0_64, %c0_65] : memref<16x128xf32, #tpu.memory_space<vmem>>, vector<16x128xf32>
    %c0_66 = arith.constant 0 : index
    %c0_67 = arith.constant 0 : index
    %302 = vector.load %arg7[%c0_66, %c0_67] : memref<128x384xf32, #tpu.memory_space<vmem>>, vector<128x384xf32>
    %c0_68 = arith.constant 0 : index
    %c0_69 = arith.constant 0 : index
    %303 = vector.load %arg8[%c0_68, %c0_69] : memref<128x384xf32, #tpu.memory_space<vmem>>, vector<128x384xf32>
    %c0_70 = arith.constant 0 : index
    %c0_71 = arith.constant 0 : index
    %304 = vector.load %arg9[%c0_70, %c0_71] : memref<1x384xf32, #tpu.memory_space<vmem>>, vector<1x384xf32>
    %c0_72 = arith.constant 0 : index
    %c0_73 = arith.constant 0 : index
    %305 = vector.load %arg10[%c0_72, %c0_73] : memref<1x384xf32, #tpu.memory_space<vmem>>, vector<1x384xf32>
    %cst_74 = arith.constant dense<0.000000e+00> : vector<16x384xf32>
    %306 = tpu.matmul %301, %302, %cst_74 {dimension_numbers = #tpu.dot_dimension_numbers<[1], [0], [0], [1], [0, 0, 1, 1], [], []>} : vector<16x128xf32>, vector<128x384xf32>, vector<16x384xf32> -> vector<16x384xf32>
    %307 = vector.broadcast %304 : vector<1x384xf32> to vector<16x384xf32>
    %308 = arith.addf %306, %307 : vector<16x384xf32>
    %c1_75 = arith.constant 1 : index
    %c0_76 = arith.constant 0 : index
    %c0_77 = arith.constant 0 : index
    %309 = vector.load %arg2[%c1_75, %c0_76, %c0_77] : memref<2x2x128xf32, #tpu.memory_space<vmem>>, vector<1x2x128xf32>
    %310 = vector.shape_cast %309 : vector<1x2x128xf32> to vector<2x128xf32>
    %311 = vector.extract_strided_slice %308 {offsets = [0, 0], sizes = [1, 384], strides = [1, 1]} : vector<16x384xf32> to vector<1x384xf32>
    %312 = vector.extract_strided_slice %308 {offsets = [8, 0], sizes = [1, 384], strides = [1, 1]} : vector<16x384xf32> to vector<1x384xf32>
    %313 = tpu.concatenate %311, %312 in 0 : vector<1x384xf32>, vector<1x384xf32> -> vector<2x384xf32>
    %cst_78 = arith.constant dense<0.000000e+00> : vector<2x384xf32>
    %314 = tpu.matmul %310, %303, %cst_78 {dimension_numbers = #tpu.dot_dimension_numbers<[1], [0], [0], [1], [0, 0, 1, 1], [], []>} : vector<2x128xf32>, vector<128x384xf32>, vector<2x384xf32> -> vector<2x384xf32>
    %315 = vector.broadcast %305 : vector<1x384xf32> to vector<2x384xf32>
    %316 = arith.addf %314, %315 : vector<2x384xf32>
    %317 = vector.extract_strided_slice %313 {offsets = [0, 0], sizes = [2, 128], strides = [1, 1]} : vector<2x384xf32> to vector<2x128xf32>
    %318 = vector.extract_strided_slice %316 {offsets = [0, 0], sizes = [2, 128], strides = [1, 1]} : vector<2x384xf32> to vector<2x128xf32>
    %319 = arith.addf %317, %318 : vector<2x128xf32>
    %320 = arith.negf %319 : vector<2x128xf32>
    %321 = math.exp %320 : vector<2x128xf32>
    %cst_79 = arith.constant 1.000000e+00 : f32
    %322 = vector.broadcast %cst_79 : f32 to vector<2x128xf32>
    %323 = arith.addf %322, %321 : vector<2x128xf32>
    %324 = arith.divf %322, %323 : vector<2x128xf32>
    %325 = vector.extract_strided_slice %313 {offsets = [0, 128], sizes = [2, 128], strides = [1, 1]} : vector<2x384xf32> to vector<2x128xf32>
    %326 = vector.extract_strided_slice %316 {offsets = [0, 128], sizes = [2, 128], strides = [1, 1]} : vector<2x384xf32> to vector<2x128xf32>
    %327 = arith.addf %325, %326 : vector<2x128xf32>
    %328 = arith.negf %327 : vector<2x128xf32>
    %329 = math.exp %328 : vector<2x128xf32>
    %cst_80 = arith.constant 1.000000e+00 : f32
    %330 = vector.broadcast %cst_80 : f32 to vector<2x128xf32>
    %331 = arith.addf %330, %329 : vector<2x128xf32>
    %332 = arith.divf %330, %331 : vector<2x128xf32>
    %333 = vector.extract_strided_slice %313 {offsets = [0, 256], sizes = [2, 128], strides = [1, 1]} : vector<2x384xf32> to vector<2x128xf32>
    %334 = vector.extract_strided_slice %316 {offsets = [0, 256], sizes = [2, 128], strides = [1, 1]} : vector<2x384xf32> to vector<2x128xf32>
    %335 = arith.mulf %324, %334 : vector<2x128xf32>
    %336 = arith.addf %333, %335 : vector<2x128xf32>
    %337 = math.tanh %336 : vector<2x128xf32>
    %cst_81 = arith.constant 1.000000e+00 : f32
    %338 = vector.broadcast %cst_81 : f32 to vector<2x128xf32>
    %339 = arith.subf %338, %332 : vector<2x128xf32>
    %340 = arith.mulf %339, %337 : vector<2x128xf32>
    %341 = arith.mulf %332, %310 : vector<2x128xf32>
    %342 = arith.addf %340, %341 : vector<2x128xf32>
    %343 = vector.extract_strided_slice %342 {offsets = [0, 0], sizes = [1, 128], strides = [1, 1]} : vector<2x128xf32> to vector<1x128xf32>
    %c0_82 = arith.constant 0 : index
    %c0_83 = arith.constant 0 : index
    %344 = vector.load %arg15[%c0_82, %c0_83] : memref<16x128xf32, #tpu.memory_space<vmem>>, vector<1x128xf32>
    tpu.vector_store %arg15[%c0_82, %c0_83], %343 {strides = array<i32>} : memref<16x128xf32, #tpu.memory_space<vmem>>, vector<1x128xf32>,
    %345 = vector.extract_strided_slice %342 {offsets = [1, 0], sizes = [1, 128], strides = [1, 1]} : vector<2x128xf32> to vector<1x128xf32>
    %c8_84 = arith.constant 8 : index
    %c0_85 = arith.constant 0 : index
    %346 = vector.load %arg15[%c8_84, %c0_85] : memref<16x128xf32, #tpu.memory_space<vmem>>, vector<1x128xf32>
    tpu.vector_store %arg15[%c8_84, %c0_85], %345 {strides = array<i32>} : memref<16x128xf32, #tpu.memory_space<vmem>>, vector<1x128xf32>,
    %347 = vector.extract_strided_slice %308 {offsets = [1, 0], sizes = [1, 384], strides = [1, 1]} : vector<16x384xf32> to vector<1x384xf32>
    %348 = vector.extract_strided_slice %308 {offsets = [9, 0], sizes = [1, 384], strides = [1, 1]} : vector<16x384xf32> to vector<1x384xf32>
    %349 = tpu.concatenate %347, %348 in 0 : vector<1x384xf32>, vector<1x384xf32> -> vector<2x384xf32>
    %cst_86 = arith.constant dense<0.000000e+00> : vector<2x384xf32>
    %350 = tpu.matmul %342, %303, %cst_86 {dimension_numbers = #tpu.dot_dimension_numbers<[1], [0], [0], [1], [0, 0, 1, 1], [], []>} : vector<2x128xf32>, vector<128x384xf32>, vector<2x384xf32> -> vector<2x384xf32>
    %351 = vector.broadcast %305 : vector<1x384xf32> to vector<2x384xf32>
    %352 = arith.addf %350, %351 : vector<2x384xf32>
    %353 = vector.extract_strided_slice %349 {offsets = [0, 0], sizes = [2, 128], strides = [1, 1]} : vector<2x384xf32> to vector<2x128xf32>
    %354 = vector.extract_strided_slice %352 {offsets = [0, 0], sizes = [2, 128], strides = [1, 1]} : vector<2x384xf32> to vector<2x128xf32>
    %355 = arith.addf %353, %354 : vector<2x128xf32>
    %356 = arith.negf %355 : vector<2x128xf32>
    %357 = math.exp %356 : vector<2x128xf32>
    %cst_87 = arith.constant 1.000000e+00 : f32
    %358 = vector.broadcast %cst_87 : f32 to vector<2x128xf32>
    %359 = arith.addf %358, %357 : vector<2x128xf32>
    %360 = arith.divf %358, %359 : vector<2x128xf32>
    %361 = vector.extract_strided_slice %349 {offsets = [0, 128], sizes = [2, 128], strides = [1, 1]} : vector<2x384xf32> to vector<2x128xf32>
    %362 = vector.extract_strided_slice %352 {offsets = [0, 128], sizes = [2, 128], strides = [1, 1]} : vector<2x384xf32> to vector<2x128xf32>
    %363 = arith.addf %361, %362 : vector<2x128xf32>
    %364 = arith.negf %363 : vector<2x128xf32>
    %365 = math.exp %364 : vector<2x128xf32>
    %cst_88 = arith.constant 1.000000e+00 : f32
    %366 = vector.broadcast %cst_88 : f32 to vector<2x128xf32>
    %367 = arith.addf %366, %365 : vector<2x128xf32>
    %368 = arith.divf %366, %367 : vector<2x128xf32>
    %369 = vector.extract_strided_slice %349 {offsets = [0, 256], sizes = [2, 128], strides = [1, 1]} : vector<2x384xf32> to vector<2x128xf32>
    %370 = vector.extract_strided_slice %352 {offsets = [0, 256], sizes = [2, 128], strides = [1, 1]} : vector<2x384xf32> to vector<2x128xf32>
    %371 = arith.mulf %360, %370 : vector<2x128xf32>
    %372 = arith.addf %369, %371 : vector<2x128xf32>
    %373 = math.tanh %372 : vector<2x128xf32>
    %cst_89 = arith.constant 1.000000e+00 : f32
    %374 = vector.broadcast %cst_89 : f32 to vector<2x128xf32>
    %375 = arith.subf %374, %368 : vector<2x128xf32>
    %376 = arith.mulf %375, %373 : vector<2x128xf32>
    %377 = arith.mulf %368, %342 : vector<2x128xf32>
    %378 = arith.addf %376, %377 : vector<2x128xf32>
    %379 = vector.extract_strided_slice %378 {offsets = [0, 0], sizes = [1, 128], strides = [1, 1]} : vector<2x128xf32> to vector<1x128xf32>
    %c1_90 = arith.constant 1 : index
    %c0_91 = arith.constant 0 : index
    %380 = vector.load %arg15[%c1_90, %c0_91] : memref<16x128xf32, #tpu.memory_space<vmem>>, vector<1x128xf32>
    tpu.vector_store %arg15[%c1_90, %c0_91], %379 {strides = array<i32>} : memref<16x128xf32, #tpu.memory_space<vmem>>, vector<1x128xf32>,
    %381 = vector.extract_strided_slice %378 {offsets = [1, 0], sizes = [1, 128], strides = [1, 1]} : vector<2x128xf32> to vector<1x128xf32>
    %c9_92 = arith.constant 9 : index
    %c0_93 = arith.constant 0 : index
    %382 = vector.load %arg15[%c9_92, %c0_93] : memref<16x128xf32, #tpu.memory_space<vmem>>, vector<1x128xf32>
    tpu.vector_store %arg15[%c9_92, %c0_93], %381 {strides = array<i32>} : memref<16x128xf32, #tpu.memory_space<vmem>>, vector<1x128xf32>,
    %383 = vector.extract_strided_slice %308 {offsets = [2, 0], sizes = [1, 384], strides = [1, 1]} : vector<16x384xf32> to vector<1x384xf32>
    %384 = vector.extract_strided_slice %308 {offsets = [10, 0], sizes = [1, 384], strides = [1, 1]} : vector<16x384xf32> to vector<1x384xf32>
    %385 = tpu.concatenate %383, %384 in 0 : vector<1x384xf32>, vector<1x384xf32> -> vector<2x384xf32>
    %cst_94 = arith.constant dense<0.000000e+00> : vector<2x384xf32>
    %386 = tpu.matmul %378, %303, %cst_94 {dimension_numbers = #tpu.dot_dimension_numbers<[1], [0], [0], [1], [0, 0, 1, 1], [], []>} : vector<2x128xf32>, vector<128x384xf32>, vector<2x384xf32> -> vector<2x384xf32>
    %387 = vector.broadcast %305 : vector<1x384xf32> to vector<2x384xf32>
    %388 = arith.addf %386, %387 : vector<2x384xf32>
    %389 = vector.extract_strided_slice %385 {offsets = [0, 0], sizes = [2, 128], strides = [1, 1]} : vector<2x384xf32> to vector<2x128xf32>
    %390 = vector.extract_strided_slice %388 {offsets = [0, 0], sizes = [2, 128], strides = [1, 1]} : vector<2x384xf32> to vector<2x128xf32>
    %391 = arith.addf %389, %390 : vector<2x128xf32>
    %392 = arith.negf %391 : vector<2x128xf32>
    %393 = math.exp %392 : vector<2x128xf32>
    %cst_95 = arith.constant 1.000000e+00 : f32
    %394 = vector.broadcast %cst_95 : f32 to vector<2x128xf32>
    %395 = arith.addf %394, %393 : vector<2x128xf32>
    %396 = arith.divf %394, %395 : vector<2x128xf32>
    %397 = vector.extract_strided_slice %385 {offsets = [0, 128], sizes = [2, 128], strides = [1, 1]} : vector<2x384xf32> to vector<2x128xf32>
    %398 = vector.extract_strided_slice %388 {offsets = [0, 128], sizes = [2, 128], strides = [1, 1]} : vector<2x384xf32> to vector<2x128xf32>
    %399 = arith.addf %397, %398 : vector<2x128xf32>
    %400 = arith.negf %399 : vector<2x128xf32>
    %401 = math.exp %400 : vector<2x128xf32>
    %cst_96 = arith.constant 1.000000e+00 : f32
    %402 = vector.broadcast %cst_96 : f32 to vector<2x128xf32>
    %403 = arith.addf %402, %401 : vector<2x128xf32>
    %404 = arith.divf %402, %403 : vector<2x128xf32>
    %405 = vector.extract_strided_slice %385 {offsets = [0, 256], sizes = [2, 128], strides = [1, 1]} : vector<2x384xf32> to vector<2x128xf32>
    %406 = vector.extract_strided_slice %388 {offsets = [0, 256], sizes = [2, 128], strides = [1, 1]} : vector<2x384xf32> to vector<2x128xf32>
    %407 = arith.mulf %396, %406 : vector<2x128xf32>
    %408 = arith.addf %405, %407 : vector<2x128xf32>
    %409 = math.tanh %408 : vector<2x128xf32>
    %cst_97 = arith.constant 1.000000e+00 : f32
    %410 = vector.broadcast %cst_97 : f32 to vector<2x128xf32>
    %411 = arith.subf %410, %404 : vector<2x128xf32>
    %412 = arith.mulf %411, %409 : vector<2x128xf32>
    %413 = arith.mulf %404, %378 : vector<2x128xf32>
    %414 = arith.addf %412, %413 : vector<2x128xf32>
    %415 = vector.extract_strided_slice %414 {offsets = [0, 0], sizes = [1, 128], strides = [1, 1]} : vector<2x128xf32> to vector<1x128xf32>
    %c2_98 = arith.constant 2 : index
    %c0_99 = arith.constant 0 : index
    %416 = vector.load %arg15[%c2_98, %c0_99] : memref<16x128xf32, #tpu.memory_space<vmem>>, vector<1x128xf32>
    tpu.vector_store %arg15[%c2_98, %c0_99], %415 {strides = array<i32>} : memref<16x128xf32, #tpu.memory_space<vmem>>, vector<1x128xf32>,
    %417 = vector.extract_strided_slice %414 {offsets = [1, 0], sizes = [1, 128], strides = [1, 1]} : vector<2x128xf32> to vector<1x128xf32>
    %c10_100 = arith.constant 10 : index
    %c0_101 = arith.constant 0 : index
    %418 = vector.load %arg15[%c10_100, %c0_101] : memref<16x128xf32, #tpu.memory_space<vmem>>, vector<1x128xf32>
    tpu.vector_store %arg15[%c10_100, %c0_101], %417 {strides = array<i32>} : memref<16x128xf32, #tpu.memory_space<vmem>>, vector<1x128xf32>,
    %419 = vector.extract_strided_slice %308 {offsets = [3, 0], sizes = [1, 384], strides = [1, 1]} : vector<16x384xf32> to vector<1x384xf32>
    %420 = vector.extract_strided_slice %308 {offsets = [11, 0], sizes = [1, 384], strides = [1, 1]} : vector<16x384xf32> to vector<1x384xf32>
    %421 = tpu.concatenate %419, %420 in 0 : vector<1x384xf32>, vector<1x384xf32> -> vector<2x384xf32>
    %cst_102 = arith.constant dense<0.000000e+00> : vector<2x384xf32>
    %422 = tpu.matmul %414, %303, %cst_102 {dimension_numbers = #tpu.dot_dimension_numbers<[1], [0], [0], [1], [0, 0, 1, 1], [], []>} : vector<2x128xf32>, vector<128x384xf32>, vector<2x384xf32> -> vector<2x384xf32>
    %423 = vector.broadcast %305 : vector<1x384xf32> to vector<2x384xf32>
    %424 = arith.addf %422, %423 : vector<2x384xf32>
    %425 = vector.extract_strided_slice %421 {offsets = [0, 0], sizes = [2, 128], strides = [1, 1]} : vector<2x384xf32> to vector<2x128xf32>
    %426 = vector.extract_strided_slice %424 {offsets = [0, 0], sizes = [2, 128], strides = [1, 1]} : vector<2x384xf32> to vector<2x128xf32>
    %427 = arith.addf %425, %426 : vector<2x128xf32>
    %428 = arith.negf %427 : vector<2x128xf32>
    %429 = math.exp %428 : vector<2x128xf32>
    %cst_103 = arith.constant 1.000000e+00 : f32
    %430 = vector.broadcast %cst_103 : f32 to vector<2x128xf32>
    %431 = arith.addf %430, %429 : vector<2x128xf32>
    %432 = arith.divf %430, %431 : vector<2x128xf32>
    %433 = vector.extract_strided_slice %421 {offsets = [0, 128], sizes = [2, 128], strides = [1, 1]} : vector<2x384xf32> to vector<2x128xf32>
    %434 = vector.extract_strided_slice %424 {offsets = [0, 128], sizes = [2, 128], strides = [1, 1]} : vector<2x384xf32> to vector<2x128xf32>
    %435 = arith.addf %433, %434 : vector<2x128xf32>
    %436 = arith.negf %435 : vector<2x128xf32>
    %437 = math.exp %436 : vector<2x128xf32>
    %cst_104 = arith.constant 1.000000e+00 : f32
    %438 = vector.broadcast %cst_104 : f32 to vector<2x128xf32>
    %439 = arith.addf %438, %437 : vector<2x128xf32>
    %440 = arith.divf %438, %439 : vector<2x128xf32>
    %441 = vector.extract_strided_slice %421 {offsets = [0, 256], sizes = [2, 128], strides = [1, 1]} : vector<2x384xf32> to vector<2x128xf32>
    %442 = vector.extract_strided_slice %424 {offsets = [0, 256], sizes = [2, 128], strides = [1, 1]} : vector<2x384xf32> to vector<2x128xf32>
    %443 = arith.mulf %432, %442 : vector<2x128xf32>
    %444 = arith.addf %441, %443 : vector<2x128xf32>
    %445 = math.tanh %444 : vector<2x128xf32>
    %cst_105 = arith.constant 1.000000e+00 : f32
    %446 = vector.broadcast %cst_105 : f32 to vector<2x128xf32>
    %447 = arith.subf %446, %440 : vector<2x128xf32>
    %448 = arith.mulf %447, %445 : vector<2x128xf32>
    %449 = arith.mulf %440, %414 : vector<2x128xf32>
    %450 = arith.addf %448, %449 : vector<2x128xf32>
    %451 = vector.extract_strided_slice %450 {offsets = [0, 0], sizes = [1, 128], strides = [1, 1]} : vector<2x128xf32> to vector<1x128xf32>
    %c3_106 = arith.constant 3 : index
    %c0_107 = arith.constant 0 : index
    %452 = vector.load %arg15[%c3_106, %c0_107] : memref<16x128xf32, #tpu.memory_space<vmem>>, vector<1x128xf32>
    tpu.vector_store %arg15[%c3_106, %c0_107], %451 {strides = array<i32>} : memref<16x128xf32, #tpu.memory_space<vmem>>, vector<1x128xf32>,
    %453 = vector.extract_strided_slice %450 {offsets = [1, 0], sizes = [1, 128], strides = [1, 1]} : vector<2x128xf32> to vector<1x128xf32>
    %c11_108 = arith.constant 11 : index
    %c0_109 = arith.constant 0 : index
    %454 = vector.load %arg15[%c11_108, %c0_109] : memref<16x128xf32, #tpu.memory_space<vmem>>, vector<1x128xf32>
    tpu.vector_store %arg15[%c11_108, %c0_109], %453 {strides = array<i32>} : memref<16x128xf32, #tpu.memory_space<vmem>>, vector<1x128xf32>,
    %455 = vector.extract_strided_slice %308 {offsets = [4, 0], sizes = [1, 384], strides = [1, 1]} : vector<16x384xf32> to vector<1x384xf32>
    %456 = vector.extract_strided_slice %308 {offsets = [12, 0], sizes = [1, 384], strides = [1, 1]} : vector<16x384xf32> to vector<1x384xf32>
    %457 = tpu.concatenate %455, %456 in 0 : vector<1x384xf32>, vector<1x384xf32> -> vector<2x384xf32>
    %cst_110 = arith.constant dense<0.000000e+00> : vector<2x384xf32>
    %458 = tpu.matmul %450, %303, %cst_110 {dimension_numbers = #tpu.dot_dimension_numbers<[1], [0], [0], [1], [0, 0, 1, 1], [], []>} : vector<2x128xf32>, vector<128x384xf32>, vector<2x384xf32> -> vector<2x384xf32>
    %459 = vector.broadcast %305 : vector<1x384xf32> to vector<2x384xf32>
    %460 = arith.addf %458, %459 : vector<2x384xf32>
    %461 = vector.extract_strided_slice %457 {offsets = [0, 0], sizes = [2, 128], strides = [1, 1]} : vector<2x384xf32> to vector<2x128xf32>
    %462 = vector.extract_strided_slice %460 {offsets = [0, 0], sizes = [2, 128], strides = [1, 1]} : vector<2x384xf32> to vector<2x128xf32>
    %463 = arith.addf %461, %462 : vector<2x128xf32>
    %464 = arith.negf %463 : vector<2x128xf32>
    %465 = math.exp %464 : vector<2x128xf32>
    %cst_111 = arith.constant 1.000000e+00 : f32
    %466 = vector.broadcast %cst_111 : f32 to vector<2x128xf32>
    %467 = arith.addf %466, %465 : vector<2x128xf32>
    %468 = arith.divf %466, %467 : vector<2x128xf32>
    %469 = vector.extract_strided_slice %457 {offsets = [0, 128], sizes = [2, 128], strides = [1, 1]} : vector<2x384xf32> to vector<2x128xf32>
    %470 = vector.extract_strided_slice %460 {offsets = [0, 128], sizes = [2, 128], strides = [1, 1]} : vector<2x384xf32> to vector<2x128xf32>
    %471 = arith.addf %469, %470 : vector<2x128xf32>
    %472 = arith.negf %471 : vector<2x128xf32>
    %473 = math.exp %472 : vector<2x128xf32>
    %cst_112 = arith.constant 1.000000e+00 : f32
    %474 = vector.broadcast %cst_112 : f32 to vector<2x128xf32>
    %475 = arith.addf %474, %473 : vector<2x128xf32>
    %476 = arith.divf %474, %475 : vector<2x128xf32>
    %477 = vector.extract_strided_slice %457 {offsets = [0, 256], sizes = [2, 128], strides = [1, 1]} : vector<2x384xf32> to vector<2x128xf32>
    %478 = vector.extract_strided_slice %460 {offsets = [0, 256], sizes = [2, 128], strides = [1, 1]} : vector<2x384xf32> to vector<2x128xf32>
    %479 = arith.mulf %468, %478 : vector<2x128xf32>
    %480 = arith.addf %477, %479 : vector<2x128xf32>
    %481 = math.tanh %480 : vector<2x128xf32>
    %cst_113 = arith.constant 1.000000e+00 : f32
    %482 = vector.broadcast %cst_113 : f32 to vector<2x128xf32>
    %483 = arith.subf %482, %476 : vector<2x128xf32>
    %484 = arith.mulf %483, %481 : vector<2x128xf32>
    %485 = arith.mulf %476, %450 : vector<2x128xf32>
    %486 = arith.addf %484, %485 : vector<2x128xf32>
    %487 = vector.extract_strided_slice %486 {offsets = [0, 0], sizes = [1, 128], strides = [1, 1]} : vector<2x128xf32> to vector<1x128xf32>
    %c4_114 = arith.constant 4 : index
    %c0_115 = arith.constant 0 : index
    %488 = vector.load %arg15[%c4_114, %c0_115] : memref<16x128xf32, #tpu.memory_space<vmem>>, vector<1x128xf32>
    tpu.vector_store %arg15[%c4_114, %c0_115], %487 {strides = array<i32>} : memref<16x128xf32, #tpu.memory_space<vmem>>, vector<1x128xf32>,
    %489 = vector.extract_strided_slice %486 {offsets = [1, 0], sizes = [1, 128], strides = [1, 1]} : vector<2x128xf32> to vector<1x128xf32>
    %c12_116 = arith.constant 12 : index
    %c0_117 = arith.constant 0 : index
    %490 = vector.load %arg15[%c12_116, %c0_117] : memref<16x128xf32, #tpu.memory_space<vmem>>, vector<1x128xf32>
    tpu.vector_store %arg15[%c12_116, %c0_117], %489 {strides = array<i32>} : memref<16x128xf32, #tpu.memory_space<vmem>>, vector<1x128xf32>,
    %491 = vector.extract_strided_slice %308 {offsets = [5, 0], sizes = [1, 384], strides = [1, 1]} : vector<16x384xf32> to vector<1x384xf32>
    %492 = vector.extract_strided_slice %308 {offsets = [13, 0], sizes = [1, 384], strides = [1, 1]} : vector<16x384xf32> to vector<1x384xf32>
    %493 = tpu.concatenate %491, %492 in 0 : vector<1x384xf32>, vector<1x384xf32> -> vector<2x384xf32>
    %cst_118 = arith.constant dense<0.000000e+00> : vector<2x384xf32>
    %494 = tpu.matmul %486, %303, %cst_118 {dimension_numbers = #tpu.dot_dimension_numbers<[1], [0], [0], [1], [0, 0, 1, 1], [], []>} : vector<2x128xf32>, vector<128x384xf32>, vector<2x384xf32> -> vector<2x384xf32>
    %495 = vector.broadcast %305 : vector<1x384xf32> to vector<2x384xf32>
    %496 = arith.addf %494, %495 : vector<2x384xf32>
    %497 = vector.extract_strided_slice %493 {offsets = [0, 0], sizes = [2, 128], strides = [1, 1]} : vector<2x384xf32> to vector<2x128xf32>
    %498 = vector.extract_strided_slice %496 {offsets = [0, 0], sizes = [2, 128], strides = [1, 1]} : vector<2x384xf32> to vector<2x128xf32>
    %499 = arith.addf %497, %498 : vector<2x128xf32>
    %500 = arith.negf %499 : vector<2x128xf32>
    %501 = math.exp %500 : vector<2x128xf32>
    %cst_119 = arith.constant 1.000000e+00 : f32
    %502 = vector.broadcast %cst_119 : f32 to vector<2x128xf32>
    %503 = arith.addf %502, %501 : vector<2x128xf32>
    %504 = arith.divf %502, %503 : vector<2x128xf32>
    %505 = vector.extract_strided_slice %493 {offsets = [0, 128], sizes = [2, 128], strides = [1, 1]} : vector<2x384xf32> to vector<2x128xf32>
    %506 = vector.extract_strided_slice %496 {offsets = [0, 128], sizes = [2, 128], strides = [1, 1]} : vector<2x384xf32> to vector<2x128xf32>
    %507 = arith.addf %505, %506 : vector<2x128xf32>
    %508 = arith.negf %507 : vector<2x128xf32>
    %509 = math.exp %508 : vector<2x128xf32>
    %cst_120 = arith.constant 1.000000e+00 : f32
    %510 = vector.broadcast %cst_120 : f32 to vector<2x128xf32>
    %511 = arith.addf %510, %509 : vector<2x128xf32>
    %512 = arith.divf %510, %511 : vector<2x128xf32>
    %513 = vector.extract_strided_slice %493 {offsets = [0, 256], sizes = [2, 128], strides = [1, 1]} : vector<2x384xf32> to vector<2x128xf32>
    %514 = vector.extract_strided_slice %496 {offsets = [0, 256], sizes = [2, 128], strides = [1, 1]} : vector<2x384xf32> to vector<2x128xf32>
    %515 = arith.mulf %504, %514 : vector<2x128xf32>
    %516 = arith.addf %513, %515 : vector<2x128xf32>
    %517 = math.tanh %516 : vector<2x128xf32>
    %cst_121 = arith.constant 1.000000e+00 : f32
    %518 = vector.broadcast %cst_121 : f32 to vector<2x128xf32>
    %519 = arith.subf %518, %512 : vector<2x128xf32>
    %520 = arith.mulf %519, %517 : vector<2x128xf32>
    %521 = arith.mulf %512, %486 : vector<2x128xf32>
    %522 = arith.addf %520, %521 : vector<2x128xf32>
    %523 = vector.extract_strided_slice %522 {offsets = [0, 0], sizes = [1, 128], strides = [1, 1]} : vector<2x128xf32> to vector<1x128xf32>
    %c5_122 = arith.constant 5 : index
    %c0_123 = arith.constant 0 : index
    %524 = vector.load %arg15[%c5_122, %c0_123] : memref<16x128xf32, #tpu.memory_space<vmem>>, vector<1x128xf32>
    tpu.vector_store %arg15[%c5_122, %c0_123], %523 {strides = array<i32>} : memref<16x128xf32, #tpu.memory_space<vmem>>, vector<1x128xf32>,
    %525 = vector.extract_strided_slice %522 {offsets = [1, 0], sizes = [1, 128], strides = [1, 1]} : vector<2x128xf32> to vector<1x128xf32>
    %c13_124 = arith.constant 13 : index
    %c0_125 = arith.constant 0 : index
    %526 = vector.load %arg15[%c13_124, %c0_125] : memref<16x128xf32, #tpu.memory_space<vmem>>, vector<1x128xf32>
    tpu.vector_store %arg15[%c13_124, %c0_125], %525 {strides = array<i32>} : memref<16x128xf32, #tpu.memory_space<vmem>>, vector<1x128xf32>,
    %527 = vector.extract_strided_slice %308 {offsets = [6, 0], sizes = [1, 384], strides = [1, 1]} : vector<16x384xf32> to vector<1x384xf32>
    %528 = vector.extract_strided_slice %308 {offsets = [14, 0], sizes = [1, 384], strides = [1, 1]} : vector<16x384xf32> to vector<1x384xf32>
    %529 = tpu.concatenate %527, %528 in 0 : vector<1x384xf32>, vector<1x384xf32> -> vector<2x384xf32>
    %cst_126 = arith.constant dense<0.000000e+00> : vector<2x384xf32>
    %530 = tpu.matmul %522, %303, %cst_126 {dimension_numbers = #tpu.dot_dimension_numbers<[1], [0], [0], [1], [0, 0, 1, 1], [], []>} : vector<2x128xf32>, vector<128x384xf32>, vector<2x384xf32> -> vector<2x384xf32>
    %531 = vector.broadcast %305 : vector<1x384xf32> to vector<2x384xf32>
    %532 = arith.addf %530, %531 : vector<2x384xf32>
    %533 = vector.extract_strided_slice %529 {offsets = [0, 0], sizes = [2, 128], strides = [1, 1]} : vector<2x384xf32> to vector<2x128xf32>
    %534 = vector.extract_strided_slice %532 {offsets = [0, 0], sizes = [2, 128], strides = [1, 1]} : vector<2x384xf32> to vector<2x128xf32>
    %535 = arith.addf %533, %534 : vector<2x128xf32>
    %536 = arith.negf %535 : vector<2x128xf32>
    %537 = math.exp %536 : vector<2x128xf32>
    %cst_127 = arith.constant 1.000000e+00 : f32
    %538 = vector.broadcast %cst_127 : f32 to vector<2x128xf32>
    %539 = arith.addf %538, %537 : vector<2x128xf32>
    %540 = arith.divf %538, %539 : vector<2x128xf32>
    %541 = vector.extract_strided_slice %529 {offsets = [0, 128], sizes = [2, 128], strides = [1, 1]} : vector<2x384xf32> to vector<2x128xf32>
    %542 = vector.extract_strided_slice %532 {offsets = [0, 128], sizes = [2, 128], strides = [1, 1]} : vector<2x384xf32> to vector<2x128xf32>
    %543 = arith.addf %541, %542 : vector<2x128xf32>
    %544 = arith.negf %543 : vector<2x128xf32>
    %545 = math.exp %544 : vector<2x128xf32>
    %cst_128 = arith.constant 1.000000e+00 : f32
    %546 = vector.broadcast %cst_128 : f32 to vector<2x128xf32>
    %547 = arith.addf %546, %545 : vector<2x128xf32>
    %548 = arith.divf %546, %547 : vector<2x128xf32>
    %549 = vector.extract_strided_slice %529 {offsets = [0, 256], sizes = [2, 128], strides = [1, 1]} : vector<2x384xf32> to vector<2x128xf32>
    %550 = vector.extract_strided_slice %532 {offsets = [0, 256], sizes = [2, 128], strides = [1, 1]} : vector<2x384xf32> to vector<2x128xf32>
    %551 = arith.mulf %540, %550 : vector<2x128xf32>
    %552 = arith.addf %549, %551 : vector<2x128xf32>
    %553 = math.tanh %552 : vector<2x128xf32>
    %cst_129 = arith.constant 1.000000e+00 : f32
    %554 = vector.broadcast %cst_129 : f32 to vector<2x128xf32>
    %555 = arith.subf %554, %548 : vector<2x128xf32>
    %556 = arith.mulf %555, %553 : vector<2x128xf32>
    %557 = arith.mulf %548, %522 : vector<2x128xf32>
    %558 = arith.addf %556, %557 : vector<2x128xf32>
    %559 = vector.extract_strided_slice %558 {offsets = [0, 0], sizes = [1, 128], strides = [1, 1]} : vector<2x128xf32> to vector<1x128xf32>
    %c6_130 = arith.constant 6 : index
    %c0_131 = arith.constant 0 : index
    %560 = vector.load %arg15[%c6_130, %c0_131] : memref<16x128xf32, #tpu.memory_space<vmem>>, vector<1x128xf32>
    tpu.vector_store %arg15[%c6_130, %c0_131], %559 {strides = array<i32>} : memref<16x128xf32, #tpu.memory_space<vmem>>, vector<1x128xf32>,
    %561 = vector.extract_strided_slice %558 {offsets = [1, 0], sizes = [1, 128], strides = [1, 1]} : vector<2x128xf32> to vector<1x128xf32>
    %c14_132 = arith.constant 14 : index
    %c0_133 = arith.constant 0 : index
    %562 = vector.load %arg15[%c14_132, %c0_133] : memref<16x128xf32, #tpu.memory_space<vmem>>, vector<1x128xf32>
    tpu.vector_store %arg15[%c14_132, %c0_133], %561 {strides = array<i32>} : memref<16x128xf32, #tpu.memory_space<vmem>>, vector<1x128xf32>,
    %563 = vector.extract_strided_slice %308 {offsets = [7, 0], sizes = [1, 384], strides = [1, 1]} : vector<16x384xf32> to vector<1x384xf32>
    %564 = vector.extract_strided_slice %308 {offsets = [15, 0], sizes = [1, 384], strides = [1, 1]} : vector<16x384xf32> to vector<1x384xf32>
    %565 = tpu.concatenate %563, %564 in 0 : vector<1x384xf32>, vector<1x384xf32> -> vector<2x384xf32>
    %cst_134 = arith.constant dense<0.000000e+00> : vector<2x384xf32>
    %566 = tpu.matmul %558, %303, %cst_134 {dimension_numbers = #tpu.dot_dimension_numbers<[1], [0], [0], [1], [0, 0, 1, 1], [], []>} : vector<2x128xf32>, vector<128x384xf32>, vector<2x384xf32> -> vector<2x384xf32>
    %567 = vector.broadcast %305 : vector<1x384xf32> to vector<2x384xf32>
    %568 = arith.addf %566, %567 : vector<2x384xf32>
    %569 = vector.extract_strided_slice %565 {offsets = [0, 0], sizes = [2, 128], strides = [1, 1]} : vector<2x384xf32> to vector<2x128xf32>
    %570 = vector.extract_strided_slice %568 {offsets = [0, 0], sizes = [2, 128], strides = [1, 1]} : vector<2x384xf32> to vector<2x128xf32>
    %571 = arith.addf %569, %570 : vector<2x128xf32>
    %572 = arith.negf %571 : vector<2x128xf32>
    %573 = math.exp %572 : vector<2x128xf32>
    %cst_135 = arith.constant 1.000000e+00 : f32
    %574 = vector.broadcast %cst_135 : f32 to vector<2x128xf32>
    %575 = arith.addf %574, %573 : vector<2x128xf32>
    %576 = arith.divf %574, %575 : vector<2x128xf32>
    %577 = vector.extract_strided_slice %565 {offsets = [0, 128], sizes = [2, 128], strides = [1, 1]} : vector<2x384xf32> to vector<2x128xf32>
    %578 = vector.extract_strided_slice %568 {offsets = [0, 128], sizes = [2, 128], strides = [1, 1]} : vector<2x384xf32> to vector<2x128xf32>
    %579 = arith.addf %577, %578 : vector<2x128xf32>
    %580 = arith.negf %579 : vector<2x128xf32>
    %581 = math.exp %580 : vector<2x128xf32>
    %cst_136 = arith.constant 1.000000e+00 : f32
    %582 = vector.broadcast %cst_136 : f32 to vector<2x128xf32>
    %583 = arith.addf %582, %581 : vector<2x128xf32>
    %584 = arith.divf %582, %583 : vector<2x128xf32>
    %585 = vector.extract_strided_slice %565 {offsets = [0, 256], sizes = [2, 128], strides = [1, 1]} : vector<2x384xf32> to vector<2x128xf32>
    %586 = vector.extract_strided_slice %568 {offsets = [0, 256], sizes = [2, 128], strides = [1, 1]} : vector<2x384xf32> to vector<2x128xf32>
    %587 = arith.mulf %576, %586 : vector<2x128xf32>
    %588 = arith.addf %585, %587 : vector<2x128xf32>
    %589 = math.tanh %588 : vector<2x128xf32>
    %cst_137 = arith.constant 1.000000e+00 : f32
    %590 = vector.broadcast %cst_137 : f32 to vector<2x128xf32>
    %591 = arith.subf %590, %584 : vector<2x128xf32>
    %592 = arith.mulf %591, %589 : vector<2x128xf32>
    %593 = arith.mulf %584, %558 : vector<2x128xf32>
    %594 = arith.addf %592, %593 : vector<2x128xf32>
    %595 = vector.extract_strided_slice %594 {offsets = [0, 0], sizes = [1, 128], strides = [1, 1]} : vector<2x128xf32> to vector<1x128xf32>
    %c7_138 = arith.constant 7 : index
    %c0_139 = arith.constant 0 : index
    %596 = vector.load %arg15[%c7_138, %c0_139] : memref<16x128xf32, #tpu.memory_space<vmem>>, vector<1x128xf32>
    tpu.vector_store %arg15[%c7_138, %c0_139], %595 {strides = array<i32>} : memref<16x128xf32, #tpu.memory_space<vmem>>, vector<1x128xf32>,
    %597 = vector.extract_strided_slice %594 {offsets = [1, 0], sizes = [1, 128], strides = [1, 1]} : vector<2x128xf32> to vector<1x128xf32>
    %c15_140 = arith.constant 15 : index
    %c0_141 = arith.constant 0 : index
    %598 = vector.load %arg15[%c15_140, %c0_141] : memref<16x128xf32, #tpu.memory_space<vmem>>, vector<1x128xf32>
    tpu.vector_store %arg15[%c15_140, %c0_141], %597 {strides = array<i32>} : memref<16x128xf32, #tpu.memory_space<vmem>>, vector<1x128xf32>,
    %c1_142 = arith.constant 1 : index
    %c0_143 = arith.constant 0 : index
    %c0_144 = arith.constant 0 : index
    %599 = vector.load %arg14[%c1_142, %c0_143, %c0_144] : memref<2x2x128xf32, #tpu.memory_space<vmem>>, vector<1x2x128xf32>
    %600 = vector.shape_cast %599 : vector<1x2x128xf32> to vector<2x128xf32>
    %601 = vector.shape_cast %594 : vector<2x128xf32> to vector<1x2x128xf32>
    tpu.vector_store %arg14[%c1_142, %c0_143, %c0_144], %601 {strides = array<i32>} : memref<2x2x128xf32, #tpu.memory_space<vmem>>, vector<1x2x128xf32>,
    %c0_145 = arith.constant 0 : index
    %c0_146 = arith.constant 0 : index
    %602 = vector.load %arg15[%c0_145, %c0_146] : memref<16x128xf32, #tpu.memory_space<vmem>>, vector<16x128xf32>
    %c0_147 = arith.constant 0 : index
    %c0_148 = arith.constant 0 : index
    %603 = vector.load %arg11[%c0_147, %c0_148] : memref<128x128xf32, #tpu.memory_space<vmem>>, vector<128x128xf32>
    %cst_149 = arith.constant dense<0.000000e+00> : vector<16x128xf32>
    %604 = tpu.matmul %602, %603, %cst_149 {dimension_numbers = #tpu.dot_dimension_numbers<[1], [0], [0], [1], [0, 0, 1, 1], [], []>} : vector<16x128xf32>, vector<128x128xf32>, vector<16x128xf32> -> vector<16x128xf32>
    %c0_150 = arith.constant 0 : index
    %c0_151 = arith.constant 0 : index
    %605 = vector.load %arg12[%c0_150, %c0_151] : memref<1x128xf32, #tpu.memory_space<vmem>>, vector<1x128xf32>
    %606 = vector.broadcast %605 : vector<1x128xf32> to vector<16x128xf32>
    %607 = arith.addf %604, %606 : vector<16x128xf32>
    %c0_152 = arith.constant 0 : index
    %c0_153 = arith.constant 0 : index
    %608 = vector.load %arg13[%c0_152, %c0_153] : memref<16x128xf32, #tpu.memory_space<vmem>>, vector<16x128xf32>
    tpu.vector_store %arg13[%c0_152, %c0_153], %607 {strides = array<i32>} : memref<16x128xf32, #tpu.memory_space<vmem>>, vector<16x128xf32>,
    return
  }
  func.func @transform_0(%arg0: i32) -> (i32, i32) {
    %c0_i32 = arith.constant 0 : i32
    %c0_i32_0 = arith.constant 0 : i32
    %c0_i32_1 = arith.constant 0 : i32
    return %c0_i32, %c0_i32_0 : i32, i32
  }
  func.func @transform_1(%arg0: i32) -> (i32, i32, i32) {
    %c0_i32 = arith.constant 0 : i32
    %c0_i32_0 = arith.constant 0 : i32
    %c0_i32_1 = arith.constant 0 : i32
    %c0_i32_2 = arith.constant 0 : i32
    return %c0_i32, %c0_i32_0, %c0_i32_1 : i32, i32, i32
  }
  func.func @transform_2(%arg0: i32) -> (i32, i32) {
    %c0_i32 = arith.constant 0 : i32
    %c0_i32_0 = arith.constant 0 : i32
    %c0_i32_1 = arith.constant 0 : i32
    return %c0_i32, %c0_i32_0 : i32, i32
  }
  func.func @transform_3(%arg0: i32) -> (i32, i32) {
    %c0_i32 = arith.constant 0 : i32
    %c0_i32_0 = arith.constant 0 : i32
    %c0_i32_1 = arith.constant 0 : i32
    return %c0_i32, %c0_i32_0 : i32, i32
  }
  func.func @transform_4(%arg0: i32) -> (i32, i32) {
    %c0_i32 = arith.constant 0 : i32
    %c0_i32_0 = arith.constant 0 : i32
    %c0_i32_1 = arith.constant 0 : i32
    return %c0_i32, %c0_i32_0 : i32, i32
  }
  func.func @transform_5(%arg0: i32) -> (i32, i32) {
    %c0_i32 = arith.constant 0 : i32
    %c0_i32_0 = arith.constant 0 : i32
    %c0_i32_1 = arith.constant 0 : i32
    return %c0_i32, %c0_i32_0 : i32, i32
  }
  func.func @transform_6(%arg0: i32) -> (i32, i32) {
    %c0_i32 = arith.constant 0 : i32
    %c0_i32_0 = arith.constant 0 : i32
    %c0_i32_1 = arith.constant 0 : i32
    return %c0_i32, %c0_i32_0 : i32, i32
  }
  func.func @transform_7(%arg0: i32) -> (i32, i32) {
    %c0_i32 = arith.constant 0 : i32
    %c0_i32_0 = arith.constant 0 : i32
    %c0_i32_1 = arith.constant 0 : i32
    return %c0_i32, %c0_i32_0 : i32, i32
  }
  func.func @transform_8(%arg0: i32) -> (i32, i32) {
    %c0_i32 = arith.constant 0 : i32
    %c0_i32_0 = arith.constant 0 : i32
    %c0_i32_1 = arith.constant 0 : i32
    return %c0_i32, %c0_i32_0 : i32, i32
  }
  func.func @transform_9(%arg0: i32) -> (i32, i32) {
    %c0_i32 = arith.constant 0 : i32
    %c0_i32_0 = arith.constant 0 : i32
    %c0_i32_1 = arith.constant 0 : i32
    return %c0_i32, %c0_i32_0 : i32, i32
  }
  func.func @transform_10(%arg0: i32) -> (i32, i32) {
    %c0_i32 = arith.constant 0 : i32
    %c0_i32_0 = arith.constant 0 : i32
    %c0_i32_1 = arith.constant 0 : i32
    return %c0_i32, %c0_i32_0 : i32, i32
  }
  func.func @transform_11(%arg0: i32) -> (i32, i32) {
    %c0_i32 = arith.constant 0 : i32
    %c0_i32_0 = arith.constant 0 : i32
    %c0_i32_1 = arith.constant 0 : i32
    return %c0_i32, %c0_i32_0 : i32, i32
  }
  func.func @transform_12(%arg0: i32) -> (i32, i32) {
    %c0_i32 = arith.constant 0 : i32
    %c0_i32_0 = arith.constant 0 : i32
    %c0_i32_1 = arith.constant 0 : i32
    return %c0_i32, %c0_i32_0 : i32, i32
  }
  func.func @transform_13(%arg0: i32) -> (i32, i32, i32) {
    %c0_i32 = arith.constant 0 : i32
    %c0_i32_0 = arith.constant 0 : i32
    %c0_i32_1 = arith.constant 0 : i32
    %c0_i32_2 = arith.constant 0 : i32
    return %c0_i32, %c0_i32_0, %c0_i32_1 : i32, i32, i32
  }
}

</mosaic_0001>

<llo_original>
// kernel: tpu_custom_call.1
$region0: #{tpu_custom_call.1}
  #allocation0 [shape = 'u32[]', space=smem, size = 0x4, offset = 0x4, fixed_abs, tag = 'smem constant byte address 0x4 - core index']
  #allocation1 [shape = 'u32[144,128]{1,0:T(1,128)}', space=vmem, size = 0x12000, scoped, tag = 'internal scratch']
  #allocation2 [shape = 'f32[16,128]{1,0:T(8,128)}', space=vmem, size = 0x2000, scoped, tag = 'scratch operand']
  %s0 = inlined_call_operand.hbm [shape: f32[16,32], index: 0, kind: input, shape index: {}]
  %s1 = inlined_call_operand.hbm [shape: f32[2,2,128], index: 1, kind: input, shape index: {}]
  %s2 = inlined_call_operand.hbm [shape: f32[32,384], index: 2, kind: input, shape index: {}]
  %s3 = inlined_call_operand.hbm [shape: f32[128,384], index: 3, kind: input, shape index: {}]
  %s4 = inlined_call_operand.vmem [shape: f32[1,384], index: 4, kind: input, shape index: {}]
  %s5 = inlined_call_operand.vmem [shape: f32[1,384], index: 5, kind: input, shape index: {}]
  %s6 = inlined_call_operand.hbm [shape: f32[128,384], index: 6, kind: input, shape index: {}]
  %s7 = inlined_call_operand.hbm [shape: f32[128,384], index: 7, kind: input, shape index: {}]
  %s8 = inlined_call_operand.vmem [shape: f32[1,384], index: 8, kind: input, shape index: {}]
  %s9 = inlined_call_operand.vmem [shape: f32[1,384], index: 9, kind: input, shape index: {}]
  %s10 = inlined_call_operand.hbm [shape: f32[128,128], index: 10, kind: input, shape index: {}]
  %s11 = inlined_call_operand.vmem [shape: f32[1,128], index: 11, kind: input, shape index: {}]
  %s12 = inlined_call_operand.hbm [shape: f32[16,128], index: 12, kind: output, shape index: {0}]
  %s13 = inlined_call_operand.hbm [shape: f32[2,2,128], index: 13, kind: output, shape index: {1}]
  %14 = xla_tuple %s12, %s13
  %s15 = sld [smem:[#allocation0]]
  $region94: #{tpu_custom_call.1} parent=0
    _
  %s17 = ssub.s32 1, %s15
  %s18 = scalar_select 0, %s17, %s15
  $region1: #{tpu_custom_call.1} parent=0
    #allocation3 [shape = 'u8[8192]{0}', space=vmem, size = 0x2000, scoped, tag = 'input window, operand 0, single buffered']
    #allocation4 [shape = 's32[1]{0}', space=sflag, size = 0x4, scoped, tag = 'scoped memory for tpu_custom_call.1']
    #allocation5 [shape = 's32[1]{0}', space=sflag, size = 0x4, scoped, tag = 'scoped memory for tpu_custom_call.1']
    #allocation6 [shape = 'u8[2048]{0}', space=vmem, size = 0x800, scoped, tag = 'input window, operand 1, single buffered']
    #allocation7 [shape = 's32[1]{0}', space=sflag, size = 0x4, scoped, tag = 'scoped memory for tpu_custom_call.1']
    #allocation8 [shape = 'u8[49152]{0}', space=vmem, size = 0xc000, scoped, tag = 'input window, operand 2, single buffered']
    #allocation9 [shape = 'u8[196608]{0}', space=vmem, size = 0x30000, scoped, tag = 'input window, operand 3, single buffered']
    #allocation10 [shape = 's32[1]{0}', space=sflag, size = 0x4, scoped, tag = 'scoped memory for tpu_custom_call.1']
    #allocation11 [shape = 'u8[196608]{0}', space=vmem, size = 0x30000, scoped, tag = 'input window, operand 6, single buffered']
    #allocation12 [shape = 'u8[196608]{0}', space=vmem, size = 0x30000, scoped, tag = 'input window, operand 7, single buffered']
    #allocation13 [shape = 's32[1]{0}', space=sflag, size = 0x4, scoped, tag = 'scoped memory for tpu_custom_call.1']
    #allocation14 [shape = 'u8[65536]{0}', space=vmem, size = 0x10000, scoped, tag = 'input window, operand 10, single buffered']
    #allocation15 [shape = 'u8[8192]{0}', space=vmem, size = 0x2000, scoped, tag = 'output window, operand 0, single buffered']
    #allocation16 [shape = 'u8[2048]{0}', space=vmem, size = 0x800, scoped, tag = 'output window, operand 1, single buffered']
    #allocation17 [shape = 's32[1]{0}', space=sflag, size = 0x4, scoped, tag = 'scoped memory for tpu_custom_call.1']
    %19 = vsyncpa [#allocation4], 0
    %20 = vsyncpa [#allocation7], 0
    %21 = vsyncpa [#allocation10], 0
    %22 = vsyncpa [#allocation13], 0
    %23 = vsyncpa [#allocation5], 0
    %24 = vsyncpa [#allocation17], 0
    // Predicated region
    $region2: #{tpu_custom_call.1} parent=1 // pred_check
      _
    $region3: #{tpu_custom_call.1} parent=1 // pred_check_branch
      %26 = sbr.rel (0) target = $region5
    $region4: #{tpu_custom_call.1} parent=1 // pred_region
      %s28 = ssub.s32 256, 256
      %29 = vsyncadd [#allocation4], %s28
      %s30 = sshll.u32 [#allocation3], 4
      %s31 = int_to_ptr.vmem [resolvable:$true] %s30
      %36 = dma.hbm_to_vmem [thread:$0]  %s0, 256, %s31, [#allocation4], 128, 128, 8
    $region5: #{tpu_custom_call.1} parent=1 // pred_fallthru
      _
    // Predicated region
    $region6: #{tpu_custom_call.1} parent=1 // pred_check
      _
    $region7: #{tpu_custom_call.1} parent=1 // pred_check_branch
      %38 = sbr.rel (0) target = $region9
    $region8: #{tpu_custom_call.1} parent=1 // pred_region
      %s40 = ssub.s32 64, 64
      %41 = vsyncadd [#allocation7], %s40
      %s42 = sshll.u32 [#allocation6], 4
      %s43 = int_to_ptr.vmem [resolvable:$true] %s42
      %48 = dma.hbm_to_vmem [thread:$0]  %s1, 64, %s43, [#allocation7], 32, 32, 2
    $region9: #{tpu_custom_call.1} parent=1 // pred_fallthru
      _
    // Predicated region
    $region10: #{tpu_custom_call.1} parent=1 // pred_check
      _
    $region11: #{tpu_custom_call.1} parent=1 // pred_check_branch
      %50 = sbr.rel (0) target = $region13
    $region12: #{tpu_custom_call.1} parent=1 // pred_region
      %s52 = ssub.s32 1536, 1536
      %53 = vsyncadd [#allocation7], %s52
      %s54 = sshll.u32 [#allocation8], 4
      %s55 = int_to_ptr.vmem [resolvable:$true] %s54
      %60 = dma.hbm_to_vmem [thread:$0]  %s2, 1536, %s55, [#allocation7], 384, 384, 24
    $region13: #{tpu_custom_call.1} parent=1 // pred_fallthru
      _
    // Predicated region
    $region14: #{tpu_custom_call.1} parent=1 // pred_check
      _
    $region15: #{tpu_custom_call.1} parent=1 // pred_check_branch
      %62 = sbr.rel (0) target = $region17
    $region16: #{tpu_custom_call.1} parent=1 // pred_region
      %s64 = ssub.s32 6144, 6144
      %65 = vsyncadd [#allocation10], %s64
      %s66 = sshll.u32 [#allocation9], 4
      %s67 = int_to_ptr.vmem [resolvable:$true] %s66
      %72 = dma.hbm_to_vmem [thread:$0]  %s3, 6144, %s67, [#allocation10], 384, 384, 24
    $region17: #{tpu_custom_call.1} parent=1 // pred_fallthru
      _
    // Predicated region
    $region18: #{tpu_custom_call.1} parent=1 // pred_check
      _
    $region19: #{tpu_custom_call.1} parent=1 // pred_check_branch
      %74 = sbr.rel (0) target = $region21
    $region20: #{tpu_custom_call.1} parent=1 // pred_region
      _
    $region21: #{tpu_custom_call.1} parent=1 // pred_fallthru
      _
    // Predicated region
    $region22: #{tpu_custom_call.1} parent=1 // pred_check
      _
    $region23: #{tpu_custom_call.1} parent=1 // pred_check_branch
      %76 = sbr.rel (0) target = $region25
    $region24: #{tpu_custom_call.1} parent=1 // pred_region
      _
    $region25: #{tpu_custom_call.1} parent=1 // pred_fallthru
      _
    // Predicated region
    $region26: #{tpu_custom_call.1} parent=1 // pred_check
      _
    $region27: #{tpu_custom_call.1} parent=1 // pred_check_branch
      %78 = sbr.rel (0) target = $region29
    $region28: #{tpu_custom_call.1} parent=1 // pred_region
      %s80 = ssub.s32 6144, 6144
      %81 = vsyncadd [#allocation10], %s80
      %s82 = sshll.u32 [#allocation11], 4
      %s83 = int_to_ptr.vmem [resolvable:$true] %s82
      %88 = dma.hbm_to_vmem [thread:$0]  %s6, 6144, %s83, [#allocation10], 384, 384, 24
    $region29: #{tpu_custom_call.1} parent=1 // pred_fallthru
      _
    // Predicated region
    $region30: #{tpu_custom_call.1} parent=1 // pred_check
      _
    $region31: #{tpu_custom_call.1} parent=1 // pred_check_branch
      %90 = sbr.rel (0) target = $region33
    $region32: #{tpu_custom_call.1} parent=1 // pred_region
      %s92 = ssub.s32 6144, 6144
      %93 = vsyncadd [#allocation13], %s92
      %s94 = sshll.u32 [#allocation12], 4
      %s95 = int_to_ptr.vmem [resolvable:$true] %s94
      %100 = dma.hbm_to_vmem [thread:$0]  %s7, 6144, %s95, [#allocation13], 384, 384, 24
    $region33: #{tpu_custom_call.1} parent=1 // pred_fallthru
      _
    // Predicated region
    $region34: #{tpu_custom_call.1} parent=1 // pred_check
      _
    $region35: #{tpu_custom_call.1} parent=1 // pred_check_branch
      %102 = sbr.rel (0) target = $region37
    $region36: #{tpu_custom_call.1} parent=1 // pred_region
      _
    $region37: #{tpu_custom_call.1} parent=1 // pred_fallthru
      _
    // Predicated region
    $region38: #{tpu_custom_call.1} parent=1 // pred_check
      _
    $region39: #{tpu_custom_call.1} parent=1 // pred_check_branch
      %104 = sbr.rel (0) target = $region41
    $region40: #{tpu_custom_call.1} parent=1 // pred_region
      _
    $region41: #{tpu_custom_call.1} parent=1 // pred_fallthru
      _
    // Predicated region
    $region42: #{tpu_custom_call.1} parent=1 // pred_check
      _
    $region43: #{tpu_custom_call.1} parent=1 // pred_check_branch
      %106 = sbr.rel (0) target = $region45
    $region44: #{tpu_custom_call.1} parent=1 // pred_region
      %s108 = ssub.s32 2048, 2048
      %109 = vsyncadd [#allocation13], %s108
      %s110 = sshll.u32 [#allocation14], 4
      %s111 = int_to_ptr.vmem [resolvable:$true] %s110
      %116 = dma.hbm_to_vmem [thread:$0]  %s10, 2048, %s111, [#allocation13], 128, 128, 8
    $region45: #{tpu_custom_call.1} parent=1 // pred_fallthru
      _
    // Predicated region
    $region46: #{tpu_custom_call.1} parent=1 // pred_check
      _
    $region47: #{tpu_custom_call.1} parent=1 // pred_check_branch
      %118 = sbr.rel (0) target = $region49
    $region48: #{tpu_custom_call.1} parent=1 // pred_region
      _
    $region49: #{tpu_custom_call.1} parent=1 // pred_fallthru
      _
    // Predicated region
    $region50: #{tpu_custom_call.1} parent=1 // pred_check
      _
    $region51: #{tpu_custom_call.1} parent=1 // pred_check_branch
      %120 = sbr.rel (0) target = $region53
    $region52: #{tpu_custom_call.1} parent=1 // pred_region
      %121 = dma.done [#allocation4], 256
    $region53: #{tpu_custom_call.1} parent=1 // pred_fallthru
      _
    // Predicated region
    $region54: #{tpu_custom_call.1} parent=1 // pred_check
      _
    $region55: #{tpu_custom_call.1} parent=1 // pred_check_branch
      %123 = sbr.rel (0) target = $region57
    $region56: #{tpu_custom_call.1} parent=1 // pred_region
      %124 = dma.done [#allocation7], 64
    $region57: #{tpu_custom_call.1} parent=1 // pred_fallthru
      _
    // Predicated region
    $region58: #{tpu_custom_call.1} parent=1 // pred_check
      _
    $region59: #{tpu_custom_call.1} parent=1 // pred_check_branch
      %126 = sbr.rel (0) target = $region61
    $region60: #{tpu_custom_call.1} parent=1 // pred_region
      %127 = dma.done [#allocation7], 1536
    $region61: #{tpu_custom_call.1} parent=1 // pred_fallthru
      _
    // Predicated region
    $region62: #{tpu_custom_call.1} parent=1 // pred_check
      _
    $region63: #{tpu_custom_call.1} parent=1 // pred_check_branch
      %129 = sbr.rel (0) target = $region65
    $region64: #{tpu_custom_call.1} parent=1 // pred_region
      %130 = dma.done [#allocation10], 6144
    $region65: #{tpu_custom_call.1} parent=1 // pred_fallthru
      _
    // Predicated region
    $region66: #{tpu_custom_call.1} parent=1 // pred_check
      _
    $region67: #{tpu_custom_call.1} parent=1 // pred_check_branch
      %132 = sbr.rel (0) target = $region69
    $region68: #{tpu_custom_call.1} parent=1 // pred_region
      %133 = dma.done [#allocation10], 6144
    $region69: #{tpu_custom_call.1} parent=1 // pred_fallthru
      _
    // Predicated region
    $region70: #{tpu_custom_call.1} parent=1 // pred_check
      _
    $region71: #{tpu_custom_call.1} parent=1 // pred_check_branch
      %135 = sbr.rel (0) target = $region73
    $region72: #{tpu_custom_call.1} parent=1 // pred_region
      %136 = dma.done [#allocation13], 6144
    $region73: #{tpu_custom_call.1} parent=1 // pred_fallthru
      _
    // Predicated region
    $region74: #{tpu_custom_call.1} parent=1 // pred_check
      _
    $region75: #{tpu_custom_call.1} parent=1 // pred_check_branch
      %138 = sbr.rel (0) target = $region77
    $region76: #{tpu_custom_call.1} parent=1 // pred_region
      %139 = dma.done [#allocation13], 2048
    $region77: #{tpu_custom_call.1} parent=1 // pred_fallthru
      _
    %v140 = vld [vmem:[#allocation3] sm:$0xff]
    %v141 = vld [vmem:[#allocation3 + $0x8] sm:$0xff]
    %v142 = vld [vmem:[#allocation8] sm:$0xff]
    %v143 = vld [vmem:[#allocation8 + $0x8] sm:$0xff]
    %v144 = vld [vmem:[#allocation8 + $0x10] sm:$0xff]
    %v145 = vld [vmem:[#allocation8 + $0x18] sm:$0xff]
    %v146 = vld [vmem:[#allocation8 + $0x20] sm:$0xff]
    %v147 = vld [vmem:[#allocation8 + $0x28] sm:$0xff]
    %v148 = vld [vmem:[#allocation8 + $0x30] sm:$0xff]
    %v149 = vld [vmem:[#allocation8 + $0x38] sm:$0xff]
    %v150 = vld [vmem:[#allocation8 + $0x40] sm:$0xff]
    %v151 = vld [vmem:[#allocation8 + $0x48] sm:$0xff]
    %v152 = vld [vmem:[#allocation8 + $0x50] sm:$0xff]
    %v153 = vld [vmem:[#allocation8 + $0x58] sm:$0xff]
    %v154 = vld [vmem:[#allocation9] sm:$0xff]
    %v155 = vld [vmem:[#allocation9 + $0x8] sm:$0xff]
    %v156 = vld [vmem:[#allocation9 + $0x10] sm:$0xff]
    %v157 = vld [vmem:[#allocation9 + $0x18] sm:$0xff]
    %v158 = vld [vmem:[#allocation9 + $0x20] sm:$0xff]
    %v159 = vld [vmem:[#allocation9 + $0x28] sm:$0xff]
    %v160 = vld [vmem:[#allocation9 + $0x30] sm:$0xff]
    %v161 = vld [vmem:[#allocation9 + $0x38] sm:$0xff]
    %v162 = vld [vmem:[#allocation9 + $0x40] sm:$0xff]
    %v163 = vld [vmem:[#allocation9 + $0x48] sm:$0xff]
    %v164 = vld [vmem:[#allocation9 + $0x50] sm:$0xff]
    %v165 = vld [vmem:[#allocation9 + $0x58] sm:$0xff]
    %v166 = vld [vmem:[#allocation9 + $0x60] sm:$0xff]
    %v167 = vld [vmem:[#allocation9 + $0x68] sm:$0xff]
    %v168 = vld [vmem:[#allocation9 + $0x70] sm:$0xff]
    %v169 = vld [vmem:[#allocation9 + $0x78] sm:$0xff]
    %v170 = vld [vmem:[#allocation9 + $0x80] sm:$0xff]
    %v171 = vld [vmem:[#allocation9 + $0x88] sm:$0xff]
    %v172 = vld [vmem:[#allocation9 + $0x90] sm:$0xff]
    %v173 = vld [vmem:[#allocation9 + $0x98] sm:$0xff]
    %v174 = vld [vmem:[#allocation9 + $0xa0] sm:$0xff]
    %v175 = vld [vmem:[#allocation9 + $0xa8] sm:$0xff]
    %v176 = vld [vmem:[#allocation9 + $0xb0] sm:$0xff]
    %v177 = vld [vmem:[#allocation9 + $0xb8] sm:$0xff]
    %v178 = vld [vmem:[#allocation9 + $0xc0] sm:$0xff]
    %v179 = vld [vmem:[#allocation9 + $0xc8] sm:$0xff]
    %v180 = vld [vmem:[#allocation9 + $0xd0] sm:$0xff]
    %v181 = vld [vmem:[#allocation9 + $0xd8] sm:$0xff]
    %v182 = vld [vmem:[#allocation9 + $0xe0] sm:$0xff]
    %v183 = vld [vmem:[#allocation9 + $0xe8] sm:$0xff]
    %v184 = vld [vmem:[#allocation9 + $0xf0] sm:$0xff]
    %v185 = vld [vmem:[#allocation9 + $0xf8] sm:$0xff]
    %v186 = vld [vmem:[#allocation9 + $0x100] sm:$0xff]
    %v187 = vld [vmem:[#allocation9 + $0x108] sm:$0xff]
    %v188 = vld [vmem:[#allocation9 + $0x110] sm:$0xff]
    %v189 = vld [vmem:[#allocation9 + $0x118] sm:$0xff]
    %v190 = vld [vmem:[#allocation9 + $0x120] sm:$0xff]
    %v191 = vld [vmem:[#allocation9 + $0x128] sm:$0xff]
    %v192 = vld [vmem:[#allocation9 + $0x130] sm:$0xff]
    %v193 = vld [vmem:[#allocation9 + $0x138] sm:$0xff]
    %v194 = vld [vmem:[#allocation9 + $0x140] sm:$0xff]
    %v195 = vld [vmem:[#allocation9 + $0x148] sm:$0xff]
    %v196 = vld [vmem:[#allocation9 + $0x150] sm:$0xff]
    %v197 = vld [vmem:[#allocation9 + $0x158] sm:$0xff]
    %v198 = vld [vmem:[#allocation9 + $0x160] sm:$0xff]
    %v199 = vld [vmem:[#allocation9 + $0x168] sm:$0xff]
    %v200 = vld [vmem:[#allocation9 + $0x170] sm:$0xff]
    %v201 = vld [vmem:[#allocation9 + $0x178] sm:$0xff]
    %v202 = vld [vmem:[%s4] sm:$0x7]
    %v203 = vld [vmem:[%s5] sm:$0x7]
    %v205 = vlaneseq
    %v206 = vshrl.u32 %v205, 7
    %v207 = vsub.s32 0, %v206
    %v208 = vrot.slane %v202, %v207
    %v209 = vlaneseq
    %v210 = vshrl.u32 %v209, 7
    %v211 = vsub.s32 1, %v210
    %v212 = vrot.slane %v202, %v211
    %v213 = vlaneseq
    %v214 = vshrl.u32 %v213, 7
    %v215 = vsub.s32 2, %v214
    %v216 = vrot.slane %v202, %v215
    %vm220 = vcmask 261120
    %v222 = vsel %vm220, %v140, 0
    %v225 = vsel %vm220, %v141, 0
    %227 = vmatprep.subr.mxu0 %v143
    %228 = vmatpush1.msra.mxu0 %v142
    %229 = vmatprep.subr.mxu0 %v146
    %230 = vmatpush1.msra.mxu0 %v145
    %231 = vmatprep.subr.mxu0 %v149
    %232 = vmatpush1.msra.mxu0 %v148
    %233 = vmatprep.subr.mxu0 %v152
    %234 = vmatpush1.msra.mxu0 %v151
    %235 = vmatprep.subr.mxu0 0.0
    %236 = vmatpush1.msra.mxu0 0.0
    %237 = vmatprep.subr.mxu0 0.0
    %238 = vmatpush1.msra.mxu0 0.0
    %239 = vmatprep.subr.mxu0 0.0
    %240 = vmatpush1.msra.mxu0 0.0
    %241 = vmatprep.subr.mxu0 0.0
    %242 = vmatpush1.msra.mxu0 0.0
    %243 = vmatprep.subr.mxu0 0.0
    %244 = vmatpush1.msra.mxu0 0.0
    %245 = vmatprep.subr.mxu0 0.0
    %246 = vmatpush1.msra.mxu0 0.0
    %247 = vmatprep.subr.mxu0 0.0
    %248 = vmatpush1.msra.mxu0 0.0
    %249 = vmatprep.subr.mxu0 0.0
    %250 = vmatpush1.msra.mxu0 0.0
    %251 = vmatprep.subr.mxu0 0.0
    %252 = vmatpush1.msra.mxu0 0.0
    %253 = vmatprep.subr.mxu0 0.0
    %254 = vmatpush1.msra.mxu0 0.0
    %255 = vmatprep.subr.mxu0 0.0
    %256 = vmatpush1.msra.mxu0 0.0
    %257 = vmatprep.subr.mxu0 0.0
    %258 = vmatpush1.msra.mxu0 0.0
    %259 = vmatprep.subr.mxu0 0.0
    %260 = vmatpush1.msra.mxu0 0.0
    %261 = vmatprep.subr.mxu0 0.0
    %262 = vmatpush1.msra.mxu0 0.0
    %263 = vmatprep.subr.mxu0 0.0
    %264 = vmatpush1.msra.mxu0 0.0
    %265 = vmatprep.subr.mxu0 0.0
    %266 = vmatpush1.msra.mxu0 0.0
    %267 = vmatprep.subr.mxu0 0.0
    %268 = vmatpush1.msra.mxu0 0.0
    %269 = vmatprep.subr.mxu0 0.0
    %270 = vmatpush1.msra.mxu0 0.0
    %271 = vmatprep.subr.mxu0 0.0
    %272 = vmatpush1.msra.mxu0 0.0
    %273 = vmatprep.subr.mxu0 0.0
    %274 = vmatpush1.msra.mxu0 0.0
    %275 = vmatprep.subr.mxu0 0.0
    %276 = vmatpush1.msra.mxu0 0.0
    %277 = vmatprep.subr.mxu0 0.0
    %278 = vmatpush1.msra.mxu0 0.0
    %279 = vmatprep.subr.mxu0 0.0
    %280 = vmatpush1.msra.mxu0 0.0
    %281 = vmatprep.subr.mxu0 0.0
    %282 = vmatpush1.msra.mxu0 0.0
    %283 = vmatprep.subr.mxu0 0.0
    %284 = vmatpush1.msra.mxu0 0.0
    %285 = vmatprep.subr.mxu0 0.0
    %286 = vmatpush1.msra.mxu0 0.0
    %287 = vmatprep.subr.mxu0 0.0
    %288 = vmatpush1.msra.mxu0 0.0
    %289 = vmatprep.subr.mxu0 0.0
    %290 = vmatpush1.msra.mxu0 0.0
    %291 = vmatprep.mubr.f32.mxu0 0.0
    %292 = vmatmul.mubr.f32.gmra.mrb[0].mxu0 %v222
    %v293 = vpop.f32.mrb[0].mxu0
    %v294 = vadd.f32 %v208, %v293
    %v295 = vpop.f32.mrb[0].mxu0
    %v296 = vadd.f32 %v212, %v295
    %297 = vmatprep.mubr.f32.mxu0 0.0
    %298 = vmatmul.mubr.f32.gmra.mrb[0].mxu0 %v225
    %v299 = vpop.f32.mrb[0].mxu0
    %v300 = vadd.f32 %v208, %v299
    %v301 = vpop.f32.mrb[0].mxu0
    %v302 = vadd.f32 %v212, %v301
    %303 = vdwg.mxu0
    %304 = vmatprep.subr.mxu0 0.0
    %305 = vmatpush1.msra.mxu0 %v144
    %306 = vmatprep.subr.mxu0 0.0
    %307 = vmatpush1.msra.mxu0 %v147
    %308 = vmatprep.subr.mxu0 0.0
    %309 = vmatpush1.msra.mxu0 %v150
    %310 = vmatprep.subr.mxu0 0.0
    %311 = vmatpush1.msra.mxu0 %v153
    %312 = vmatprep.subr.mxu0 0.0
    %313 = vmatpush1.msra.mxu0 0.0
    %314 = vmatprep.subr.mxu0 0.0
    %315 = vmatpush1.msra.mxu0 0.0
    %316 = vmatprep.subr.mxu0 0.0
    %317 = vmatpush1.msra.mxu0 0.0
    %318 = vmatprep.subr.mxu0 0.0
    %319 = vmatpush1.msra.mxu0 0.0
    %320 = vmatprep.subr.mxu0 0.0
    %321 = vmatpush1.msra.mxu0 0.0
    %322 = vmatprep.subr.mxu0 0.0
    %323 = vmatpush1.msra.mxu0 0.0
    %324 = vmatprep.subr.mxu0 0.0
    %325 = vmatpush1.msra.mxu0 0.0
    %326 = vmatprep.subr.mxu0 0.0
    %327 = vmatpush1.msra.mxu0 0.0
    %328 = vmatprep.subr.mxu0 0.0
    %329 = vmatpush1.msra.mxu0 0.0
    %330 = vmatprep.subr.mxu0 0.0
    %331 = vmatpush1.msra.mxu0 0.0
    %332 = vmatprep.subr.mxu0 0.0
    %333 = vmatpush1.msra.mxu0 0.0
    %334 = vmatprep.subr.mxu0 0.0
    %335 = vmatpush1.msra.mxu0 0.0
    %336 = vmatprep.subr.mxu0 0.0
    %337 = vmatpush1.msra.mxu0 0.0
    %338 = vmatprep.subr.mxu0 0.0
    %339 = vmatpush1.msra.mxu0 0.0
    %340 = vmatprep.subr.mxu0 0.0
    %341 = vmatpush1.msra.mxu0 0.0
    %342 = vmatprep.subr.mxu0 0.0
    %343 = vmatpush1.msra.mxu0 0.0
    %344 = vmatprep.subr.mxu0 0.0
    %345 = vmatpush1.msra.mxu0 0.0
    %346 = vmatprep.subr.mxu0 0.0
    %347 = vmatpush1.msra.mxu0 0.0
    %348 = vmatprep.subr.mxu0 0.0
    %349 = vmatpush1.msra.mxu0 0.0
    %350 = vmatprep.subr.mxu0 0.0
    %351 = vmatpush1.msra.mxu0 0.0
    %352 = vmatprep.subr.mxu0 0.0
    %353 = vmatpush1.msra.mxu0 0.0
    %354 = vmatprep.subr.mxu0 0.0
    %355 = vmatpush1.msra.mxu0 0.0
    %356 = vmatprep.subr.mxu0 0.0
    %357 = vmatpush1.msra.mxu0 0.0
    %358 = vmatprep.subr.mxu0 0.0
    %359 = vmatpush1.msra.mxu0 0.0
    %360 = vmatprep.subr.mxu0 0.0
    %361 = vmatpush1.msra.mxu0 0.0
    %362 = vmatprep.subr.mxu0 0.0
    %363 = vmatpush1.msra.mxu0 0.0
    %364 = vmatprep.subr.mxu0 0.0
    %365 = vmatpush1.msra.mxu0 0.0
    %366 = vmatprep.subr.mxu0 0.0
    %367 = vmatpush1.msra.mxu0 0.0
    %368 = vmatprep.mubr.f32.mxu0 0.0
    %369 = vmatmul.mubr.f32.gmra.mrb[0].mxu0 %v222
    %v370 = vpop.f32.mrb[0].mxu0
    %v371 = vadd.f32 %v216, %v370
    %v372 = vpop.f32.mrb[0].mxu0
    %373 = vmatprep.mubr.f32.mxu0 0.0
    %374 = vmatmul.mubr.f32.gmra.mrb[0].mxu0 %v225
    %v375 = vpop.f32.mrb[0].mxu0
    %v376 = vadd.f32 %v216, %v375
    %v377 = vpop.f32.mrb[0].mxu0
    %378 = vdwg.mxu0
    %v379 = vld [vmem:[#allocation6] sm:$0x3]
    %v383 = vrot.slane %v300, 7
    %v384 = vrot.slane %v302, 7
    %v385 = vrot.slane %v376, 7
    %vm389 = vcmask 1040384
    %v390 = vsel %vm389, %v294, %v383
    %v391 = vsel %vm389, %v296, %v384
    %v392 = vsel %vm389, %v371, %v385
    %v394 = vlaneseq
    %v395 = vshrl.u32 %v394, 7
    %v396 = vsub.s32 0, %v395
    %v397 = vrot.slane %v203, %v396
    %v398 = vlaneseq
    %v399 = vshrl.u32 %v398, 7
    %v400 = vsub.s32 1, %v399
    %v401 = vrot.slane %v203, %v400
    %v402 = vlaneseq
    %v403 = vshrl.u32 %v402, 7
    %v404 = vsub.s32 2, %v403
    %v405 = vrot.slane %v203, %v404
    %409 = vmatprep.subr.mxu0 %v155
    %410 = vmatpush1.msra.mxu0 %v154
    %411 = vmatprep.subr.mxu0 %v158
    %412 = vmatpush1.msra.mxu0 %v157
    %413 = vmatprep.subr.mxu0 %v161
    %414 = vmatpush1.msra.mxu0 %v160
    %415 = vmatprep.subr.mxu0 %v164
    %416 = vmatpush1.msra.mxu0 %v163
    %417 = vmatprep.subr.mxu0 %v167
    %418 = vmatpush1.msra.mxu0 %v166
    %419 = vmatprep.subr.mxu0 %v170
    %420 = vmatpush1.msra.mxu0 %v169
    %421 = vmatprep.subr.mxu0 %v173
    %422 = vmatpush1.msra.mxu0 %v172
    %423 = vmatprep.subr.mxu0 %v176
    %424 = vmatpush1.msra.mxu0 %v175
    %425 = vmatprep.subr.mxu0 %v179
    %426 = vmatpush1.msra.mxu0 %v178
    %427 = vmatprep.subr.mxu0 %v182
    %428 = vmatpush1.msra.mxu0 %v181
    %429 = vmatprep.subr.mxu0 %v185
    %430 = vmatpush1.msra.mxu0 %v184
    %431 = vmatprep.subr.mxu0 %v188
    %432 = vmatpush1.msra.mxu0 %v187
    %433 = vmatprep.subr.mxu0 %v191
    %434 = vmatpush1.msra.mxu0 %v190
    %435 = vmatprep.subr.mxu0 %v194
    %436 = vmatpush1.msra.mxu0 %v193
    %437 = vmatprep.subr.mxu0 %v197
    %438 = vmatpush1.msra.mxu0 %v196
    %439 = vmatprep.subr.mxu0 %v200
    %440 = vmatpush1.msra.mxu0 %v199
    %441 = vmatprep.subr.mxu0 0.0
    %442 = vmatpush1.msra.mxu0 0.0
    %443 = vmatprep.subr.mxu0 0.0
    %444 = vmatpush1.msra.mxu0 0.0
    %445 = vmatprep.subr.mxu0 0.0
    %446 = vmatpush1.msra.mxu0 0.0
    %447 = vmatprep.subr.mxu0 0.0
    %448 = vmatpush1.msra.mxu0 0.0
    %449 = vmatprep.subr.mxu0 0.0
    %450 = vmatpush1.msra.mxu0 0.0
    %451 = vmatprep.subr.mxu0 0.0
    %452 = vmatpush1.msra.mxu0 0.0
    %453 = vmatprep.subr.mxu0 0.0
    %454 = vmatpush1.msra.mxu0 0.0
    %455 = vmatprep.subr.mxu0 0.0
    %456 = vmatpush1.msra.mxu0 0.0
    %457 = vmatprep.subr.mxu0 0.0
    %458 = vmatpush1.msra.mxu0 0.0
    %459 = vmatprep.subr.mxu0 0.0
    %460 = vmatpush1.msra.mxu0 0.0
    %461 = vmatprep.subr.mxu0 0.0
    %462 = vmatpush1.msra.mxu0 0.0
    %463 = vmatprep.subr.mxu0 0.0
    %464 = vmatpush1.msra.mxu0 0.0
    %465 = vmatprep.subr.mxu0 0.0
    %466 = vmatpush1.msra.mxu0 0.0
    %467 = vmatprep.subr.mxu0 0.0
    %468 = vmatpush1.msra.mxu0 0.0
    %469 = vmatprep.subr.mxu0 0.0
    %470 = vmatpush1.msra.mxu0 0.0
    %471 = vmatprep.subr.mxu0 0.0
    %472 = vmatpush1.msra.mxu0 0.0
    %473 = vmatprep.mubr.f32.mxu0 0.0
    %474 = vmatmul.mubr.f32.gmra.mrb[0].mxu0 %v379
    %v475 = vpop.f32.mrb[0].mxu0
    %v476 = vadd.f32 %v397, %v475
    %v477 = vpop.f32.mrb[0].mxu0
    %v478 = vadd.f32 %v401, %v477
    %479 = vdwg.mxu0
    %480 = vmatprep.subr.mxu0 0.0
    %481 = vmatpush1.msra.mxu0 %v156
    %482 = vmatprep.subr.mxu0 0.0
    %483 = vmatpush1.msra.mxu0 %v159
    %484 = vmatprep.subr.mxu0 0.0
    %485 = vmatpush1.msra.mxu0 %v162
    %486 = vmatprep.subr.mxu0 0.0
    %487 = vmatpush1.msra.mxu0 %v165
    %488 = vmatprep.subr.mxu0 0.0
    %489 = vmatpush1.msra.mxu0 %v168
    %490 = vmatprep.subr.mxu0 0.0
    %491 = vmatpush1.msra.mxu0 %v171
    %492 = vmatprep.subr.mxu0 0.0
    %493 = vmatpush1.msra.mxu0 %v174
    %494 = vmatprep.subr.mxu0 0.0
    %495 = vmatpush1.msra.mxu0 %v177
    %496 = vmatprep.subr.mxu0 0.0
    %497 = vmatpush1.msra.mxu0 %v180
    %498 = vmatprep.subr.mxu0 0.0
    %499 = vmatpush1.msra.mxu0 %v183
    %500 = vmatprep.subr.mxu0 0.0
    %501 = vmatpush1.msra.mxu0 %v186
    %502 = vmatprep.subr.mxu0 0.0
    %503 = vmatpush1.msra.mxu0 %v189
    %504 = vmatprep.subr.mxu0 0.0
    %505 = vmatpush1.msra.mxu0 %v192
    %506 = vmatprep.subr.mxu0 0.0
    %507 = vmatpush1.msra.mxu0 %v195
    %508 = vmatprep.subr.mxu0 0.0
    %509 = vmatpush1.msra.mxu0 %v198
    %510 = vmatprep.subr.mxu0 0.0
    %511 = vmatpush1.msra.mxu0 %v201
    %512 = vmatprep.subr.mxu0 0.0
    %513 = vmatpush1.msra.mxu0 0.0
    %514 = vmatprep.subr.mxu0 0.0
    %515 = vmatpush1.msra.mxu0 0.0
    %516 = vmatprep.subr.mxu0 0.0
    %517 = vmatpush1.msra.mxu0 0.0
    %518 = vmatprep.subr.mxu0 0.0
    %519 = vmatpush1.msra.mxu0 0.0
    %520 = vmatprep.subr.mxu0 0.0
    %521 = vmatpush1.msra.mxu0 0.0
    %522 = vmatprep.subr.mxu0 0.0
    %523 = vmatpush1.msra.mxu0 0.0
    %524 = vmatprep.subr.mxu0 0.0
    %525 = vmatpush1.msra.mxu0 0.0
    %526 = vmatprep.subr.mxu0 0.0
    %527 = vmatpush1.msra.mxu0 0.0
    %528 = vmatprep.subr.mxu0 0.0
    %529 = vmatpush1.msra.mxu0 0.0
    %530 = vmatprep.subr.mxu0 0.0
    %531 = vmatpush1.msra.mxu0 0.0
    %532 = vmatprep.subr.mxu0 0.0
    %533 = vmatpush1.msra.mxu0 0.0
    %534 = vmatprep.subr.mxu0 0.0
    %535 = vmatpush1.msra.mxu0 0.0
    %536 = vmatprep.subr.mxu0 0.0
    %537 = vmatpush1.msra.mxu0 0.0
    %538 = vmatprep.subr.mxu0 0.0
    %539 = vmatpush1.msra.mxu0 0.0
    %540 = vmatprep.subr.mxu0 0.0
    %541 = vmatpush1.msra.mxu0 0.0
    %542 = vmatprep.subr.mxu0 0.0
    %543 = vmatpush1.msra.mxu0 0.0
    %544 = vmatprep.mubr.f32.mxu0 0.0
    %545 = vmatmul.mubr.f32.gmra.mrb[0].mxu0 %v379
    %v546 = vpop.f32.mrb[0].mxu0
    %v547 = vadd.f32 %v405, %v546
    %v548 = vpop.f32.mrb[0].mxu0
    %549 = vdwg.mxu0
    %v550 = vadd.f32 %v390, %v476
    %v551 = vxor.u32 %v550, 2147483648
    %v552 = vmul.f32 %v551, 1.442695
    %v553 = vpow.pop %v552
    %v554 = vadd.f32 %v553, 1.0
    %v555 = vrcp.pop %v554
    %v556 = vmul.f32 1.0, %v555
    %v557 = vadd.f32 %v391, %v478
    %v558 = vxor.u32 %v557, 2147483648
    %v559 = vmul.f32 %v558, 1.442695
    %v560 = vpow.pop %v559
    %v561 = vadd.f32 %v560, 1.0
    %v562 = vrcp.pop %v561
    %v563 = vmul.f32 1.0, %v562
    %v564 = vmul.f32 %v556, %v547
    %v565 = vadd.f32 %v392, %v564
    %v566 = vtanh.pop %v565
    %v567 = vsub.f32 1.0, %v563
    %v568 = vmul.f32 %v567, %v566
    %v569 = vmul.f32 %v563, %v379
    %v570 = vadd.f32 %v568, %v569
    %571 = vst [vmem:[#allocation2] sm:$0x1] %v570
    %572 = vst [vmem:[#allocation2 + $0x7] sm:$0x2] %v570
    %v576 = vrot.slane %v294, 1
    %v577 = vrot.slane %v296, 1
    %v578 = vrot.slane %v371, 1
    %v582 = vsel %vm389, %v576, %v300
    %v583 = vsel %vm389, %v577, %v302
    %v584 = vsel %vm389, %v578, %v376
    %585 = vmatprep.subr.mxu0 %v155
    %586 = vmatpush1.msra.mxu0 %v154
    %587 = vmatprep.subr.mxu0 %v158
    %588 = vmatpush1.msra.mxu0 %v157
    %589 = vmatprep.subr.mxu0 %v161
    %590 = vmatpush1.msra.mxu0 %v160
    %591 = vmatprep.subr.mxu0 %v164
    %592 = vmatpush1.msra.mxu0 %v163
    %593 = vmatprep.subr.mxu0 %v167
    %594 = vmatpush1.msra.mxu0 %v166
    %595 = vmatprep.subr.mxu0 %v170
    %596 = vmatpush1.msra.mxu0 %v169
    %597 = vmatprep.subr.mxu0 %v173
    %598 = vmatpush1.msra.mxu0 %v172
    %599 = vmatprep.subr.mxu0 %v176
    %600 = vmatpush1.msra.mxu0 %v175
    %601 = vmatprep.subr.mxu0 %v179
    %602 = vmatpush1.msra.mxu0 %v178
    %603 = vmatprep.subr.mxu0 %v182
    %604 = vmatpush1.msra.mxu0 %v181
    %605 = vmatprep.subr.mxu0 %v185
    %606 = vmatpush1.msra.mxu0 %v184
    %607 = vmatprep.subr.mxu0 %v188
    %608 = vmatpush1.msra.mxu0 %v187
    %609 = vmatprep.subr.mxu0 %v191
    %610 = vmatpush1.msra.mxu0 %v190
    %611 = vmatprep.subr.mxu0 %v194
    %612 = vmatpush1.msra.mxu0 %v193
    %613 = vmatprep.subr.mxu0 %v197
    %614 = vmatpush1.msra.mxu0 %v196
    %615 = vmatprep.subr.mxu0 %v200
    %616 = vmatpush1.msra.mxu0 %v199
    %617 = vmatprep.subr.mxu0 0.0
    %618 = vmatpush1.msra.mxu0 0.0
    %619 = vmatprep.subr.mxu0 0.0
    %620 = vmatpush1.msra.mxu0 0.0
    %621 = vmatprep.subr.mxu0 0.0
    %622 = vmatpush1.msra.mxu0 0.0
    %623 = vmatprep.subr.mxu0 0.0
    %624 = vmatpush1.msra.mxu0 0.0
    %625 = vmatprep.subr.mxu0 0.0
    %626 = vmatpush1.msra.mxu0 0.0
    %627 = vmatprep.subr.mxu0 0.0
    %628 = vmatpush1.msra.mxu0 0.0
    %629 = vmatprep.subr.mxu0 0.0
    %630 = vmatpush1.msra.mxu0 0.0
    %631 = vmatprep.subr.mxu0 0.0
    %632 = vmatpush1.msra.mxu0 0.0
    %633 = vmatprep.subr.mxu0 0.0
    %634 = vmatpush1.msra.mxu0 0.0
    %635 = vmatprep.subr.mxu0 0.0
    %636 = vmatpush1.msra.mxu0 0.0
    %637 = vmatprep.subr.mxu0 0.0
    %638 = vmatpush1.msra.mxu0 0.0
    %639 = vmatprep.subr.mxu0 0.0
    %640 = vmatpush1.msra.mxu0 0.0
    %641 = vmatprep.subr.mxu0 0.0
    %642 = vmatpush1.msra.mxu0 0.0
    %643 = vmatprep.subr.mxu0 0.0
    %644 = vmatpush1.msra.mxu0 0.0
    %645 = vmatprep.subr.mxu0 0.0
    %646 = vmatpush1.msra.mxu0 0.0
    %647 = vmatprep.subr.mxu0 0.0
    %648 = vmatpush1.msra.mxu0 0.0
    %649 = vmatprep.mubr.f32.mxu0 0.0
    %650 = vmatmul.mubr.f32.gmra.mrb[0].mxu0 %v570
    %v651 = vpop.f32.mrb[0].mxu0
    %v652 = vadd.f32 %v397, %v651
    %v653 = vpop.f32.mrb[0].mxu0
    %v654 = vadd.f32 %v401, %v653
    %655 = vdwg.mxu0
    %656 = vmatprep.subr.mxu0 0.0
    %657 = vmatpush1.msra.mxu0 %v156
    %658 = vmatprep.subr.mxu0 0.0
    %659 = vmatpush1.msra.mxu0 %v159
    %660 = vmatprep.subr.mxu0 0.0
    %661 = vmatpush1.msra.mxu0 %v162
    %662 = vmatprep.subr.mxu0 0.0
    %663 = vmatpush1.msra.mxu0 %v165
    %664 = vmatprep.subr.mxu0 0.0
    %665 = vmatpush1.msra.mxu0 %v168
    %666 = vmatprep.subr.mxu0 0.0
    %667 = vmatpush1.msra.mxu0 %v171
    %668 = vmatprep.subr.mxu0 0.0
    %669 = vmatpush1.msra.mxu0 %v174
    %670 = vmatprep.subr.mxu0 0.0
    %671 = vmatpush1.msra.mxu0 %v177
    %672 = vmatprep.subr.mxu0 0.0
    %673 = vmatpush1.msra.mxu0 %v180
    %674 = vmatprep.subr.mxu0 0.0
    %675 = vmatpush1.msra.mxu0 %v183
    %676 = vmatprep.subr.mxu0 0.0
    %677 = vmatpush1.msra.mxu0 %v186
    %678 = vmatprep.subr.mxu0 0.0
    %679 = vmatpush1.msra.mxu0 %v189
    %680 = vmatprep.subr.mxu0 0.0
    %681 = vmatpush1.msra.mxu0 %v192
    %682 = vmatprep.subr.mxu0 0.0
    %683 = vmatpush1.msra.mxu0 %v195
    %684 = vmatprep.subr.mxu0 0.0
    %685 = vmatpush1.msra.mxu0 %v198
    %686 = vmatprep.subr.mxu0 0.0
    %687 = vmatpush1.msra.mxu0 %v201
    %688 = vmatprep.subr.mxu0 0.0
    %689 = vmatpush1.msra.mxu0 0.0
    %690 = vmatprep.subr.mxu0 0.0
    %691 = vmatpush1.msra.mxu0 0.0
    %692 = vmatprep.subr.mxu0 0.0
    %693 = vmatpush1.msra.mxu0 0.0
    %694 = vmatprep.subr.mxu0 0.0
    %695 = vmatpush1.msra.mxu0 0.0
    %696 = vmatprep.subr.mxu0 0.0
    %697 = vmatpush1.msra.mxu0 0.0
    %698 = vmatprep.subr.mxu0 0.0
    %699 = vmatpush1.msra.mxu0 0.0
    %700 = vmatprep.subr.mxu0 0.0
    %701 = vmatpush1.msra.mxu0 0.0
    %702 = vmatprep.subr.mxu0 0.0
    %703 = vmatpush1.msra.mxu0 0.0
    %704 = vmatprep.subr.mxu0 0.0
    %705 = vmatpush1.msra.mxu0 0.0
    %706 = vmatprep.subr.mxu0 0.0
    %707 = vmatpush1.msra.mxu0 0.0
    %708 = vmatprep.subr.mxu0 0.0
    %709 = vmatpush1.msra.mxu0 0.0
    %710 = vmatprep.subr.mxu0 0.0
    %711 = vmatpush1.msra.mxu0 0.0
    %712 = vmatprep.subr.mxu0 0.0
    %713 = vmatpush1.msra.mxu0 0.0
    %714 = vmatprep.subr.mxu0 0.0
    %715 = vmatpush1.msra.mxu0 0.0
    %716 = vmatprep.subr.mxu0 0.0
    %717 = vmatpush1.msra.mxu0 0.0
    %718 = vmatprep.subr.mxu0 0.0
    %719 = vmatpush1.msra.mxu0 0.0
    %720 = vmatprep.mubr.f32.mxu0 0.0
    %721 = vmatmul.mubr.f32.gmra.mrb[0].mxu0 %v570
    %v722 = vpop.f32.mrb[0].mxu0
    %v723 = vadd.f32 %v405, %v722
    %v724 = vpop.f32.mrb[0].mxu0
    %725 = vdwg.mxu0
    %v726 = vadd.f32 %v582, %v652
    %v727 = vxor.u32 %v726, 2147483648
    %v728 = vmul.f32 %v727, 1.442695
    %v729 = vpow.pop %v728
    %v730 = vadd.f32 %v729, 1.0
    %v731 = vrcp.pop %v730
    %v732 = vmul.f32 1.0, %v731
    %v733 = vadd.f32 %v583, %v654
    %v734 = vxor.u32 %v733, 2147483648
    %v735 = vmul.f32 %v734, 1.442695
    %v736 = vpow.pop %v735
    %v737 = vadd.f32 %v736, 1.0
    %v738 = vrcp.pop %v737
    %v739 = vmul.f32 1.0, %v738
    %v740 = vmul.f32 %v732, %v723
    %v741 = vadd.f32 %v584, %v740
    %v742 = vtanh.pop %v741
    %v743 = vsub.f32 1.0, %v739
    %v744 = vmul.f32 %v743, %v742
    %v745 = vmul.f32 %v739, %v570
    %v746 = vadd.f32 %v744, %v745
    %747 = vst [vmem:[#allocation2 + $0x1] sm:$0x1] %v746
    %748 = vst [vmem:[#allocation2 + $0x8] sm:$0x2] %v746
    %v749 = vrot.slane %v294, 2
    %v750 = vrot.slane %v296, 2
    %v751 = vrot.slane %v371, 2
    %v755 = vrot.slane %v300, 1
    %v756 = vrot.slane %v302, 1
    %v757 = vrot.slane %v376, 1
    %v761 = vsel %vm389, %v749, %v755
    %v762 = vsel %vm389, %v750, %v756
    %v763 = vsel %vm389, %v751, %v757
    %764 = vmatprep.subr.mxu0 %v155
    %765 = vmatpush1.msra.mxu0 %v154
    %766 = vmatprep.subr.mxu0 %v158
    %767 = vmatpush1.msra.mxu0 %v157
    %768 = vmatprep.subr.mxu0 %v161
    %769 = vmatpush1.msra.mxu0 %v160
    %770 = vmatprep.subr.mxu0 %v164
    %771 = vmatpush1.msra.mxu0 %v163
    %772 = vmatprep.subr.mxu0 %v167
    %773 = vmatpush1.msra.mxu0 %v166
    %774 = vmatprep.subr.mxu0 %v170
    %775 = vmatpush1.msra.mxu0 %v169
    %776 = vmatprep.subr.mxu0 %v173
    %777 = vmatpush1.msra.mxu0 %v172
    %778 = vmatprep.subr.mxu0 %v176
    %779 = vmatpush1.msra.mxu0 %v175
    %780 = vmatprep.subr.mxu0 %v179
    %781 = vmatpush1.msra.mxu0 %v178
    %782 = vmatprep.subr.mxu0 %v182
    %783 = vmatpush1.msra.mxu0 %v181
    %784 = vmatprep.subr.mxu0 %v185
    %785 = vmatpush1.msra.mxu0 %v184
    %786 = vmatprep.subr.mxu0 %v188
    %787 = vmatpush1.msra.mxu0 %v187
    %788 = vmatprep.subr.mxu0 %v191
    %789 = vmatpush1.msra.mxu0 %v190
    %790 = vmatprep.subr.mxu0 %v194
    %791 = vmatpush1.msra.mxu0 %v193
    %792 = vmatprep.subr.mxu0 %v197
    %793 = vmatpush1.msra.mxu0 %v196
    %794 = vmatprep.subr.mxu0 %v200
    %795 = vmatpush1.msra.mxu0 %v199
    %796 = vmatprep.subr.mxu0 0.0
    %797 = vmatpush1.msra.mxu0 0.0
    %798 = vmatprep.subr.mxu0 0.0
    %799 = vmatpush1.msra.mxu0 0.0
    %800 = vmatprep.subr.mxu0 0.0
    %801 = vmatpush1.msra.mxu0 0.0
    %802 = vmatprep.subr.mxu0 0.0
    %803 = vmatpush1.msra.mxu0 0.0
    %804 = vmatprep.subr.mxu0 0.0
    %805 = vmatpush1.msra.mxu0 0.0
    %806 = vmatprep.subr.mxu0 0.0
    %807 = vmatpush1.msra.mxu0 0.0
    %808 = vmatprep.subr.mxu0 0.0
    %809 = vmatpush1.msra.mxu0 0.0
    %810 = vmatprep.subr.mxu0 0.0
    %811 = vmatpush1.msra.mxu0 0.0
    %812 = vmatprep.subr.mxu0 0.0
    %813 = vmatpush1.msra.mxu0 0.0
    %814 = vmatprep.subr.mxu0 0.0
    %815 = vmatpush1.msra.mxu0 0.0
    %816 = vmatprep.subr.mxu0 0.0
    %817 = vmatpush1.msra.mxu0 0.0
    %818 = vmatprep.subr.mxu0 0.0
    %819 = vmatpush1.msra.mxu0 0.0
    %820 = vmatprep.subr.mxu0 0.0
    %821 = vmatpush1.msra.mxu0 0.0
    %822 = vmatprep.subr.mxu0 0.0
    %823 = vmatpush1.msra.mxu0 0.0
    %824 = vmatprep.subr.mxu0 0.0
    %825 = vmatpush1.msra.mxu0 0.0
    %826 = vmatprep.subr.mxu0 0.0
    %827 = vmatpush1.msra.mxu0 0.0
    %828 = vmatprep.mubr.f32.mxu0 0.0
    %829 = vmatmul.mubr.f32.gmra.mrb[0].mxu0 %v746
    %v830 = vpop.f32.mrb[0].mxu0
    %v831 = vadd.f32 %v397, %v830
    %v832 = vpop.f32.mrb[0].mxu0
    %v833 = vadd.f32 %v401, %v832
    %834 = vdwg.mxu0
    %835 = vmatprep.subr.mxu0 0.0
    %836 = vmatpush1.msra.mxu0 %v156
    %837 = vmatprep.subr.mxu0 0.0
    %838 = vmatpush1.msra.mxu0 %v159
    %839 = vmatprep.subr.mxu0 0.0
    %840 = vmatpush1.msra.mxu0 %v162
    %841 = vmatprep.subr.mxu0 0.0
    %842 = vmatpush1.msra.mxu0 %v165
    %843 = vmatprep.subr.mxu0 0.0
    %844 = vmatpush1.msra.mxu0 %v168
    %845 = vmatprep.subr.mxu0 0.0
    %846 = vmatpush1.msra.mxu0 %v171
    %847 = vmatprep.subr.mxu0 0.0
    %848 = vmatpush1.msra.mxu0 %v174
    %849 = vmatprep.subr.mxu0 0.0
    %850 = vmatpush1.msra.mxu0 %v177
    %851 = vmatprep.subr.mxu0 0.0
    %852 = vmatpush1.msra.mxu0 %v180
    %853 = vmatprep.subr.mxu0 0.0
    %854 = vmatpush1.msra.mxu0 %v183
    %855 = vmatprep.subr.mxu0 0.0
    %856 = vmatpush1.msra.mxu0 %v186
    %857 = vmatprep.subr.mxu0 0.0
    %858 = vmatpush1.msra.mxu0 %v189
    %859 = vmatprep.subr.mxu0 0.0
    %860 = vmatpush1.msra.mxu0 %v192
    %861 = vmatprep.subr.mxu0 0.0
    %862 = vmatpush1.msra.mxu0 %v195
    %863 = vmatprep.subr.mxu0 0.0
    %864 = vmatpush1.msra.mxu0 %v198
    %865 = vmatprep.subr.mxu0 0.0
    %866 = vmatpush1.msra.mxu0 %v201
    %867 = vmatprep.subr.mxu0 0.0
    %868 = vmatpush1.msra.mxu0 0.0
    %869 = vmatprep.subr.mxu0 0.0
    %870 = vmatpush1.msra.mxu0 0.0
    %871 = vmatprep.subr.mxu0 0.0
    %872 = vmatpush1.msra.mxu0 0.0
    %873 = vmatprep.subr.mxu0 0.0
    %874 = vmatpush1.msra.mxu0 0.0
    %875 = vmatprep.subr.mxu0 0.0
    %876 = vmatpush1.msra.mxu0 0.0
    %877 = vmatprep.subr.mxu0 0.0
    %878 = vmatpush1.msra.mxu0 0.0
    %879 = vmatprep.subr.mxu0 0.0
    %880 = vmatpush1.msra.mxu0 0.0
    %881 = vmatprep.subr.mxu0 0.0
    %882 = vmatpush1.msra.mxu0 0.0
    %883 = vmatprep.subr.mxu0 0.0
    %884 = vmatpush1.msra.mxu0 0.0
    %885 = vmatprep.subr.mxu0 0.0
    %886 = vmatpush1.msra.mxu0 0.0
    %887 = vmatprep.subr.mxu0 0.0
    %888 = vmatpush1.msra.mxu0 0.0
    %889 = vmatprep.subr.mxu0 0.0
    %890 = vmatpush1.msra.mxu0 0.0
    %891 = vmatprep.subr.mxu0 0.0
    %892 = vmatpush1.msra.mxu0 0.0
    %893 = vmatprep.subr.mxu0 0.0
    %894 = vmatpush1.msra.mxu0 0.0
    %895 = vmatprep.subr.mxu0 0.0
    %896 = vmatpush1.msra.mxu0 0.0
    %897 = vmatprep.subr.mxu0 0.0
    %898 = vmatpush1.msra.mxu0 0.0
    %899 = vmatprep.mubr.f32.mxu0 0.0
    %900 = vmatmul.mubr.f32.gmra.mrb[0].mxu0 %v746
    %v901 = vpop.f32.mrb[0].mxu0
    %v902 = vadd.f32 %v405, %v901
    %v903 = vpop.f32.mrb[0].mxu0
    %904 = vdwg.mxu0
    %v905 = vadd.f32 %v761, %v831
    %v906 = vxor.u32 %v905, 2147483648
    %v907 = vmul.f32 %v906, 1.442695
    %v908 = vpow.pop %v907
    %v909 = vadd.f32 %v908, 1.0
    %v910 = vrcp.pop %v909
    %v911 = vmul.f32 1.0, %v910
    %v912 = vadd.f32 %v762, %v833
    %v913 = vxor.u32 %v912, 2147483648
    %v914 = vmul.f32 %v913, 1.442695
    %v915 = vpow.pop %v914
    %v916 = vadd.f32 %v915, 1.0
    %v917 = vrcp.pop %v916
    %v918 = vmul.f32 1.0, %v917
    %v919 = vmul.f32 %v911, %v902
    %v920 = vadd.f32 %v763, %v919
    %v921 = vtanh.pop %v920
    %v922 = vsub.f32 1.0, %v918
    %v923 = vmul.f32 %v922, %v921
    %v924 = vmul.f32 %v918, %v746
    %v925 = vadd.f32 %v923, %v924
    %926 = vst [vmem:[#allocation2 + $0x2] sm:$0x1] %v925
    %927 = vst [vmem:[#allocation2 + $0x9] sm:$0x2] %v925
    %v928 = vrot.slane %v294, 3
    %v929 = vrot.slane %v296, 3
    %v930 = vrot.slane %v371, 3
    %v934 = vrot.slane %v300, 2
    %v935 = vrot.slane %v302, 2
    %v936 = vrot.slane %v376, 2
    %v940 = vsel %vm389, %v928, %v934
    %v941 = vsel %vm389, %v929, %v935
    %v942 = vsel %vm389, %v930, %v936
    %943 = vmatprep.subr.mxu0 %v155
    %944 = vmatpush1.msra.mxu0 %v154
    %945 = vmatprep.subr.mxu0 %v158
    %946 = vmatpush1.msra.mxu0 %v157
    %947 = vmatprep.subr.mxu0 %v161
    %948 = vmatpush1.msra.mxu0 %v160
    %949 = vmatprep.subr.mxu0 %v164
    %950 = vmatpush1.msra.mxu0 %v163
    %951 = vmatprep.subr.mxu0 %v167
    %952 = vmatpush1.msra.mxu0 %v166
    %953 = vmatprep.subr.mxu0 %v170
    %954 = vmatpush1.msra.mxu0 %v169
    %955 = vmatprep.subr.mxu0 %v173
    %956 = vmatpush1.msra.mxu0 %v172
    %957 = vmatprep.subr.mxu0 %v176
    %958 = vmatpush1.msra.mxu0 %v175
    %959 = vmatprep.subr.mxu0 %v179
    %960 = vmatpush1.msra.mxu0 %v178
    %961 = vmatprep.subr.mxu0 %v182
    %962 = vmatpush1.msra.mxu0 %v181
    %963 = vmatprep.subr.mxu0 %v185
    %964 = vmatpush1.msra.mxu0 %v184
    %965 = vmatprep.subr.mxu0 %v188
    %966 = vmatpush1.msra.mxu0 %v187
    %967 = vmatprep.subr.mxu0 %v191
    %968 = vmatpush1.msra.mxu0 %v190
    %969 = vmatprep.subr.mxu0 %v194
    %970 = vmatpush1.msra.mxu0 %v193
    %971 = vmatprep.subr.mxu0 %v197
    %972 = vmatpush1.msra.mxu0 %v196
    %973 = vmatprep.subr.mxu0 %v200
    %974 = vmatpush1.msra.mxu0 %v199
    %975 = vmatprep.subr.mxu0 0.0
    %976 = vmatpush1.msra.mxu0 0.0
    %977 = vmatprep.subr.mxu0 0.0
    %978 = vmatpush1.msra.mxu0 0.0
    %979 = vmatprep.subr.mxu0 0.0
    %980 = vmatpush1.msra.mxu0 0.0
    %981 = vmatprep.subr.mxu0 0.0
    %982 = vmatpush1.msra.mxu0 0.0
    %983 = vmatprep.subr.mxu0 0.0
    %984 = vmatpush1.msra.mxu0 0.0
    %985 = vmatprep.subr.mxu0 0.0
    %986 = vmatpush1.msra.mxu0 0.0
    %987 = vmatprep.subr.mxu0 0.0
    %988 = vmatpush1.msra.mxu0 0.0
    %989 = vmatprep.subr.mxu0 0.0
    %990 = vmatpush1.msra.mxu0 0.0
    %991 = vmatprep.subr.mxu0 0.0
    %992 = vmatpush1.msra.mxu0 0.0
    %993 = vmatprep.subr.mxu0 0.0
    %994 = vmatpush1.msra.mxu0 0.0
    %995 = vmatprep.subr.mxu0 0.0
    %996 = vmatpush1.msra.mxu0 0.0
    %997 = vmatprep.subr.mxu0 0.0
    %998 = vmatpush1.msra.mxu0 0.0
    %999 = vmatprep.subr.mxu0 0.0
    %1000 = vmatpush1.msra.mxu0 0.0
    %1001 = vmatprep.subr.mxu0 0.0
    %1002 = vmatpush1.msra.mxu0 0.0
    %1003 = vmatprep.subr.mxu0 0.0
    %1004 = vmatpush1.msra.mxu0 0.0
    %1005 = vmatprep.subr.mxu0 0.0
    %1006 = vmatpush1.msra.mxu0 0.0
    %1007 = vmatprep.mubr.f32.mxu0 0.0
    %1008 = vmatmul.mubr.f32.gmra.mrb[0].mxu0 %v925
    %v1009 = vpop.f32.mrb[0].mxu0
    %v1010 = vadd.f32 %v397, %v1009
    %v1011 = vpop.f32.mrb[0].mxu0
    %v1012 = vadd.f32 %v401, %v1011
    %1013 = vdwg.mxu0
    %1014 = vmatprep.subr.mxu0 0.0
    %1015 = vmatpush1.msra.mxu0 %v156
    %1016 = vmatprep.subr.mxu0 0.0
    %1017 = vmatpush1.msra.mxu0 %v159
    %1018 = vmatprep.subr.mxu0 0.0
    %1019 = vmatpush1.msra.mxu0 %v162
    %1020 = vmatprep.subr.mxu0 0.0
    %1021 = vmatpush1.msra.mxu0 %v165
    %1022 = vmatprep.subr.mxu0 0.0
    %1023 = vmatpush1.msra.mxu0 %v168
    %1024 = vmatprep.subr.mxu0 0.0
    %1025 = vmatpush1.msra.mxu0 %v171
    %1026 = vmatprep.subr.mxu0 0.0
    %1027 = vmatpush1.msra.mxu0 %v174
    %1028 = vmatprep.subr.mxu0 0.0
    %1029 = vmatpush1.msra.mxu0 %v177
    %1030 = vmatprep.subr.mxu0 0.0
    %1031 = vmatpush1.msra.mxu0 %v180
    %1032 = vmatprep.subr.mxu0 0.0
    %1033 = vmatpush1.msra.mxu0 %v183
    %1034 = vmatprep.subr.mxu0 0.0
    %1035 = vmatpush1.msra.mxu0 %v186
    %1036 = vmatprep.subr.mxu0 0.0
    %1037 = vmatpush1.msra.mxu0 %v189
    %1038 = vmatprep.subr.mxu0 0.0
    %1039 = vmatpush1.msra.mxu0 %v192
    %1040 = vmatprep.subr.mxu0 0.0
    %1041 = vmatpush1.msra.mxu0 %v195
    %1042 = vmatprep.subr.mxu0 0.0
    %1043 = vmatpush1.msra.mxu0 %v198
    %1044 = vmatprep.subr.mxu0 0.0
    %1045 = vmatpush1.msra.mxu0 %v201
    %1046 = vmatprep.subr.mxu0 0.0
    %1047 = vmatpush1.msra.mxu0 0.0
    %1048 = vmatprep.subr.mxu0 0.0
    %1049 = vmatpush1.msra.mxu0 0.0
    %1050 = vmatprep.subr.mxu0 0.0
    %1051 = vmatpush1.msra.mxu0 0.0
    %1052 = vmatprep.subr.mxu0 0.0
    %1053 = vmatpush1.msra.mxu0 0.0
    %1054 = vmatprep.subr.mxu0 0.0
    %1055 = vmatpush1.msra.mxu0 0.0
    %1056 = vmatprep.subr.mxu0 0.0
    %1057 = vmatpush1.msra.mxu0 0.0
    %1058 = vmatprep.subr.mxu0 0.0
    %1059 = vmatpush1.msra.mxu0 0.0
    %1060 = vmatprep.subr.mxu0 0.0
    %1061 = vmatpush1.msra.mxu0 0.0
    %1062 = vmatprep.subr.mxu0 0.0
    %1063 = vmatpush1.msra.mxu0 0.0
    %1064 = vmatprep.subr.mxu0 0.0
    %1065 = vmatpush1.msra.mxu0 0.0
    %1066 = vmatprep.subr.mxu0 0.0
    %1067 = vmatpush1.msra.mxu0 0.0
    %1068 = vmatprep.subr.mxu0 0.0
    %1069 = vmatpush1.msra.mxu0 0.0
    %1070 = vmatprep.subr.mxu0 0.0
    %1071 = vmatpush1.msra.mxu0 0.0
    %1072 = vmatprep.subr.mxu0 0.0
    %1073 = vmatpush1.msra.mxu0 0.0
    %1074 = vmatprep.subr.mxu0 0.0
    %1075 = vmatpush1.msra.mxu0 0.0
    %1076 = vmatprep.subr.mxu0 0.0
    %1077 = vmatpush1.msra.mxu0 0.0
    %1078 = vmatprep.mubr.f32.mxu0 0.0
    %1079 = vmatmul.mubr.f32.gmra.mrb[0].mxu0 %v925
    %v1080 = vpop.f32.mrb[0].mxu0
    %v1081 = vadd.f32 %v405, %v1080
    %v1082 = vpop.f32.mrb[0].mxu0
    %1083 = vdwg.mxu0
    %v1084 = vadd.f32 %v940, %v1010
    %v1085 = vxor.u32 %v1084, 2147483648
    %v1086 = vmul.f32 %v1085, 1.442695
    %v1087 = vpow.pop %v1086
    %v1088 = vadd.f32 %v1087, 1.0
    %v1089 = vrcp.pop %v1088
    %v1090 = vmul.f32 1.0, %v1089
    %v1091 = vadd.f32 %v941, %v1012
    %v1092 = vxor.u32 %v1091, 2147483648
    %v1093 = vmul.f32 %v1092, 1.442695
    %v1094 = vpow.pop %v1093
    %v1095 = vadd.f32 %v1094, 1.0
    %v1096 = vrcp.pop %v1095
    %v1097 = vmul.f32 1.0, %v1096
    %v1098 = vmul.f32 %v1090, %v1081
    %v1099 = vadd.f32 %v942, %v1098
    %v1100 = vtanh.pop %v1099
    %v1101 = vsub.f32 1.0, %v1097
    %v1102 = vmul.f32 %v1101, %v1100
    %v1103 = vmul.f32 %v1097, %v925
    %v1104 = vadd.f32 %v1102, %v1103
    %1105 = vst [vmem:[#allocation2 + $0x3] sm:$0x1] %v1104
    %1106 = vst [vmem:[#allocation2 + $0xa] sm:$0x2] %v1104
    %v1107 = vrot.slane %v294, 4
    %v1108 = vrot.slane %v296, 4
    %v1109 = vrot.slane %v371, 4
    %v1113 = vrot.slane %v300, 3
    %v1114 = vrot.slane %v302, 3
    %v1115 = vrot.slane %v376, 3
    %v1119 = vsel %vm389, %v1107, %v1113
    %v1120 = vsel %vm389, %v1108, %v1114
    %v1121 = vsel %vm389, %v1109, %v1115
    %1122 = vmatprep.subr.mxu0 %v155
    %1123 = vmatpush1.msra.mxu0 %v154
    %1124 = vmatprep.subr.mxu0 %v158
    %1125 = vmatpush1.msra.mxu0 %v157
    %1126 = vmatprep.subr.mxu0 %v161
    %1127 = vmatpush1.msra.mxu0 %v160
    %1128 = vmatprep.subr.mxu0 %v164
    %1129 = vmatpush1.msra.mxu0 %v163
    %1130 = vmatprep.subr.mxu0 %v167
    %1131 = vmatpush1.msra.mxu0 %v166
    %1132 = vmatprep.subr.mxu0 %v170
    %1133 = vmatpush1.msra.mxu0 %v169
    %1134 = vmatprep.subr.mxu0 %v173
    %1135 = vmatpush1.msra.mxu0 %v172
    %1136 = vmatprep.subr.mxu0 %v176
    %1137 = vmatpush1.msra.mxu0 %v175
    %1138 = vmatprep.subr.mxu0 %v179
    %1139 = vmatpush1.msra.mxu0 %v178
    %1140 = vmatprep.subr.mxu0 %v182
    %1141 = vmatpush1.msra.mxu0 %v181
    %1142 = vmatprep.subr.mxu0 %v185
    %1143 = vmatpush1.msra.mxu0 %v184
    %1144 = vmatprep.subr.mxu0 %v188
    %1145 = vmatpush1.msra.mxu0 %v187
    %1146 = vmatprep.subr.mxu0 %v191
    %1147 = vmatpush1.msra.mxu0 %v190
    %1148 = vmatprep.subr.mxu0 %v194
    %1149 = vmatpush1.msra.mxu0 %v193
    %1150 = vmatprep.subr.mxu0 %v197
    %1151 = vmatpush1.msra.mxu0 %v196
    %1152 = vmatprep.subr.mxu0 %v200
    %1153 = vmatpush1.msra.mxu0 %v199
    %1154 = vmatprep.subr.mxu0 0.0
    %1155 = vmatpush1.msra.mxu0 0.0
    %1156 = vmatprep.subr.mxu0 0.0
    %1157 = vmatpush1.msra.mxu0 0.0
    %1158 = vmatprep.subr.mxu0 0.0
    %1159 = vmatpush1.msra.mxu0 0.0
    %1160 = vmatprep.subr.mxu0 0.0
    %1161 = vmatpush1.msra.mxu0 0.0
    %1162 = vmatprep.subr.mxu0 0.0
    %1163 = vmatpush1.msra.mxu0 0.0
    %1164 = vmatprep.subr.mxu0 0.0
    %1165 = vmatpush1.msra.mxu0 0.0
    %1166 = vmatprep.subr.mxu0 0.0
    %1167 = vmatpush1.msra.mxu0 0.0
    %1168 = vmatprep.subr.mxu0 0.0
    %1169 = vmatpush1.msra.mxu0 0.0
    %1170 = vmatprep.subr.mxu0 0.0
    %1171 = vmatpush1.msra.mxu0 0.0
    %1172 = vmatprep.subr.mxu0 0.0
    %1173 = vmatpush1.msra.mxu0 0.0
    %1174 = vmatprep.subr.mxu0 0.0
    %1175 = vmatpush1.msra.mxu0 0.0
    %1176 = vmatprep.subr.mxu0 0.0
    %1177 = vmatpush1.msra.mxu0 0.0
    %1178 = vmatprep.subr.mxu0 0.0
    %1179 = vmatpush1.msra.mxu0 0.0
    %1180 = vmatprep.subr.mxu0 0.0
    %1181 = vmatpush1.msra.mxu0 0.0
    %1182 = vmatprep.subr.mxu0 0.0
    %1183 = vmatpush1.msra.mxu0 0.0
    %1184 = vmatprep.subr.mxu0 0.0
    %1185 = vmatpush1.msra.mxu0 0.0
    %1186 = vmatprep.mubr.f32.mxu0 0.0
    %1187 = vmatmul.mubr.f32.gmra.mrb[0].mxu0 %v1104
    %v1188 = vpop.f32.mrb[0].mxu0
    %v1189 = vadd.f32 %v397, %v1188
    %v1190 = vpop.f32.mrb[0].mxu0
    %v1191 = vadd.f32 %v401, %v1190
    %1192 = vdwg.mxu0
    %1193 = vmatprep.subr.mxu0 0.0
    %1194 = vmatpush1.msra.mxu0 %v156
    %1195 = vmatprep.subr.mxu0 0.0
    %1196 = vmatpush1.msra.mxu0 %v159
    %1197 = vmatprep.subr.mxu0 0.0
    %1198 = vmatpush1.msra.mxu0 %v162
    %1199 = vmatprep.subr.mxu0 0.0
    %1200 = vmatpush1.msra.mxu0 %v165
    %1201 = vmatprep.subr.mxu0 0.0
    %1202 = vmatpush1.msra.mxu0 %v168
    %1203 = vmatprep.subr.mxu0 0.0
    %1204 = vmatpush1.msra.mxu0 %v171
    %1205 = vmatprep.subr.mxu0 0.0
    %1206 = vmatpush1.msra.mxu0 %v174
    %1207 = vmatprep.subr.mxu0 0.0
    %1208 = vmatpush1.msra.mxu0 %v177
    %1209 = vmatprep.subr.mxu0 0.0
    %1210 = vmatpush1.msra.mxu0 %v180
    %1211 = vmatprep.subr.mxu0 0.0
    %1212 = vmatpush1.msra.mxu0 %v183
    %1213 = vmatprep.subr.mxu0 0.0
    %1214 = vmatpush1.msra.mxu0 %v186
    %1215 = vmatprep.subr.mxu0 0.0
    %1216 = vmatpush1.msra.mxu0 %v189
    %1217 = vmatprep.subr.mxu0 0.0
    %1218 = vmatpush1.msra.mxu0 %v192
    %1219 = vmatprep.subr.mxu0 0.0
    %1220 = vmatpush1.msra.mxu0 %v195
    %1221 = vmatprep.subr.mxu0 0.0
    %1222 = vmatpush1.msra.mxu0 %v198
    %1223 = vmatprep.subr.mxu0 0.0
    %1224 = vmatpush1.msra.mxu0 %v201
    %1225 = vmatprep.subr.mxu0 0.0
    %1226 = vmatpush1.msra.mxu0 0.0
    %1227 = vmatprep.subr.mxu0 0.0
    %1228 = vmatpush1.msra.mxu0 0.0
    %1229 = vmatprep.subr.mxu0 0.0
    %1230 = vmatpush1.msra.mxu0 0.0
    %1231 = vmatprep.subr.mxu0 0.0
    %1232 = vmatpush1.msra.mxu0 0.0
    %1233 = vmatprep.subr.mxu0 0.0
    %1234 = vmatpush1.msra.mxu0 0.0
    %1235 = vmatprep.subr.mxu0 0.0
    %1236 = vmatpush1.msra.mxu0 0.0
    %1237 = vmatprep.subr.mxu0 0.0
    %1238 = vmatpush1.msra.mxu0 0.0
    %1239 = vmatprep.subr.mxu0 0.0
    %1240 = vmatpush1.msra.mxu0 0.0
    %1241 = vmatprep.subr.mxu0 0.0
    %1242 = vmatpush1.msra.mxu0 0.0
    %1243 = vmatprep.subr.mxu0 0.0
    %1244 = vmatpush1.msra.mxu0 0.0
    %1245 = vmatprep.subr.mxu0 0.0
    %1246 = vmatpush1.msra.mxu0 0.0
    %1247 = vmatprep.subr.mxu0 0.0
    %1248 = vmatpush1.msra.mxu0 0.0
    %1249 = vmatprep.subr.mxu0 0.0
    %1250 = vmatpush1.msra.mxu0 0.0
    %1251 = vmatprep.subr.mxu0 0.0
    %1252 = vmatpush1.msra.mxu0 0.0
    %1253 = vmatprep.subr.mxu0 0.0
    %1254 = vmatpush1.msra.mxu0 0.0
    %1255 = vmatprep.subr.mxu0 0.0
    %1256 = vmatpush1.msra.mxu0 0.0
    %1257 = vmatprep.mubr.f32.mxu0 0.0
    %1258 = vmatmul.mubr.f32.gmra.mrb[0].mxu0 %v1104
    %v1259 = vpop.f32.mrb[0].mxu0
    %v1260 = vadd.f32 %v405, %v1259
    %v1261 = vpop.f32.mrb[0].mxu0
    %1262 = vdwg.mxu0
    %v1263 = vadd.f32 %v1119, %v1189
    %v1264 = vxor.u32 %v1263, 2147483648
    %v1265 = vmul.f32 %v1264, 1.442695
    %v1266 = vpow.pop %v1265
    %v1267 = vadd.f32 %v1266, 1.0
    %v1268 = vrcp.pop %v1267
    %v1269 = vmul.f32 1.0, %v1268
    %v1270 = vadd.f32 %v1120, %v1191
    %v1271 = vxor.u32 %v1270, 2147483648
    %v1272 = vmul.f32 %v1271, 1.442695
    %v1273 = vpow.pop %v1272
    %v1274 = vadd.f32 %v1273, 1.0
    %v1275 = vrcp.pop %v1274
    %v1276 = vmul.f32 1.0, %v1275
    %v1277 = vmul.f32 %v1269, %v1260
    %v1278 = vadd.f32 %v1121, %v1277
    %v1279 = vtanh.pop %v1278
    %v1280 = vsub.f32 1.0, %v1276
    %v1281 = vmul.f32 %v1280, %v1279
    %v1282 = vmul.f32 %v1276, %v1104
    %v1283 = vadd.f32 %v1281, %v1282
    %1284 = vst [vmem:[#allocation2 + $0x4] sm:$0x1] %v1283
    %1285 = vst [vmem:[#allocation2 + $0xb] sm:$0x2] %v1283
    %v1286 = vrot.slane %v294, 5
    %v1287 = vrot.slane %v296, 5
    %v1288 = vrot.slane %v371, 5
    %v1292 = vrot.slane %v300, 4
    %v1293 = vrot.slane %v302, 4
    %v1294 = vrot.slane %v376, 4
    %v1298 = vsel %vm389, %v1286, %v1292
    %v1299 = vsel %vm389, %v1287, %v1293
    %v1300 = vsel %vm389, %v1288, %v1294
    %1301 = vmatprep.subr.mxu0 %v155
    %1302 = vmatpush1.msra.mxu0 %v154
    %1303 = vmatprep.subr.mxu0 %v158
    %1304 = vmatpush1.msra.mxu0 %v157
    %1305 = vmatprep.subr.mxu0 %v161
    %1306 = vmatpush1.msra.mxu0 %v160
    %1307 = vmatprep.subr.mxu0 %v164
    %1308 = vmatpush1.msra.mxu0 %v163
    %1309 = vmatprep.subr.mxu0 %v167
    %1310 = vmatpush1.msra.mxu0 %v166
    %1311 = vmatprep.subr.mxu0 %v170
    %1312 = vmatpush1.msra.mxu0 %v169
    %1313 = vmatprep.subr.mxu0 %v173
    %1314 = vmatpush1.msra.mxu0 %v172
    %1315 = vmatprep.subr.mxu0 %v176
    %1316 = vmatpush1.msra.mxu0 %v175
    %1317 = vmatprep.subr.mxu0 %v179
    %1318 = vmatpush1.msra.mxu0 %v178
    %1319 = vmatprep.subr.mxu0 %v182
    %1320 = vmatpush1.msra.mxu0 %v181
    %1321 = vmatprep.subr.mxu0 %v185
    %1322 = vmatpush1.msra.mxu0 %v184
    %1323 = vmatprep.subr.mxu0 %v188
    %1324 = vmatpush1.msra.mxu0 %v187
    %1325 = vmatprep.subr.mxu0 %v191
    %1326 = vmatpush1.msra.mxu0 %v190
    %1327 = vmatprep.subr.mxu0 %v194
    %1328 = vmatpush1.msra.mxu0 %v193
    %1329 = vmatprep.subr.mxu0 %v197
    %1330 = vmatpush1.msra.mxu0 %v196
    %1331 = vmatprep.subr.mxu0 %v200
    %1332 = vmatpush1.msra.mxu0 %v199
    %1333 = vmatprep.subr.mxu0 0.0
    %1334 = vmatpush1.msra.mxu0 0.0
    %1335 = vmatprep.subr.mxu0 0.0
    %1336 = vmatpush1.msra.mxu0 0.0
    %1337 = vmatprep.subr.mxu0 0.0
    %1338 = vmatpush1.msra.mxu0 0.0
    %1339 = vmatprep.subr.mxu0 0.0
    %1340 = vmatpush1.msra.mxu0 0.0
    %1341 = vmatprep.subr.mxu0 0.0
    %1342 = vmatpush1.msra.mxu0 0.0
    %1343 = vmatprep.subr.mxu0 0.0
    %1344 = vmatpush1.msra.mxu0 0.0
    %1345 = vmatprep.subr.mxu0 0.0
    %1346 = vmatpush1.msra.mxu0 0.0
    %1347 = vmatprep.subr.mxu0 0.0
    %1348 = vmatpush1.msra.mxu0 0.0
    %1349 = vmatprep.subr.mxu0 0.0
    %1350 = vmatpush1.msra.mxu0 0.0
    %1351 = vmatprep.subr.mxu0 0.0
    %1352 = vmatpush1.msra.mxu0 0.0
    %1353 = vmatprep.subr.mxu0 0.0
    %1354 = vmatpush1.msra.mxu0 0.0
    %1355 = vmatprep.subr.mxu0 0.0
    %1356 = vmatpush1.msra.mxu0 0.0
    %1357 = vmatprep.subr.mxu0 0.0
    %1358 = vmatpush1.msra.mxu0 0.0
    %1359 = vmatprep.subr.mxu0 0.0
    %1360 = vmatpush1.msra.mxu0 0.0
    %1361 = vmatprep.subr.mxu0 0.0
    %1362 = vmatpush1.msra.mxu0 0.0
    %1363 = vmatprep.subr.mxu0 0.0
    %1364 = vmatpush1.msra.mxu0 0.0
    %1365 = vmatprep.mubr.f32.mxu0 0.0
    %1366 = vmatmul.mubr.f32.gmra.mrb[0].mxu0 %v1283
    %v1367 = vpop.f32.mrb[0].mxu0
    %v1368 = vadd.f32 %v397, %v1367
    %v1369 = vpop.f32.mrb[0].mxu0
    %v1370 = vadd.f32 %v401, %v1369
    %1371 = vdwg.mxu0
    %1372 = vmatprep.subr.mxu0 0.0
    %1373 = vmatpush1.msra.mxu0 %v156
    %1374 = vmatprep.subr.mxu0 0.0
    %1375 = vmatpush1.msra.mxu0 %v159
    %1376 = vmatprep.subr.mxu0 0.0
    %1377 = vmatpush1.msra.mxu0 %v162
    %1378 = vmatprep.subr.mxu0 0.0
    %1379 = vmatpush1.msra.mxu0 %v165
    %1380 = vmatprep.subr.mxu0 0.0
    %1381 = vmatpush1.msra.mxu0 %v168
    %1382 = vmatprep.subr.mxu0 0.0
    %1383 = vmatpush1.msra.mxu0 %v171
    %1384 = vmatprep.subr.mxu0 0.0
    %1385 = vmatpush1.msra.mxu0 %v174
    %1386 = vmatprep.subr.mxu0 0.0
    %1387 = vmatpush1.msra.mxu0 %v177
    %1388 = vmatprep.subr.mxu0 0.0
    %1389 = vmatpush1.msra.mxu0 %v180
    %1390 = vmatprep.subr.mxu0 0.0
    %1391 = vmatpush1.msra.mxu0 %v183
    %1392 = vmatprep.subr.mxu0 0.0
    %1393 = vmatpush1.msra.mxu0 %v186
    %1394 = vmatprep.subr.mxu0 0.0
    %1395 = vmatpush1.msra.mxu0 %v189
    %1396 = vmatprep.subr.mxu0 0.0
    %1397 = vmatpush1.msra.mxu0 %v192
    %1398 = vmatprep.subr.mxu0 0.0
    %1399 = vmatpush1.msra.mxu0 %v195
    %1400 = vmatprep.subr.mxu0 0.0
    %1401 = vmatpush1.msra.mxu0 %v198
    %1402 = vmatprep.subr.mxu0 0.0
    %1403 = vmatpush1.msra.mxu0 %v201
    %1404 = vmatprep.subr.mxu0 0.0
    %1405 = vmatpush1.msra.mxu0 0.0
    %1406 = vmatprep.subr.mxu0 0.0
    %1407 = vmatpush1.msra.mxu0 0.0
    %1408 = vmatprep.subr.mxu0 0.0
    %1409 = vmatpush1.msra.mxu0 0.0
    %1410 = vmatprep.subr.mxu0 0.0
    %1411 = vmatpush1.msra.mxu0 0.0
    %1412 = vmatprep.subr.mxu0 0.0
    %1413 = vmatpush1.msra.mxu0 0.0
    %1414 = vmatprep.subr.mxu0 0.0
    %1415 = vmatpush1.msra.mxu0 0.0
    %1416 = vmatprep.subr.mxu0 0.0
    %1417 = vmatpush1.msra.mxu0 0.0
    %1418 = vmatprep.subr.mxu0 0.0
    %1419 = vmatpush1.msra.mxu0 0.0
    %1420 = vmatprep.subr.mxu0 0.0
    %1421 = vmatpush1.msra.mxu0 0.0
    %1422 = vmatprep.subr.mxu0 0.0
    %1423 = vmatpush1.msra.mxu0 0.0
    %1424 = vmatprep.subr.mxu0 0.0
    %1425 = vmatpush1.msra.mxu0 0.0
    %1426 = vmatprep.subr.mxu0 0.0
    %1427 = vmatpush1.msra.mxu0 0.0
    %1428 = vmatprep.subr.mxu0 0.0
    %1429 = vmatpush1.msra.mxu0 0.0
    %1430 = vmatprep.subr.mxu0 0.0
    %1431 = vmatpush1.msra.mxu0 0.0
    %1432 = vmatprep.subr.mxu0 0.0
    %1433 = vmatpush1.msra.mxu0 0.0
    %1434 = vmatprep.subr.mxu0 0.0
    %1435 = vmatpush1.msra.mxu0 0.0
    %1436 = vmatprep.mubr.f32.mxu0 0.0
    %1437 = vmatmul.mubr.f32.gmra.mrb[0].mxu0 %v1283
    %v1438 = vpop.f32.mrb[0].mxu0
    %v1439 = vadd.f32 %v405, %v1438
    %v1440 = vpop.f32.mrb[0].mxu0
    %1441 = vdwg.mxu0
    %v1442 = vadd.f32 %v1298, %v1368
    %v1443 = vxor.u32 %v1442, 2147483648
    %v1444 = vmul.f32 %v1443, 1.442695
    %v1445 = vpow.pop %v1444
    %v1446 = vadd.f32 %v1445, 1.0
    %v1447 = vrcp.pop %v1446
    %v1448 = vmul.f32 1.0, %v1447
    %v1449 = vadd.f32 %v1299, %v1370
    %v1450 = vxor.u32 %v1449, 2147483648
    %v1451 = vmul.f32 %v1450, 1.442695
    %v1452 = vpow.pop %v1451
    %v1453 = vadd.f32 %v1452, 1.0
    %v1454 = vrcp.pop %v1453
    %v1455 = vmul.f32 1.0, %v1454
    %v1456 = vmul.f32 %v1448, %v1439
    %v1457 = vadd.f32 %v1300, %v1456
    %v1458 = vtanh.pop %v1457
    %v1459 = vsub.f32 1.0, %v1455
    %v1460 = vmul.f32 %v1459, %v1458
    %v1461 = vmul.f32 %v1455, %v1283
    %v1462 = vadd.f32 %v1460, %v1461
    %1463 = vst [vmem:[#allocation2 + $0x5] sm:$0x1] %v1462
    %1464 = vst [vmem:[#allocation2 + $0xc] sm:$0x2] %v1462
    %v1465 = vrot.slane %v294, 6
    %v1466 = vrot.slane %v296, 6
    %v1467 = vrot.slane %v371, 6
    %v1471 = vrot.slane %v300, 5
    %v1472 = vrot.slane %v302, 5
    %v1473 = vrot.slane %v376, 5
    %v1477 = vsel %vm389, %v1465, %v1471
    %v1478 = vsel %vm389, %v1466, %v1472
    %v1479 = vsel %vm389, %v1467, %v1473
    %1480 = vmatprep.subr.mxu0 %v155
    %1481 = vmatpush1.msra.mxu0 %v154
    %1482 = vmatprep.subr.mxu0 %v158
    %1483 = vmatpush1.msra.mxu0 %v157
    %1484 = vmatprep.subr.mxu0 %v161
    %1485 = vmatpush1.msra.mxu0 %v160
    %1486 = vmatprep.subr.mxu0 %v164
    %1487 = vmatpush1.msra.mxu0 %v163
    %1488 = vmatprep.subr.mxu0 %v167
    %1489 = vmatpush1.msra.mxu0 %v166
    %1490 = vmatprep.subr.mxu0 %v170
    %1491 = vmatpush1.msra.mxu0 %v169
    %1492 = vmatprep.subr.mxu0 %v173
    %1493 = vmatpush1.msra.mxu0 %v172
    %1494 = vmatprep.subr.mxu0 %v176
    %1495 = vmatpush1.msra.mxu0 %v175
    %1496 = vmatprep.subr.mxu0 %v179
    %1497 = vmatpush1.msra.mxu0 %v178
    %1498 = vmatprep.subr.mxu0 %v182
    %1499 = vmatpush1.msra.mxu0 %v181
    %1500 = vmatprep.subr.mxu0 %v185
    %1501 = vmatpush1.msra.mxu0 %v184
    %1502 = vmatprep.subr.mxu0 %v188
    %1503 = vmatpush1.msra.mxu0 %v187
    %1504 = vmatprep.subr.mxu0 %v191
    %1505 = vmatpush1.msra.mxu0 %v190
    %1506 = vmatprep.subr.mxu0 %v194
    %1507 = vmatpush1.msra.mxu0 %v193
    %1508 = vmatprep.subr.mxu0 %v197
    %1509 = vmatpush1.msra.mxu0 %v196
    %1510 = vmatprep.subr.mxu0 %v200
    %1511 = vmatpush1.msra.mxu0 %v199
    %1512 = vmatprep.subr.mxu0 0.0
    %1513 = vmatpush1.msra.mxu0 0.0
    %1514 = vmatprep.subr.mxu0 0.0
    %1515 = vmatpush1.msra.mxu0 0.0
    %1516 = vmatprep.subr.mxu0 0.0
    %1517 = vmatpush1.msra.mxu0 0.0
    %1518 = vmatprep.subr.mxu0 0.0
    %1519 = vmatpush1.msra.mxu0 0.0
    %1520 = vmatprep.subr.mxu0 0.0
    %1521 = vmatpush1.msra.mxu0 0.0
    %1522 = vmatprep.subr.mxu0 0.0
    %1523 = vmatpush1.msra.mxu0 0.0
    %1524 = vmatprep.subr.mxu0 0.0
    %1525 = vmatpush1.msra.mxu0 0.0
    %1526 = vmatprep.subr.mxu0 0.0
    %1527 = vmatpush1.msra.mxu0 0.0
    %1528 = vmatprep.subr.mxu0 0.0
    %1529 = vmatpush1.msra.mxu0 0.0
    %1530 = vmatprep.subr.mxu0 0.0
    %1531 = vmatpush1.msra.mxu0 0.0
    %1532 = vmatprep.subr.mxu0 0.0
    %1533 = vmatpush1.msra.mxu0 0.0
    %1534 = vmatprep.subr.mxu0 0.0
    %1535 = vmatpush1.msra.mxu0 0.0
    %1536 = vmatprep.subr.mxu0 0.0
    %1537 = vmatpush1.msra.mxu0 0.0
    %1538 = vmatprep.subr.mxu0 0.0
    %1539 = vmatpush1.msra.mxu0 0.0
    %1540 = vmatprep.subr.mxu0 0.0
    %1541 = vmatpush1.msra.mxu0 0.0
    %1542 = vmatprep.subr.mxu0 0.0
    %1543 = vmatpush1.msra.mxu0 0.0
    %1544 = vmatprep.mubr.f32.mxu0 0.0
    %1545 = vmatmul.mubr.f32.gmra.mrb[0].mxu0 %v1462
    %v1546 = vpop.f32.mrb[0].mxu0
    %v1547 = vadd.f32 %v397, %v1546
    %v1548 = vpop.f32.mrb[0].mxu0
    %v1549 = vadd.f32 %v401, %v1548
    %1550 = vdwg.mxu0
    %1551 = vmatprep.subr.mxu0 0.0
    %1552 = vmatpush1.msra.mxu0 %v156
    %1553 = vmatprep.subr.mxu0 0.0
    %1554 = vmatpush1.msra.mxu0 %v159
    %1555 = vmatprep.subr.mxu0 0.0
    %1556 = vmatpush1.msra.mxu0 %v162
    %1557 = vmatprep.subr.mxu0 0.0
    %1558 = vmatpush1.msra.mxu0 %v165
    %1559 = vmatprep.subr.mxu0 0.0
    %1560 = vmatpush1.msra.mxu0 %v168
    %1561 = vmatprep.subr.mxu0 0.0
    %1562 = vmatpush1.msra.mxu0 %v171
    %1563 = vmatprep.subr.mxu0 0.0
    %1564 = vmatpush1.msra.mxu0 %v174
    %1565 = vmatprep.subr.mxu0 0.0
    %1566 = vmatpush1.msra.mxu0 %v177
    %1567 = vmatprep.subr.mxu0 0.0
    %1568 = vmatpush1.msra.mxu0 %v180
    %1569 = vmatprep.subr.mxu0 0.0
    %1570 = vmatpush1.msra.mxu0 %v183
    %1571 = vmatprep.subr.mxu0 0.0
    %1572 = vmatpush1.msra.mxu0 %v186
    %1573 = vmatprep.subr.mxu0 0.0
    %1574 = vmatpush1.msra.mxu0 %v189
    %1575 = vmatprep.subr.mxu0 0.0
    %1576 = vmatpush1.msra.mxu0 %v192
    %1577 = vmatprep.subr.mxu0 0.0
    %1578 = vmatpush1.msra.mxu0 %v195
    %1579 = vmatprep.subr.mxu0 0.0
    %1580 = vmatpush1.msra.mxu0 %v198
    %1581 = vmatprep.subr.mxu0 0.0
    %1582 = vmatpush1.msra.mxu0 %v201
    %1583 = vmatprep.subr.mxu0 0.0
    %1584 = vmatpush1.msra.mxu0 0.0
    %1585 = vmatprep.subr.mxu0 0.0
    %1586 = vmatpush1.msra.mxu0 0.0
    %1587 = vmatprep.subr.mxu0 0.0
    %1588 = vmatpush1.msra.mxu0 0.0
    %1589 = vmatprep.subr.mxu0 0.0
    %1590 = vmatpush1.msra.mxu0 0.0
    %1591 = vmatprep.subr.mxu0 0.0
    %1592 = vmatpush1.msra.mxu0 0.0
    %1593 = vmatprep.subr.mxu0 0.0
    %1594 = vmatpush1.msra.mxu0 0.0
    %1595 = vmatprep.subr.mxu0 0.0
    %1596 = vmatpush1.msra.mxu0 0.0
    %1597 = vmatprep.subr.mxu0 0.0
    %1598 = vmatpush1.msra.mxu0 0.0
    %1599 = vmatprep.subr.mxu0 0.0
    %1600 = vmatpush1.msra.mxu0 0.0
    %1601 = vmatprep.subr.mxu0 0.0
    %1602 = vmatpush1.msra.mxu0 0.0
    %1603 = vmatprep.subr.mxu0 0.0
    %1604 = vmatpush1.msra.mxu0 0.0
    %1605 = vmatprep.subr.mxu0 0.0
    %1606 = vmatpush1.msra.mxu0 0.0
    %1607 = vmatprep.subr.mxu0 0.0
    %1608 = vmatpush1.msra.mxu0 0.0
    %1609 = vmatprep.subr.mxu0 0.0
    %1610 = vmatpush1.msra.mxu0 0.0
    %1611 = vmatprep.subr.mxu0 0.0
    %1612 = vmatpush1.msra.mxu0 0.0
    %1613 = vmatprep.subr.mxu0 0.0
    %1614 = vmatpush1.msra.mxu0 0.0
    %1615 = vmatprep.mubr.f32.mxu0 0.0
    %1616 = vmatmul.mubr.f32.gmra.mrb[0].mxu0 %v1462
    %v1617 = vpop.f32.mrb[0].mxu0
    %v1618 = vadd.f32 %v405, %v1617
    %v1619 = vpop.f32.mrb[0].mxu0
    %1620 = vdwg.mxu0
    %v1621 = vadd.f32 %v1477, %v1547
    %v1622 = vxor.u32 %v1621, 2147483648
    %v1623 = vmul.f32 %v1622, 1.442695
    %v1624 = vpow.pop %v1623
    %v1625 = vadd.f32 %v1624, 1.0
    %v1626 = vrcp.pop %v1625
    %v1627 = vmul.f32 1.0, %v1626
    %v1628 = vadd.f32 %v1478, %v1549
    %v1629 = vxor.u32 %v1628, 2147483648
    %v1630 = vmul.f32 %v1629, 1.442695
    %v1631 = vpow.pop %v1630
    %v1632 = vadd.f32 %v1631, 1.0
    %v1633 = vrcp.pop %v1632
    %v1634 = vmul.f32 1.0, %v1633
    %v1635 = vmul.f32 %v1627, %v1618
    %v1636 = vadd.f32 %v1479, %v1635
    %v1637 = vtanh.pop %v1636
    %v1638 = vsub.f32 1.0, %v1634
    %v1639 = vmul.f32 %v1638, %v1637
    %v1640 = vmul.f32 %v1634, %v1462
    %v1641 = vadd.f32 %v1639, %v1640
    %1642 = vst [vmem:[#allocation2 + $0x6] sm:$0x1] %v1641
    %1643 = vst [vmem:[#allocation2 + $0xd] sm:$0x2] %v1641
    %v1644 = vrot.slane %v294, 7
    %v1645 = vrot.slane %v296, 7
    %v1646 = vrot.slane %v371, 7
    %v1650 = vrot.slane %v300, 6
    %v1651 = vrot.slane %v302, 6
    %v1652 = vrot.slane %v376, 6
    %v1656 = vsel %vm389, %v1644, %v1650
    %v1657 = vsel %vm389, %v1645, %v1651
    %v1658 = vsel %vm389, %v1646, %v1652
    %1659 = vmatprep.subr.mxu0 %v155
    %1660 = vmatpush1.msra.mxu0 %v154
    %1661 = vmatprep.subr.mxu0 %v158
    %1662 = vmatpush1.msra.mxu0 %v157
    %1663 = vmatprep.subr.mxu0 %v161
    %1664 = vmatpush1.msra.mxu0 %v160
    %1665 = vmatprep.subr.mxu0 %v164
    %1666 = vmatpush1.msra.mxu0 %v163
    %1667 = vmatprep.subr.mxu0 %v167
    %1668 = vmatpush1.msra.mxu0 %v166
    %1669 = vmatprep.subr.mxu0 %v170
    %1670 = vmatpush1.msra.mxu0 %v169
    %1671 = vmatprep.subr.mxu0 %v173
    %1672 = vmatpush1.msra.mxu0 %v172
    %1673 = vmatprep.subr.mxu0 %v176
    %1674 = vmatpush1.msra.mxu0 %v175
    %1675 = vmatprep.subr.mxu0 %v179
    %1676 = vmatpush1.msra.mxu0 %v178
    %1677 = vmatprep.subr.mxu0 %v182
    %1678 = vmatpush1.msra.mxu0 %v181
    %1679 = vmatprep.subr.mxu0 %v185
    %1680 = vmatpush1.msra.mxu0 %v184
    %1681 = vmatprep.subr.mxu0 %v188
    %1682 = vmatpush1.msra.mxu0 %v187
    %1683 = vmatprep.subr.mxu0 %v191
    %1684 = vmatpush1.msra.mxu0 %v190
    %1685 = vmatprep.subr.mxu0 %v194
    %1686 = vmatpush1.msra.mxu0 %v193
    %1687 = vmatprep.subr.mxu0 %v197
    %1688 = vmatpush1.msra.mxu0 %v196
    %1689 = vmatprep.subr.mxu0 %v200
    %1690 = vmatpush1.msra.mxu0 %v199
    %1691 = vmatprep.subr.mxu0 0.0
    %1692 = vmatpush1.msra.mxu0 0.0
    %1693 = vmatprep.subr.mxu0 0.0
    %1694 = vmatpush1.msra.mxu0 0.0
    %1695 = vmatprep.subr.mxu0 0.0
    %1696 = vmatpush1.msra.mxu0 0.0
    %1697 = vmatprep.subr.mxu0 0.0
    %1698 = vmatpush1.msra.mxu0 0.0
    %1699 = vmatprep.subr.mxu0 0.0
    %1700 = vmatpush1.msra.mxu0 0.0
    %1701 = vmatprep.subr.mxu0 0.0
    %1702 = vmatpush1.msra.mxu0 0.0
    %1703 = vmatprep.subr.mxu0 0.0
    %1704 = vmatpush1.msra.mxu0 0.0
    %1705 = vmatprep.subr.mxu0 0.0
    %1706 = vmatpush1.msra.mxu0 0.0
    %1707 = vmatprep.subr.mxu0 0.0
    %1708 = vmatpush1.msra.mxu0 0.0
    %1709 = vmatprep.subr.mxu0 0.0
    %1710 = vmatpush1.msra.mxu0 0.0
    %1711 = vmatprep.subr.mxu0 0.0
    %1712 = vmatpush1.msra.mxu0 0.0
    %1713 = vmatprep.subr.mxu0 0.0
    %1714 = vmatpush1.msra.mxu0 0.0
    %1715 = vmatprep.subr.mxu0 0.0
    %1716 = vmatpush1.msra.mxu0 0.0
    %1717 = vmatprep.subr.mxu0 0.0
    %1718 = vmatpush1.msra.mxu0 0.0
    %1719 = vmatprep.subr.mxu0 0.0
    %1720 = vmatpush1.msra.mxu0 0.0
    %1721 = vmatprep.subr.mxu0 0.0
    %1722 = vmatpush1.msra.mxu0 0.0
    %1723 = vmatprep.mubr.f32.mxu0 0.0
    %1724 = vmatmul.mubr.f32.gmra.mrb[0].mxu0 %v1641
    %v1725 = vpop.f32.mrb[0].mxu0
    %v1726 = vadd.f32 %v397, %v1725
    %v1727 = vpop.f32.mrb[0].mxu0
    %v1728 = vadd.f32 %v401, %v1727
    %1729 = vdwg.mxu0
    %1730 = vmatprep.subr.mxu0 0.0
    %1731 = vmatpush1.msra.mxu0 %v156
    %1732 = vmatprep.subr.mxu0 0.0
    %1733 = vmatpush1.msra.mxu0 %v159
    %1734 = vmatprep.subr.mxu0 0.0
    %1735 = vmatpush1.msra.mxu0 %v162
    %1736 = vmatprep.subr.mxu0 0.0
    %1737 = vmatpush1.msra.mxu0 %v165
    %1738 = vmatprep.subr.mxu0 0.0
    %1739 = vmatpush1.msra.mxu0 %v168
    %1740 = vmatprep.subr.mxu0 0.0
    %1741 = vmatpush1.msra.mxu0 %v171
    %1742 = vmatprep.subr.mxu0 0.0
    %1743 = vmatpush1.msra.mxu0 %v174
    %1744 = vmatprep.subr.mxu0 0.0
    %1745 = vmatpush1.msra.mxu0 %v177
    %1746 = vmatprep.subr.mxu0 0.0
    %1747 = vmatpush1.msra.mxu0 %v180
    %1748 = vmatprep.subr.mxu0 0.0
    %1749 = vmatpush1.msra.mxu0 %v183
    %1750 = vmatprep.subr.mxu0 0.0
    %1751 = vmatpush1.msra.mxu0 %v186
    %1752 = vmatprep.subr.mxu0 0.0
    %1753 = vmatpush1.msra.mxu0 %v189
    %1754 = vmatprep.subr.mxu0 0.0
    %1755 = vmatpush1.msra.mxu0 %v192
    %1756 = vmatprep.subr.mxu0 0.0
    %1757 = vmatpush1.msra.mxu0 %v195
    %1758 = vmatprep.subr.mxu0 0.0
    %1759 = vmatpush1.msra.mxu0 %v198
    %1760 = vmatprep.subr.mxu0 0.0
    %1761 = vmatpush1.msra.mxu0 %v201
    %1762 = vmatprep.subr.mxu0 0.0
    %1763 = vmatpush1.msra.mxu0 0.0
    %1764 = vmatprep.subr.mxu0 0.0
    %1765 = vmatpush1.msra.mxu0 0.0
    %1766 = vmatprep.subr.mxu0 0.0
    %1767 = vmatpush1.msra.mxu0 0.0
    %1768 = vmatprep.subr.mxu0 0.0
    %1769 = vmatpush1.msra.mxu0 0.0
    %1770 = vmatprep.subr.mxu0 0.0
    %1771 = vmatpush1.msra.mxu0 0.0
    %1772 = vmatprep.subr.mxu0 0.0
    %1773 = vmatpush1.msra.mxu0 0.0
    %1774 = vmatprep.subr.mxu0 0.0
    %1775 = vmatpush1.msra.mxu0 0.0
    %1776 = vmatprep.subr.mxu0 0.0
    %1777 = vmatpush1.msra.mxu0 0.0
    %1778 = vmatprep.subr.mxu0 0.0
    %1779 = vmatpush1.msra.mxu0 0.0
    %1780 = vmatprep.subr.mxu0 0.0
    %1781 = vmatpush1.msra.mxu0 0.0
    %1782 = vmatprep.subr.mxu0 0.0
    %1783 = vmatpush1.msra.mxu0 0.0
    %1784 = vmatprep.subr.mxu0 0.0
    %1785 = vmatpush1.msra.mxu0 0.0
    %1786 = vmatprep.subr.mxu0 0.0
    %1787 = vmatpush1.msra.mxu0 0.0
    %1788 = vmatprep.subr.mxu0 0.0
    %1789 = vmatpush1.msra.mxu0 0.0
    %1790 = vmatprep.subr.mxu0 0.0
    %1791 = vmatpush1.msra.mxu0 0.0
    %1792 = vmatprep.subr.mxu0 0.0
    %1793 = vmatpush1.msra.mxu0 0.0
    %1794 = vmatprep.mubr.f32.mxu0 0.0
    %1795 = vmatmul.mubr.f32.gmra.mrb[0].mxu0 %v1641
    %v1796 = vpop.f32.mrb[0].mxu0
    %v1797 = vadd.f32 %v405, %v1796
    %v1798 = vpop.f32.mrb[0].mxu0
    %1799 = vdwg.mxu0
    %v1800 = vadd.f32 %v1656, %v1726
    %v1801 = vxor.u32 %v1800, 2147483648
    %v1802 = vmul.f32 %v1801, 1.442695
    %v1803 = vpow.pop %v1802
    %v1804 = vadd.f32 %v1803, 1.0
    %v1805 = vrcp.pop %v1804
    %v1806 = vmul.f32 1.0, %v1805
    %v1807 = vadd.f32 %v1657, %v1728
    %v1808 = vxor.u32 %v1807, 2147483648
    %v1809 = vmul.f32 %v1808, 1.442695
    %v1810 = vpow.pop %v1809
    %v1811 = vadd.f32 %v1810, 1.0
    %v1812 = vrcp.pop %v1811
    %v1813 = vmul.f32 1.0, %v1812
    %v1814 = vmul.f32 %v1806, %v1797
    %v1815 = vadd.f32 %v1658, %v1814
    %v1816 = vtanh.pop %v1815
    %v1817 = vsub.f32 1.0, %v1813
    %v1818 = vmul.f32 %v1817, %v1816
    %v1819 = vmul.f32 %v1813, %v1641
    %v1820 = vadd.f32 %v1818, %v1819
    %1821 = vst [vmem:[#allocation2 + $0x7] sm:$0x1] %v1820
    %1822 = vst [vmem:[#allocation2 + $0xe] sm:$0x2] %v1820
    %1823 = vst [vmem:[#allocation16] sm:$0x3] %v1820
    %v1824 = vld [vmem:[#allocation2] sm:$0xff]
    %v1825 = vld [vmem:[#allocation2 + $0x8] sm:$0xff]
    %v1826 = vld [vmem:[#allocation11] sm:$0xff]
    %v1827 = vld [vmem:[#allocation11 + $0x8] sm:$0xff]
    %v1828 = vld [vmem:[#allocation11 + $0x10] sm:$0xff]
    %v1829 = vld [vmem:[#allocation11 + $0x18] sm:$0xff]
    %v1830 = vld [vmem:[#allocation11 + $0x20] sm:$0xff]
    %v1831 = vld [vmem:[#allocation11 + $0x28] sm:$0xff]
    %v1832 = vld [vmem:[#allocation11 + $0x30] sm:$0xff]
    %v1833 = vld [vmem:[#allocation11 + $0x38] sm:$0xff]
    %v1834 = vld [vmem:[#allocation11 + $0x40] sm:$0xff]
    %v1835 = vld [vmem:[#allocation11 + $0x48] sm:$0xff]
    %v1836 = vld [vmem:[#allocation11 + $0x50] sm:$0xff]
    %v1837 = vld [vmem:[#allocation11 + $0x58] sm:$0xff]
    %v1838 = vld [vmem:[#allocation11 + $0x60] sm:$0xff]
    %v1839 = vld [vmem:[#allocation11 + $0x68] sm:$0xff]
    %v1840 = vld [vmem:[#allocation11 + $0x70] sm:$0xff]
    %v1841 = vld [vmem:[#allocation11 + $0x78] sm:$0xff]
    %v1842 = vld [vmem:[#allocation11 + $0x80] sm:$0xff]
    %v1843 = vld [vmem:[#allocation11 + $0x88] sm:$0xff]
    %v1844 = vld [vmem:[#allocation11 + $0x90] sm:$0xff]
    %v1845 = vld [vmem:[#allocation11 + $0x98] sm:$0xff]
    %v1846 = vld [vmem:[#allocation11 + $0xa0] sm:$0xff]
    %v1847 = vld [vmem:[#allocation11 + $0xa8] sm:$0xff]
    %v1848 = vld [vmem:[#allocation11 + $0xb0] sm:$0xff]
    %v1849 = vld [vmem:[#allocation11 + $0xb8] sm:$0xff]
    %v1850 = vld [vmem:[#allocation11 + $0xc0] sm:$0xff]
    %v1851 = vld [vmem:[#allocation11 + $0xc8] sm:$0xff]
    %v1852 = vld [vmem:[#allocation11 + $0xd0] sm:$0xff]
    %v1853 = vld [vmem:[#allocation11 + $0xd8] sm:$0xff]
    %v1854 = vld [vmem:[#allocation11 + $0xe0] sm:$0xff]
    %v1855 = vld [vmem:[#allocation11 + $0xe8] sm:$0xff]
    %v1856 = vld [vmem:[#allocation11 + $0xf0] sm:$0xff]
    %v1857 = vld [vmem:[#allocation11 + $0xf8] sm:$0xff]
    %v1858 = vld [vmem:[#allocation11 + $0x100] sm:$0xff]
    %v1859 = vld [vmem:[#allocation11 + $0x108] sm:$0xff]
    %v1860 = vld [vmem:[#allocation11 + $0x110] sm:$0xff]
    %v1861 = vld [vmem:[#allocation11 + $0x118] sm:$0xff]
    %v1862 = vld [vmem:[#allocation11 + $0x120] sm:$0xff]
    %v1863 = vld [vmem:[#allocation11 + $0x128] sm:$0xff]
    %v1864 = vld [vmem:[#allocation11 + $0x130] sm:$0xff]
    %v1865 = vld [vmem:[#allocation11 + $0x138] sm:$0xff]
    %v1866 = vld [vmem:[#allocation11 + $0x140] sm:$0xff]
    %v1867 = vld [vmem:[#allocation11 + $0x148] sm:$0xff]
    %v1868 = vld [vmem:[#allocation11 + $0x150] sm:$0xff]
    %v1869 = vld [vmem:[#allocation11 + $0x158] sm:$0xff]
    %v1870 = vld [vmem:[#allocation11 + $0x160] sm:$0xff]
    %v1871 = vld [vmem:[#allocation11 + $0x168] sm:$0xff]
    %v1872 = vld [vmem:[#allocation11 + $0x170] sm:$0xff]
    %v1873 = vld [vmem:[#allocation11 + $0x178] sm:$0xff]
    %v1874 = vld [vmem:[#allocation12] sm:$0xff]
    %v1875 = vld [vmem:[#allocation12 + $0x8] sm:$0xff]
    %v1876 = vld [vmem:[#allocation12 + $0x10] sm:$0xff]
    %v1877 = vld [vmem:[#allocation12 + $0x18] sm:$0xff]
    %v1878 = vld [vmem:[#allocation12 + $0x20] sm:$0xff]
    %v1879 = vld [vmem:[#allocation12 + $0x28] sm:$0xff]
    %v1880 = vld [vmem:[#allocation12 + $0x30] sm:$0xff]
    %v1881 = vld [vmem:[#allocation12 + $0x38] sm:$0xff]
    %v1882 = vld [vmem:[#allocation12 + $0x40] sm:$0xff]
    %v1883 = vld [vmem:[#allocation12 + $0x48] sm:$0xff]
    %v1884 = vld [vmem:[#allocation12 + $0x50] sm:$0xff]
    %v1885 = vld [vmem:[#allocation12 + $0x58] sm:$0xff]
    %v1886 = vld [vmem:[#allocation12 + $0x60] sm:$0xff]
    %v1887 = vld [vmem:[#allocation12 + $0x68] sm:$0xff]
    %v1888 = vld [vmem:[#allocation12 + $0x70] sm:$0xff]
    %v1889 = vld [vmem:[#allocation12 + $0x78] sm:$0xff]
    %v1890 = vld [vmem:[#allocation12 + $0x80] sm:$0xff]
    %v1891 = vld [vmem:[#allocation12 + $0x88] sm:$0xff]
    %v1892 = vld [vmem:[#allocation12 + $0x90] sm:$0xff]
    %v1893 = vld [vmem:[#allocation12 + $0x98] sm:$0xff]
    %v1894 = vld [vmem:[#allocation12 + $0xa0] sm:$0xff]
    %v1895 = vld [vmem:[#allocation12 + $0xa8] sm:$0xff]
    %v1896 = vld [vmem:[#allocation12 + $0xb0] sm:$0xff]
    %v1897 = vld [vmem:[#allocation12 + $0xb8] sm:$0xff]
    %v1898 = vld [vmem:[#allocation12 + $0xc0] sm:$0xff]
    %v1899 = vld [vmem:[#allocation12 + $0xc8] sm:$0xff]
    %v1900 = vld [vmem:[#allocation12 + $0xd0] sm:$0xff]
    %v1901 = vld [vmem:[#allocation12 + $0xd8] sm:$0xff]
    %v1902 = vld [vmem:[#allocation12 + $0xe0] sm:$0xff]
    %v1903 = vld [vmem:[#allocation12 + $0xe8] sm:$0xff]
    %v1904 = vld [vmem:[#allocation12 + $0xf0] sm:$0xff]
    %v1905 = vld [vmem:[#allocation12 + $0xf8] sm:$0xff]
    %v1906 = vld [vmem:[#allocation12 + $0x100] sm:$0xff]
    %v1907 = vld [vmem:[#allocation12 + $0x108] sm:$0xff]
    %v1908 = vld [vmem:[#allocation12 + $0x110] sm:$0xff]
    %v1909 = vld [vmem:[#allocation12 + $0x118] sm:$0xff]
    %v1910 = vld [vmem:[#allocation12 + $0x120] sm:$0xff]
    %v1911 = vld [vmem:[#allocation12 + $0x128] sm:$0xff]
    %v1912 = vld [vmem:[#allocation12 + $0x130] sm:$0xff]
    %v1913 = vld [vmem:[#allocation12 + $0x138] sm:$0xff]
    %v1914 = vld [vmem:[#allocation12 + $0x140] sm:$0xff]
    %v1915 = vld [vmem:[#allocation12 + $0x148] sm:$0xff]
    %v1916 = vld [vmem:[#allocation12 + $0x150] sm:$0xff]
    %v1917 = vld [vmem:[#allocation12 + $0x158] sm:$0xff]
    %v1918 = vld [vmem:[#allocation12 + $0x160] sm:$0xff]
    %v1919 = vld [vmem:[#allocation12 + $0x168] sm:$0xff]
    %v1920 = vld [vmem:[#allocation12 + $0x170] sm:$0xff]
    %v1921 = vld [vmem:[#allocation12 + $0x178] sm:$0xff]
    %v1922 = vld [vmem:[%s8] sm:$0x7]
    %v1923 = vld [vmem:[%s9] sm:$0x7]
    %v1925 = vlaneseq
    %v1926 = vshrl.u32 %v1925, 7
    %v1927 = vsub.s32 0, %v1926
    %v1928 = vrot.slane %v1922, %v1927
    %v1929 = vlaneseq
    %v1930 = vshrl.u32 %v1929, 7
    %v1931 = vsub.s32 1, %v1930
    %v1932 = vrot.slane %v1922, %v1931
    %v1933 = vlaneseq
    %v1934 = vshrl.u32 %v1933, 7
    %v1935 = vsub.s32 2, %v1934
    %v1936 = vrot.slane %v1922, %v1935
    %1940 = vmatprep.subr.mxu0 %v1827
    %1941 = vmatpush1.msra.mxu0 %v1826
    %1942 = vmatprep.subr.mxu0 %v1830
    %1943 = vmatpush1.msra.mxu0 %v1829
    %1944 = vmatprep.subr.mxu0 %v1833
    %1945 = vmatpush1.msra.mxu0 %v1832
    %1946 = vmatprep.subr.mxu0 %v1836
    %1947 = vmatpush1.msra.mxu0 %v1835
    %1948 = vmatprep.subr.mxu0 %v1839
    %1949 = vmatpush1.msra.mxu0 %v1838
    %1950 = vmatprep.subr.mxu0 %v1842
    %1951 = vmatpush1.msra.mxu0 %v1841
    %1952 = vmatprep.subr.mxu0 %v1845
    %1953 = vmatpush1.msra.mxu0 %v1844
    %1954 = vmatprep.subr.mxu0 %v1848
    %1955 = vmatpush1.msra.mxu0 %v1847
    %1956 = vmatprep.subr.mxu0 %v1851
    %1957 = vmatpush1.msra.mxu0 %v1850
    %1958 = vmatprep.subr.mxu0 %v1854
    %1959 = vmatpush1.msra.mxu0 %v1853
    %1960 = vmatprep.subr.mxu0 %v1857
    %1961 = vmatpush1.msra.mxu0 %v1856
    %1962 = vmatprep.subr.mxu0 %v1860
    %1963 = vmatpush1.msra.mxu0 %v1859
    %1964 = vmatprep.subr.mxu0 %v1863
    %1965 = vmatpush1.msra.mxu0 %v1862
    %1966 = vmatprep.subr.mxu0 %v1866
    %1967 = vmatpush1.msra.mxu0 %v1865
    %1968 = vmatprep.subr.mxu0 %v1869
    %1969 = vmatpush1.msra.mxu0 %v1868
    %1970 = vmatprep.subr.mxu0 %v1872
    %1971 = vmatpush1.msra.mxu0 %v1871
    %1972 = vmatprep.subr.mxu0 0.0
    %1973 = vmatpush1.msra.mxu0 0.0
    %1974 = vmatprep.subr.mxu0 0.0
    %1975 = vmatpush1.msra.mxu0 0.0
    %1976 = vmatprep.subr.mxu0 0.0
    %1977 = vmatpush1.msra.mxu0 0.0
    %1978 = vmatprep.subr.mxu0 0.0
    %1979 = vmatpush1.msra.mxu0 0.0
    %1980 = vmatprep.subr.mxu0 0.0
    %1981 = vmatpush1.msra.mxu0 0.0
    %1982 = vmatprep.subr.mxu0 0.0
    %1983 = vmatpush1.msra.mxu0 0.0
    %1984 = vmatprep.subr.mxu0 0.0
    %1985 = vmatpush1.msra.mxu0 0.0
    %1986 = vmatprep.subr.mxu0 0.0
    %1987 = vmatpush1.msra.mxu0 0.0
    %1988 = vmatprep.subr.mxu0 0.0
    %1989 = vmatpush1.msra.mxu0 0.0
    %1990 = vmatprep.subr.mxu0 0.0
    %1991 = vmatpush1.msra.mxu0 0.0
    %1992 = vmatprep.subr.mxu0 0.0
    %1993 = vmatpush1.msra.mxu0 0.0
    %1994 = vmatprep.subr.mxu0 0.0
    %1995 = vmatpush1.msra.mxu0 0.0
    %1996 = vmatprep.subr.mxu0 0.0
    %1997 = vmatpush1.msra.mxu0 0.0
    %1998 = vmatprep.subr.mxu0 0.0
    %1999 = vmatpush1.msra.mxu0 0.0
    %2000 = vmatprep.subr.mxu0 0.0
    %2001 = vmatpush1.msra.mxu0 0.0
    %2002 = vmatprep.subr.mxu0 0.0
    %2003 = vmatpush1.msra.mxu0 0.0
    %2004 = vmatprep.mubr.f32.mxu0 0.0
    %2005 = vmatmul.mubr.f32.gmra.mrb[0].mxu0 %v1824
    %v2006 = vpop.f32.mrb[0].mxu0
    %v2007 = vadd.f32 %v1928, %v2006
    %v2008 = vpop.f32.mrb[0].mxu0
    %v2009 = vadd.f32 %v1932, %v2008
    %2010 = vmatprep.mubr.f32.mxu0 0.0
    %2011 = vmatmul.mubr.f32.gmra.mrb[0].mxu0 %v1825
    %v2012 = vpop.f32.mrb[0].mxu0
    %v2013 = vadd.f32 %v1928, %v2012
    %v2014 = vpop.f32.mrb[0].mxu0
    %v2015 = vadd.f32 %v1932, %v2014
    %2016 = vdwg.mxu0
    %2017 = vmatprep.subr.mxu0 0.0
    %2018 = vmatpush1.msra.mxu0 %v1828
    %2019 = vmatprep.subr.mxu0 0.0
    %2020 = vmatpush1.msra.mxu0 %v1831
    %2021 = vmatprep.subr.mxu0 0.0
    %2022 = vmatpush1.msra.mxu0 %v1834
    %2023 = vmatprep.subr.mxu0 0.0
    %2024 = vmatpush1.msra.mxu0 %v1837
    %2025 = vmatprep.subr.mxu0 0.0
    %2026 = vmatpush1.msra.mxu0 %v1840
    %2027 = vmatprep.subr.mxu0 0.0
    %2028 = vmatpush1.msra.mxu0 %v1843
    %2029 = vmatprep.subr.mxu0 0.0
    %2030 = vmatpush1.msra.mxu0 %v1846
    %2031 = vmatprep.subr.mxu0 0.0
    %2032 = vmatpush1.msra.mxu0 %v1849
    %2033 = vmatprep.subr.mxu0 0.0
    %2034 = vmatpush1.msra.mxu0 %v1852
    %2035 = vmatprep.subr.mxu0 0.0
    %2036 = vmatpush1.msra.mxu0 %v1855
    %2037 = vmatprep.subr.mxu0 0.0
    %2038 = vmatpush1.msra.mxu0 %v1858
    %2039 = vmatprep.subr.mxu0 0.0
    %2040 = vmatpush1.msra.mxu0 %v1861
    %2041 = vmatprep.subr.mxu0 0.0
    %2042 = vmatpush1.msra.mxu0 %v1864
    %2043 = vmatprep.subr.mxu0 0.0
    %2044 = vmatpush1.msra.mxu0 %v1867
    %2045 = vmatprep.subr.mxu0 0.0
    %2046 = vmatpush1.msra.mxu0 %v1870
    %2047 = vmatprep.subr.mxu0 0.0
    %2048 = vmatpush1.msra.mxu0 %v1873
    %2049 = vmatprep.subr.mxu0 0.0
    %2050 = vmatpush1.msra.mxu0 0.0
    %2051 = vmatprep.subr.mxu0 0.0
    %2052 = vmatpush1.msra.mxu0 0.0
    %2053 = vmatprep.subr.mxu0 0.0
    %2054 = vmatpush1.msra.mxu0 0.0
    %2055 = vmatprep.subr.mxu0 0.0
    %2056 = vmatpush1.msra.mxu0 0.0
    %2057 = vmatprep.subr.mxu0 0.0
    %2058 = vmatpush1.msra.mxu0 0.0
    %2059 = vmatprep.subr.mxu0 0.0
    %2060 = vmatpush1.msra.mxu0 0.0
    %2061 = vmatprep.subr.mxu0 0.0
    %2062 = vmatpush1.msra.mxu0 0.0
    %2063 = vmatprep.subr.mxu0 0.0
    %2064 = vmatpush1.msra.mxu0 0.0
    %2065 = vmatprep.subr.mxu0 0.0
    %2066 = vmatpush1.msra.mxu0 0.0
    %2067 = vmatprep.subr.mxu0 0.0
    %2068 = vmatpush1.msra.mxu0 0.0
    %2069 = vmatprep.subr.mxu0 0.0
    %2070 = vmatpush1.msra.mxu0 0.0
    %2071 = vmatprep.subr.mxu0 0.0
    %2072 = vmatpush1.msra.mxu0 0.0
    %2073 = vmatprep.subr.mxu0 0.0
    %2074 = vmatpush1.msra.mxu0 0.0
    %2075 = vmatprep.subr.mxu0 0.0
    %2076 = vmatpush1.msra.mxu0 0.0
    %2077 = vmatprep.subr.mxu0 0.0
    %2078 = vmatpush1.msra.mxu0 0.0
    %2079 = vmatprep.subr.mxu0 0.0
    %2080 = vmatpush1.msra.mxu0 0.0
    %2081 = vmatprep.mubr.f32.mxu0 0.0
    %2082 = vmatmul.mubr.f32.gmra.mrb[0].mxu0 %v1824
    %v2083 = vpop.f32.mrb[0].mxu0
    %v2084 = vadd.f32 %v1936, %v2083
    %v2085 = vpop.f32.mrb[0].mxu0
    %2086 = vmatprep.mubr.f32.mxu0 0.0
    %2087 = vmatmul.mubr.f32.gmra.mrb[0].mxu0 %v1825
    %v2088 = vpop.f32.mrb[0].mxu0
    %v2089 = vadd.f32 %v1936, %v2088
    %v2090 = vpop.f32.mrb[0].mxu0
    %2091 = vdwg.mxu0
    %s2092 = scalar_lea.vmem [#allocation6], 2
    %v2093 = vld [vmem:[%s2092] sm:$0x3]
    %v2097 = vrot.slane %v2013, 7
    %v2098 = vrot.slane %v2015, 7
    %v2099 = vrot.slane %v2089, 7
    %v2103 = vsel %vm389, %v2007, %v2097
    %v2104 = vsel %vm389, %v2009, %v2098
    %v2105 = vsel %vm389, %v2084, %v2099
    %v2107 = vlaneseq
    %v2108 = vshrl.u32 %v2107, 7
    %v2109 = vsub.s32 0, %v2108
    %v2110 = vrot.slane %v1923, %v2109
    %v2111 = vlaneseq
    %v2112 = vshrl.u32 %v2111, 7
    %v2113 = vsub.s32 1, %v2112
    %v2114 = vrot.slane %v1923, %v2113
    %v2115 = vlaneseq
    %v2116 = vshrl.u32 %v2115, 7
    %v2117 = vsub.s32 2, %v2116
    %v2118 = vrot.slane %v1923, %v2117
    %2122 = vmatprep.subr.mxu0 %v1875
    %2123 = vmatpush1.msra.mxu0 %v1874
    %2124 = vmatprep.subr.mxu0 %v1878
    %2125 = vmatpush1.msra.mxu0 %v1877
    %2126 = vmatprep.subr.mxu0 %v1881
    %2127 = vmatpush1.msra.mxu0 %v1880
    %2128 = vmatprep.subr.mxu0 %v1884
    %2129 = vmatpush1.msra.mxu0 %v1883
    %2130 = vmatprep.subr.mxu0 %v1887
    %2131 = vmatpush1.msra.mxu0 %v1886
    %2132 = vmatprep.subr.mxu0 %v1890
    %2133 = vmatpush1.msra.mxu0 %v1889
    %2134 = vmatprep.subr.mxu0 %v1893
    %2135 = vmatpush1.msra.mxu0 %v1892
    %2136 = vmatprep.subr.mxu0 %v1896
    %2137 = vmatpush1.msra.mxu0 %v1895
    %2138 = vmatprep.subr.mxu0 %v1899
    %2139 = vmatpush1.msra.mxu0 %v1898
    %2140 = vmatprep.subr.mxu0 %v1902
    %2141 = vmatpush1.msra.mxu0 %v1901
    %2142 = vmatprep.subr.mxu0 %v1905
    %2143 = vmatpush1.msra.mxu0 %v1904
    %2144 = vmatprep.subr.mxu0 %v1908
    %2145 = vmatpush1.msra.mxu0 %v1907
    %2146 = vmatprep.subr.mxu0 %v1911
    %2147 = vmatpush1.msra.mxu0 %v1910
    %2148 = vmatprep.subr.mxu0 %v1914
    %2149 = vmatpush1.msra.mxu0 %v1913
    %2150 = vmatprep.subr.mxu0 %v1917
    %2151 = vmatpush1.msra.mxu0 %v1916
    %2152 = vmatprep.subr.mxu0 %v1920
    %2153 = vmatpush1.msra.mxu0 %v1919
    %2154 = vmatprep.subr.mxu0 0.0
    %2155 = vmatpush1.msra.mxu0 0.0
    %2156 = vmatprep.subr.mxu0 0.0
    %2157 = vmatpush1.msra.mxu0 0.0
    %2158 = vmatprep.subr.mxu0 0.0
    %2159 = vmatpush1.msra.mxu0 0.0
    %2160 = vmatprep.subr.mxu0 0.0
    %2161 = vmatpush1.msra.mxu0 0.0
    %2162 = vmatprep.subr.mxu0 0.0
    %2163 = vmatpush1.msra.mxu0 0.0
    %2164 = vmatprep.subr.mxu0 0.0
    %2165 = vmatpush1.msra.mxu0 0.0
    %2166 = vmatprep.subr.mxu0 0.0
    %2167 = vmatpush1.msra.mxu0 0.0
    %2168 = vmatprep.subr.mxu0 0.0
    %2169 = vmatpush1.msra.mxu0 0.0
    %2170 = vmatprep.subr.mxu0 0.0
    %2171 = vmatpush1.msra.mxu0 0.0
    %2172 = vmatprep.subr.mxu0 0.0
    %2173 = vmatpush1.msra.mxu0 0.0
    %2174 = vmatprep.subr.mxu0 0.0
    %2175 = vmatpush1.msra.mxu0 0.0
    %2176 = vmatprep.subr.mxu0 0.0
    %2177 = vmatpush1.msra.mxu0 0.0
    %2178 = vmatprep.subr.mxu0 0.0
    %2179 = vmatpush1.msra.mxu0 0.0
    %2180 = vmatprep.subr.mxu0 0.0
    %2181 = vmatpush1.msra.mxu0 0.0
    %2182 = vmatprep.subr.mxu0 0.0
    %2183 = vmatpush1.msra.mxu0 0.0
    %2184 = vmatprep.subr.mxu0 0.0
    %2185 = vmatpush1.msra.mxu0 0.0
    %2186 = vmatprep.mubr.f32.mxu0 0.0
    %2187 = vmatmul.mubr.f32.gmra.mrb[0].mxu0 %v2093
    %v2188 = vpop.f32.mrb[0].mxu0
    %v2189 = vadd.f32 %v2110, %v2188
    %v2190 = vpop.f32.mrb[0].mxu0
    %v2191 = vadd.f32 %v2114, %v2190
    %2192 = vdwg.mxu0
    %2193 = vmatprep.subr.mxu0 0.0
    %2194 = vmatpush1.msra.mxu0 %v1876
    %2195 = vmatprep.subr.mxu0 0.0
    %2196 = vmatpush1.msra.mxu0 %v1879
    %2197 = vmatprep.subr.mxu0 0.0
    %2198 = vmatpush1.msra.mxu0 %v1882
    %2199 = vmatprep.subr.mxu0 0.0
    %2200 = vmatpush1.msra.mxu0 %v1885
    %2201 = vmatprep.subr.mxu0 0.0
    %2202 = vmatpush1.msra.mxu0 %v1888
    %2203 = vmatprep.subr.mxu0 0.0
    %2204 = vmatpush1.msra.mxu0 %v1891
    %2205 = vmatprep.subr.mxu0 0.0
    %2206 = vmatpush1.msra.mxu0 %v1894
    %2207 = vmatprep.subr.mxu0 0.0
    %2208 = vmatpush1.msra.mxu0 %v1897
    %2209 = vmatprep.subr.mxu0 0.0
    %2210 = vmatpush1.msra.mxu0 %v1900
    %2211 = vmatprep.subr.mxu0 0.0
    %2212 = vmatpush1.msra.mxu0 %v1903
    %2213 = vmatprep.subr.mxu0 0.0
    %2214 = vmatpush1.msra.mxu0 %v1906
    %2215 = vmatprep.subr.mxu0 0.0
    %2216 = vmatpush1.msra.mxu0 %v1909
    %2217 = vmatprep.subr.mxu0 0.0
    %2218 = vmatpush1.msra.mxu0 %v1912
    %2219 = vmatprep.subr.mxu0 0.0
    %2220 = vmatpush1.msra.mxu0 %v1915
    %2221 = vmatprep.subr.mxu0 0.0
    %2222 = vmatpush1.msra.mxu0 %v1918
    %2223 = vmatprep.subr.mxu0 0.0
    %2224 = vmatpush1.msra.mxu0 %v1921
    %2225 = vmatprep.subr.mxu0 0.0
    %2226 = vmatpush1.msra.mxu0 0.0
    %2227 = vmatprep.subr.mxu0 0.0
    %2228 = vmatpush1.msra.mxu0 0.0
    %2229 = vmatprep.subr.mxu0 0.0
    %2230 = vmatpush1.msra.mxu0 0.0
    %2231 = vmatprep.subr.mxu0 0.0
    %2232 = vmatpush1.msra.mxu0 0.0
    %2233 = vmatprep.subr.mxu0 0.0
    %2234 = vmatpush1.msra.mxu0 0.0
    %2235 = vmatprep.subr.mxu0 0.0
    %2236 = vmatpush1.msra.mxu0 0.0
    %2237 = vmatprep.subr.mxu0 0.0
    %2238 = vmatpush1.msra.mxu0 0.0
    %2239 = vmatprep.subr.mxu0 0.0
    %2240 = vmatpush1.msra.mxu0 0.0
    %2241 = vmatprep.subr.mxu0 0.0
    %2242 = vmatpush1.msra.mxu0 0.0
    %2243 = vmatprep.subr.mxu0 0.0
    %2244 = vmatpush1.msra.mxu0 0.0
    %2245 = vmatprep.subr.mxu0 0.0
    %2246 = vmatpush1.msra.mxu0 0.0
    %2247 = vmatprep.subr.mxu0 0.0
    %2248 = vmatpush1.msra.mxu0 0.0
    %2249 = vmatprep.subr.mxu0 0.0
    %2250 = vmatpush1.msra.mxu0 0.0
    %2251 = vmatprep.subr.mxu0 0.0
    %2252 = vmatpush1.msra.mxu0 0.0
    %2253 = vmatprep.subr.mxu0 0.0
    %2254 = vmatpush1.msra.mxu0 0.0
    %2255 = vmatprep.subr.mxu0 0.0
    %2256 = vmatpush1.msra.mxu0 0.0
    %2257 = vmatprep.mubr.f32.mxu0 0.0
    %2258 = vmatmul.mubr.f32.gmra.mrb[0].mxu0 %v2093
    %v2259 = vpop.f32.mrb[0].mxu0
    %v2260 = vadd.f32 %v2118, %v2259
    %v2261 = vpop.f32.mrb[0].mxu0
    %2262 = vdwg.mxu0
    %v2263 = vadd.f32 %v2103, %v2189
    %v2264 = vxor.u32 %v2263, 2147483648
    %v2265 = vmul.f32 %v2264, 1.442695
    %v2266 = vpow.pop %v2265
    %v2267 = vadd.f32 %v2266, 1.0
    %v2268 = vrcp.pop %v2267
    %v2269 = vmul.f32 1.0, %v2268
    %v2270 = vadd.f32 %v2104, %v2191
    %v2271 = vxor.u32 %v2270, 2147483648
    %v2272 = vmul.f32 %v2271, 1.442695
    %v2273 = vpow.pop %v2272
    %v2274 = vadd.f32 %v2273, 1.0
    %v2275 = vrcp.pop %v2274
    %v2276 = vmul.f32 1.0, %v2275
    %v2277 = vmul.f32 %v2269, %v2260
    %v2278 = vadd.f32 %v2105, %v2277
    %v2279 = vtanh.pop %v2278
    %v2280 = vsub.f32 1.0, %v2276
    %v2281 = vmul.f32 %v2280, %v2279
    %v2282 = vmul.f32 %v2276, %v2093
    %v2283 = vadd.f32 %v2281, %v2282
    %2284 = vst [vmem:[#allocation2] sm:$0x1] %v2283
    %2285 = vst [vmem:[#allocation2 + $0x7] sm:$0x2] %v2283
    %v2289 = vrot.slane %v2007, 1
    %v2290 = vrot.slane %v2009, 1
    %v2291 = vrot.slane %v2084, 1
    %v2295 = vsel %vm389, %v2289, %v2013
    %v2296 = vsel %vm389, %v2290, %v2015
    %v2297 = vsel %vm389, %v2291, %v2089
    %2298 = vmatprep.subr.mxu0 %v1875
    %2299 = vmatpush1.msra.mxu0 %v1874
    %2300 = vmatprep.subr.mxu0 %v1878
    %2301 = vmatpush1.msra.mxu0 %v1877
    %2302 = vmatprep.subr.mxu0 %v1881
    %2303 = vmatpush1.msra.mxu0 %v1880
    %2304 = vmatprep.subr.mxu0 %v1884
    %2305 = vmatpush1.msra.mxu0 %v1883
    %2306 = vmatprep.subr.mxu0 %v1887
    %2307 = vmatpush1.msra.mxu0 %v1886
    %2308 = vmatprep.subr.mxu0 %v1890
    %2309 = vmatpush1.msra.mxu0 %v1889
    %2310 = vmatprep.subr.mxu0 %v1893
    %2311 = vmatpush1.msra.mxu0 %v1892
    %2312 = vmatprep.subr.mxu0 %v1896
    %2313 = vmatpush1.msra.mxu0 %v1895
    %2314 = vmatprep.subr.mxu0 %v1899
    %2315 = vmatpush1.msra.mxu0 %v1898
    %2316 = vmatprep.subr.mxu0 %v1902
    %2317 = vmatpush1.msra.mxu0 %v1901
    %2318 = vmatprep.subr.mxu0 %v1905
    %2319 = vmatpush1.msra.mxu0 %v1904
    %2320 = vmatprep.subr.mxu0 %v1908
    %2321 = vmatpush1.msra.mxu0 %v1907
    %2322 = vmatprep.subr.mxu0 %v1911
    %2323 = vmatpush1.msra.mxu0 %v1910
    %2324 = vmatprep.subr.mxu0 %v1914
    %2325 = vmatpush1.msra.mxu0 %v1913
    %2326 = vmatprep.subr.mxu0 %v1917
    %2327 = vmatpush1.msra.mxu0 %v1916
    %2328 = vmatprep.subr.mxu0 %v1920
    %2329 = vmatpush1.msra.mxu0 %v1919
    %2330 = vmatprep.subr.mxu0 0.0
    %2331 = vmatpush1.msra.mxu0 0.0
    %2332 = vmatprep.subr.mxu0 0.0
    %2333 = vmatpush1.msra.mxu0 0.0
    %2334 = vmatprep.subr.mxu0 0.0
    %2335 = vmatpush1.msra.mxu0 0.0
    %2336 = vmatprep.subr.mxu0 0.0
    %2337 = vmatpush1.msra.mxu0 0.0
    %2338 = vmatprep.subr.mxu0 0.0
    %2339 = vmatpush1.msra.mxu0 0.0
    %2340 = vmatprep.subr.mxu0 0.0
    %2341 = vmatpush1.msra.mxu0 0.0
    %2342 = vmatprep.subr.mxu0 0.0
    %2343 = vmatpush1.msra.mxu0 0.0
    %2344 = vmatprep.subr.mxu0 0.0
    %2345 = vmatpush1.msra.mxu0 0.0
    %2346 = vmatprep.subr.mxu0 0.0
    %2347 = vmatpush1.msra.mxu0 0.0
    %2348 = vmatprep.subr.mxu0 0.0
    %2349 = vmatpush1.msra.mxu0 0.0
    %2350 = vmatprep.subr.mxu0 0.0
    %2351 = vmatpush1.msra.mxu0 0.0
    %2352 = vmatprep.subr.mxu0 0.0
    %2353 = vmatpush1.msra.mxu0 0.0
    %2354 = vmatprep.subr.mxu0 0.0
    %2355 = vmatpush1.msra.mxu0 0.0
    %2356 = vmatprep.subr.mxu0 0.0
    %2357 = vmatpush1.msra.mxu0 0.0
    %2358 = vmatprep.subr.mxu0 0.0
    %2359 = vmatpush1.msra.mxu0 0.0
    %2360 = vmatprep.subr.mxu0 0.0
    %2361 = vmatpush1.msra.mxu0 0.0
    %2362 = vmatprep.mubr.f32.mxu0 0.0
    %2363 = vmatmul.mubr.f32.gmra.mrb[0].mxu0 %v2283
    %v2364 = vpop.f32.mrb[0].mxu0
    %v2365 = vadd.f32 %v2110, %v2364
    %v2366 = vpop.f32.mrb[0].mxu0
    %v2367 = vadd.f32 %v2114, %v2366
    %2368 = vdwg.mxu0
    %2369 = vmatprep.subr.mxu0 0.0
    %2370 = vmatpush1.msra.mxu0 %v1876
    %2371 = vmatprep.subr.mxu0 0.0
    %2372 = vmatpush1.msra.mxu0 %v1879
    %2373 = vmatprep.subr.mxu0 0.0
    %2374 = vmatpush1.msra.mxu0 %v1882
    %2375 = vmatprep.subr.mxu0 0.0
    %2376 = vmatpush1.msra.mxu0 %v1885
    %2377 = vmatprep.subr.mxu0 0.0
    %2378 = vmatpush1.msra.mxu0 %v1888
    %2379 = vmatprep.subr.mxu0 0.0
    %2380 = vmatpush1.msra.mxu0 %v1891
    %2381 = vmatprep.subr.mxu0 0.0
    %2382 = vmatpush1.msra.mxu0 %v1894
    %2383 = vmatprep.subr.mxu0 0.0
    %2384 = vmatpush1.msra.mxu0 %v1897
    %2385 = vmatprep.subr.mxu0 0.0
    %2386 = vmatpush1.msra.mxu0 %v1900
    %2387 = vmatprep.subr.mxu0 0.0
    %2388 = vmatpush1.msra.mxu0 %v1903
    %2389 = vmatprep.subr.mxu0 0.0
    %2390 = vmatpush1.msra.mxu0 %v1906
    %2391 = vmatprep.subr.mxu0 0.0
    %2392 = vmatpush1.msra.mxu0 %v1909
    %2393 = vmatprep.subr.mxu0 0.0
    %2394 = vmatpush1.msra.mxu0 %v1912
    %2395 = vmatprep.subr.mxu0 0.0
    %2396 = vmatpush1.msra.mxu0 %v1915
    %2397 = vmatprep.subr.mxu0 0.0
    %2398 = vmatpush1.msra.mxu0 %v1918
    %2399 = vmatprep.subr.mxu0 0.0
    %2400 = vmatpush1.msra.mxu0 %v1921
    %2401 = vmatprep.subr.mxu0 0.0
    %2402 = vmatpush1.msra.mxu0 0.0
    %2403 = vmatprep.subr.mxu0 0.0
    %2404 = vmatpush1.msra.mxu0 0.0
    %2405 = vmatprep.subr.mxu0 0.0
    %2406 = vmatpush1.msra.mxu0 0.0
    %2407 = vmatprep.subr.mxu0 0.0
    %2408 = vmatpush1.msra.mxu0 0.0
    %2409 = vmatprep.subr.mxu0 0.0
    %2410 = vmatpush1.msra.mxu0 0.0
    %2411 = vmatprep.subr.mxu0 0.0
    %2412 = vmatpush1.msra.mxu0 0.0
    %2413 = vmatprep.subr.mxu0 0.0
    %2414 = vmatpush1.msra.mxu0 0.0
    %2415 = vmatprep.subr.mxu0 0.0
    %2416 = vmatpush1.msra.mxu0 0.0
    %2417 = vmatprep.subr.mxu0 0.0
    %2418 = vmatpush1.msra.mxu0 0.0
    %2419 = vmatprep.subr.mxu0 0.0
    %2420 = vmatpush1.msra.mxu0 0.0
    %2421 = vmatprep.subr.mxu0 0.0
    %2422 = vmatpush1.msra.mxu0 0.0
    %2423 = vmatprep.subr.mxu0 0.0
    %2424 = vmatpush1.msra.mxu0 0.0
    %2425 = vmatprep.subr.mxu0 0.0
    %2426 = vmatpush1.msra.mxu0 0.0
    %2427 = vmatprep.subr.mxu0 0.0
    %2428 = vmatpush1.msra.mxu0 0.0
    %2429 = vmatprep.subr.mxu0 0.0
    %2430 = vmatpush1.msra.mxu0 0.0
    %2431 = vmatprep.subr.mxu0 0.0
    %2432 = vmatpush1.msra.mxu0 0.0
    %2433 = vmatprep.mubr.f32.mxu0 0.0
    %2434 = vmatmul.mubr.f32.gmra.mrb[0].mxu0 %v2283
    %v2435 = vpop.f32.mrb[0].mxu0
    %v2436 = vadd.f32 %v2118, %v2435
    %v2437 = vpop.f32.mrb[0].mxu0
    %2438 = vdwg.mxu0
    %v2439 = vadd.f32 %v2295, %v2365
    %v2440 = vxor.u32 %v2439, 2147483648
    %v2441 = vmul.f32 %v2440, 1.442695
    %v2442 = vpow.pop %v2441
    %v2443 = vadd.f32 %v2442, 1.0
    %v2444 = vrcp.pop %v2443
    %v2445 = vmul.f32 1.0, %v2444
    %v2446 = vadd.f32 %v2296, %v2367
    %v2447 = vxor.u32 %v2446, 2147483648
    %v2448 = vmul.f32 %v2447, 1.442695
    %v2449 = vpow.pop %v2448
    %v2450 = vadd.f32 %v2449, 1.0
    %v2451 = vrcp.pop %v2450
    %v2452 = vmul.f32 1.0, %v2451
    %v2453 = vmul.f32 %v2445, %v2436
    %v2454 = vadd.f32 %v2297, %v2453
    %v2455 = vtanh.pop %v2454
    %v2456 = vsub.f32 1.0, %v2452
    %v2457 = vmul.f32 %v2456, %v2455
    %v2458 = vmul.f32 %v2452, %v2283
    %v2459 = vadd.f32 %v2457, %v2458
    %2460 = vst [vmem:[#allocation2 + $0x1] sm:$0x1] %v2459
    %2461 = vst [vmem:[#allocation2 + $0x8] sm:$0x2] %v2459
    %v2462 = vrot.slane %v2007, 2
    %v2463 = vrot.slane %v2009, 2
    %v2464 = vrot.slane %v2084, 2
    %v2468 = vrot.slane %v2013, 1
    %v2469 = vrot.slane %v2015, 1
    %v2470 = vrot.slane %v2089, 1
    %v2474 = vsel %vm389, %v2462, %v2468
    %v2475 = vsel %vm389, %v2463, %v2469
    %v2476 = vsel %vm389, %v2464, %v2470
    %2477 = vmatprep.subr.mxu0 %v1875
    %2478 = vmatpush1.msra.mxu0 %v1874
    %2479 = vmatprep.subr.mxu0 %v1878
    %2480 = vmatpush1.msra.mxu0 %v1877
    %2481 = vmatprep.subr.mxu0 %v1881
    %2482 = vmatpush1.msra.mxu0 %v1880
    %2483 = vmatprep.subr.mxu0 %v1884
    %2484 = vmatpush1.msra.mxu0 %v1883
    %2485 = vmatprep.subr.mxu0 %v1887
    %2486 = vmatpush1.msra.mxu0 %v1886
    %2487 = vmatprep.subr.mxu0 %v1890
    %2488 = vmatpush1.msra.mxu0 %v1889
    %2489 = vmatprep.subr.mxu0 %v1893
    %2490 = vmatpush1.msra.mxu0 %v1892
    %2491 = vmatprep.subr.mxu0 %v1896
    %2492 = vmatpush1.msra.mxu0 %v1895
    %2493 = vmatprep.subr.mxu0 %v1899
    %2494 = vmatpush1.msra.mxu0 %v1898
    %2495 = vmatprep.subr.mxu0 %v1902
    %2496 = vmatpush1.msra.mxu0 %v1901
    %2497 = vmatprep.subr.mxu0 %v1905
    %2498 = vmatpush1.msra.mxu0 %v1904
    %2499 = vmatprep.subr.mxu0 %v1908
    %2500 = vmatpush1.msra.mxu0 %v1907
    %2501 = vmatprep.subr.mxu0 %v1911
    %2502 = vmatpush1.msra.mxu0 %v1910
    %2503 = vmatprep.subr.mxu0 %v1914
    %2504 = vmatpush1.msra.mxu0 %v1913
    %2505 = vmatprep.subr.mxu0 %v1917
    %2506 = vmatpush1.msra.mxu0 %v1916
    %2507 = vmatprep.subr.mxu0 %v1920
    %2508 = vmatpush1.msra.mxu0 %v1919
    %2509 = vmatprep.subr.mxu0 0.0
    %2510 = vmatpush1.msra.mxu0 0.0
    %2511 = vmatprep.subr.mxu0 0.0
    %2512 = vmatpush1.msra.mxu0 0.0
    %2513 = vmatprep.subr.mxu0 0.0
    %2514 = vmatpush1.msra.mxu0 0.0
    %2515 = vmatprep.subr.mxu0 0.0
    %2516 = vmatpush1.msra.mxu0 0.0
    %2517 = vmatprep.subr.mxu0 0.0
    %2518 = vmatpush1.msra.mxu0 0.0
    %2519 = vmatprep.subr.mxu0 0.0
    %2520 = vmatpush1.msra.mxu0 0.0
    %2521 = vmatprep.subr.mxu0 0.0
    %2522 = vmatpush1.msra.mxu0 0.0
    %2523 = vmatprep.subr.mxu0 0.0
    %2524 = vmatpush1.msra.mxu0 0.0
    %2525 = vmatprep.subr.mxu0 0.0
    %2526 = vmatpush1.msra.mxu0 0.0
    %2527 = vmatprep.subr.mxu0 0.0
    %2528 = vmatpush1.msra.mxu0 0.0
    %2529 = vmatprep.subr.mxu0 0.0
    %2530 = vmatpush1.msra.mxu0 0.0
    %2531 = vmatprep.subr.mxu0 0.0
    %2532 = vmatpush1.msra.mxu0 0.0
    %2533 = vmatprep.subr.mxu0 0.0
    %2534 = vmatpush1.msra.mxu0 0.0
    %2535 = vmatprep.subr.mxu0 0.0
    %2536 = vmatpush1.msra.mxu0 0.0
    %2537 = vmatprep.subr.mxu0 0.0
    %2538 = vmatpush1.msra.mxu0 0.0
    %2539 = vmatprep.subr.mxu0 0.0
    %2540 = vmatpush1.msra.mxu0 0.0
    %2541 = vmatprep.mubr.f32.mxu0 0.0
    %2542 = vmatmul.mubr.f32.gmra.mrb[0].mxu0 %v2459
    %v2543 = vpop.f32.mrb[0].mxu0
    %v2544 = vadd.f32 %v2110, %v2543
    %v2545 = vpop.f32.mrb[0].mxu0
    %v2546 = vadd.f32 %v2114, %v2545
    %2547 = vdwg.mxu0
    %2548 = vmatprep.subr.mxu0 0.0
    %2549 = vmatpush1.msra.mxu0 %v1876
    %2550 = vmatprep.subr.mxu0 0.0
    %2551 = vmatpush1.msra.mxu0 %v1879
    %2552 = vmatprep.subr.mxu0 0.0
    %2553 = vmatpush1.msra.mxu0 %v1882
    %2554 = vmatprep.subr.mxu0 0.0
    %2555 = vmatpush1.msra.mxu0 %v1885
    %2556 = vmatprep.subr.mxu0 0.0
    %2557 = vmatpush1.msra.mxu0 %v1888
    %2558 = vmatprep.subr.mxu0 0.0
    %2559 = vmatpush1.msra.mxu0 %v1891
    %2560 = vmatprep.subr.mxu0 0.0
    %2561 = vmatpush1.msra.mxu0 %v1894
    %2562 = vmatprep.subr.mxu0 0.0
    %2563 = vmatpush1.msra.mxu0 %v1897
    %2564 = vmatprep.subr.mxu0 0.0
    %2565 = vmatpush1.msra.mxu0 %v1900
    %2566 = vmatprep.subr.mxu0 0.0
    %2567 = vmatpush1.msra.mxu0 %v1903
    %2568 = vmatprep.subr.mxu0 0.0
    %2569 = vmatpush1.msra.mxu0 %v1906
    %2570 = vmatprep.subr.mxu0 0.0
    %2571 = vmatpush1.msra.mxu0 %v1909
    %2572 = vmatprep.subr.mxu0 0.0
    %2573 = vmatpush1.msra.mxu0 %v1912
    %2574 = vmatprep.subr.mxu0 0.0
    %2575 = vmatpush1.msra.mxu0 %v1915
    %2576 = vmatprep.subr.mxu0 0.0
    %2577 = vmatpush1.msra.mxu0 %v1918
    %2578 = vmatprep.subr.mxu0 0.0
    %2579 = vmatpush1.msra.mxu0 %v1921
    %2580 = vmatprep.subr.mxu0 0.0
    %2581 = vmatpush1.msra.mxu0 0.0
    %2582 = vmatprep.subr.mxu0 0.0
    %2583 = vmatpush1.msra.mxu0 0.0
    %2584 = vmatprep.subr.mxu0 0.0
    %2585 = vmatpush1.msra.mxu0 0.0
    %2586 = vmatprep.subr.mxu0 0.0
    %2587 = vmatpush1.msra.mxu0 0.0
    %2588 = vmatprep.subr.mxu0 0.0
    %2589 = vmatpush1.msra.mxu0 0.0
    %2590 = vmatprep.subr.mxu0 0.0
    %2591 = vmatpush1.msra.mxu0 0.0
    %2592 = vmatprep.subr.mxu0 0.0
    %2593 = vmatpush1.msra.mxu0 0.0
    %2594 = vmatprep.subr.mxu0 0.0
    %2595 = vmatpush1.msra.mxu0 0.0
    %2596 = vmatprep.subr.mxu0 0.0
    %2597 = vmatpush1.msra.mxu0 0.0
    %2598 = vmatprep.subr.mxu0 0.0
    %2599 = vmatpush1.msra.mxu0 0.0
    %2600 = vmatprep.subr.mxu0 0.0
    %2601 = vmatpush1.msra.mxu0 0.0
    %2602 = vmatprep.subr.mxu0 0.0
    %2603 = vmatpush1.msra.mxu0 0.0
    %2604 = vmatprep.subr.mxu0 0.0
    %2605 = vmatpush1.msra.mxu0 0.0
    %2606 = vmatprep.subr.mxu0 0.0
    %2607 = vmatpush1.msra.mxu0 0.0
    %2608 = vmatprep.subr.mxu0 0.0
    %2609 = vmatpush1.msra.mxu0 0.0
    %2610 = vmatprep.subr.mxu0 0.0
    %2611 = vmatpush1.msra.mxu0 0.0
    %2612 = vmatprep.mubr.f32.mxu0 0.0
    %2613 = vmatmul.mubr.f32.gmra.mrb[0].mxu0 %v2459
    %v2614 = vpop.f32.mrb[0].mxu0
    %v2615 = vadd.f32 %v2118, %v2614
    %v2616 = vpop.f32.mrb[0].mxu0
    %2617 = vdwg.mxu0
    %v2618 = vadd.f32 %v2474, %v2544
    %v2619 = vxor.u32 %v2618, 2147483648
    %v2620 = vmul.f32 %v2619, 1.442695
    %v2621 = vpow.pop %v2620
    %v2622 = vadd.f32 %v2621, 1.0
    %v2623 = vrcp.pop %v2622
    %v2624 = vmul.f32 1.0, %v2623
    %v2625 = vadd.f32 %v2475, %v2546
    %v2626 = vxor.u32 %v2625, 2147483648
    %v2627 = vmul.f32 %v2626, 1.442695
    %v2628 = vpow.pop %v2627
    %v2629 = vadd.f32 %v2628, 1.0
    %v2630 = vrcp.pop %v2629
    %v2631 = vmul.f32 1.0, %v2630
    %v2632 = vmul.f32 %v2624, %v2615
    %v2633 = vadd.f32 %v2476, %v2632
    %v2634 = vtanh.pop %v2633
    %v2635 = vsub.f32 1.0, %v2631
    %v2636 = vmul.f32 %v2635, %v2634
    %v2637 = vmul.f32 %v2631, %v2459
    %v2638 = vadd.f32 %v2636, %v2637
    %2639 = vst [vmem:[#allocation2 + $0x2] sm:$0x1] %v2638
    %2640 = vst [vmem:[#allocation2 + $0x9] sm:$0x2] %v2638
    %v2641 = vrot.slane %v2007, 3
    %v2642 = vrot.slane %v2009, 3
    %v2643 = vrot.slane %v2084, 3
    %v2647 = vrot.slane %v2013, 2
    %v2648 = vrot.slane %v2015, 2
    %v2649 = vrot.slane %v2089, 2
    %v2653 = vsel %vm389, %v2641, %v2647
    %v2654 = vsel %vm389, %v2642, %v2648
    %v2655 = vsel %vm389, %v2643, %v2649
    %2656 = vmatprep.subr.mxu0 %v1875
    %2657 = vmatpush1.msra.mxu0 %v1874
    %2658 = vmatprep.subr.mxu0 %v1878
    %2659 = vmatpush1.msra.mxu0 %v1877
    %2660 = vmatprep.subr.mxu0 %v1881
    %2661 = vmatpush1.msra.mxu0 %v1880
    %2662 = vmatprep.subr.mxu0 %v1884
    %2663 = vmatpush1.msra.mxu0 %v1883
    %2664 = vmatprep.subr.mxu0 %v1887
    %2665 = vmatpush1.msra.mxu0 %v1886
    %2666 = vmatprep.subr.mxu0 %v1890
    %2667 = vmatpush1.msra.mxu0 %v1889
    %2668 = vmatprep.subr.mxu0 %v1893
    %2669 = vmatpush1.msra.mxu0 %v1892
    %2670 = vmatprep.subr.mxu0 %v1896
    %2671 = vmatpush1.msra.mxu0 %v1895
    %2672 = vmatprep.subr.mxu0 %v1899
    %2673 = vmatpush1.msra.mxu0 %v1898
    %2674 = vmatprep.subr.mxu0 %v1902
    %2675 = vmatpush1.msra.mxu0 %v1901
    %2676 = vmatprep.subr.mxu0 %v1905
    %2677 = vmatpush1.msra.mxu0 %v1904
    %2678 = vmatprep.subr.mxu0 %v1908
    %2679 = vmatpush1.msra.mxu0 %v1907
    %2680 = vmatprep.subr.mxu0 %v1911
    %2681 = vmatpush1.msra.mxu0 %v1910
    %2682 = vmatprep.subr.mxu0 %v1914
    %2683 = vmatpush1.msra.mxu0 %v1913
    %2684 = vmatprep.subr.mxu0 %v1917
    %2685 = vmatpush1.msra.mxu0 %v1916
    %2686 = vmatprep.subr.mxu0 %v1920
    %2687 = vmatpush1.msra.mxu0 %v1919
    %2688 = vmatprep.subr.mxu0 0.0
    %2689 = vmatpush1.msra.mxu0 0.0
    %2690 = vmatprep.subr.mxu0 0.0
    %2691 = vmatpush1.msra.mxu0 0.0
    %2692 = vmatprep.subr.mxu0 0.0
    %2693 = vmatpush1.msra.mxu0 0.0
    %2694 = vmatprep.subr.mxu0 0.0
    %2695 = vmatpush1.msra.mxu0 0.0
    %2696 = vmatprep.subr.mxu0 0.0
    %2697 = vmatpush1.msra.mxu0 0.0
    %2698 = vmatprep.subr.mxu0 0.0
    %2699 = vmatpush1.msra.mxu0 0.0
    %2700 = vmatprep.subr.mxu0 0.0
    %2701 = vmatpush1.msra.mxu0 0.0
    %2702 = vmatprep.subr.mxu0 0.0
    %2703 = vmatpush1.msra.mxu0 0.0
    %2704 = vmatprep.subr.mxu0 0.0
    %2705 = vmatpush1.msra.mxu0 0.0
    %2706 = vmatprep.subr.mxu0 0.0
    %2707 = vmatpush1.msra.mxu0 0.0
    %2708 = vmatprep.subr.mxu0 0.0
    %2709 = vmatpush1.msra.mxu0 0.0
    %2710 = vmatprep.subr.mxu0 0.0
    %2711 = vmatpush1.msra.mxu0 0.0
    %2712 = vmatprep.subr.mxu0 0.0
    %2713 = vmatpush1.msra.mxu0 0.0
    %2714 = vmatprep.subr.mxu0 0.0
    %2715 = vmatpush1.msra.mxu0 0.0
    %2716 = vmatprep.subr.mxu0 0.0
    %2717 = vmatpush1.msra.mxu0 0.0
    %2718 = vmatprep.subr.mxu0 0.0
    %2719 = vmatpush1.msra.mxu0 0.0
    %2720 = vmatprep.mubr.f32.mxu0 0.0
    %2721 = vmatmul.mubr.f32.gmra.mrb[0].mxu0 %v2638
    %v2722 = vpop.f32.mrb[0].mxu0
    %v2723 = vadd.f32 %v2110, %v2722
    %v2724 = vpop.f32.mrb[0].mxu0
    %v2725 = vadd.f32 %v2114, %v2724
    %2726 = vdwg.mxu0
    %2727 = vmatprep.subr.mxu0 0.0
    %2728 = vmatpush1.msra.mxu0 %v1876
    %2729 = vmatprep.subr.mxu0 0.0
    %2730 = vmatpush1.msra.mxu0 %v1879
    %2731 = vmatprep.subr.mxu0 0.0
    %2732 = vmatpush1.msra.mxu0 %v1882
    %2733 = vmatprep.subr.mxu0 0.0
    %2734 = vmatpush1.msra.mxu0 %v1885
    %2735 = vmatprep.subr.mxu0 0.0
    %2736 = vmatpush1.msra.mxu0 %v1888
    %2737 = vmatprep.subr.mxu0 0.0
    %2738 = vmatpush1.msra.mxu0 %v1891
    %2739 = vmatprep.subr.mxu0 0.0
    %2740 = vmatpush1.msra.mxu0 %v1894
    %2741 = vmatprep.subr.mxu0 0.0
    %2742 = vmatpush1.msra.mxu0 %v1897
    %2743 = vmatprep.subr.mxu0 0.0
    %2744 = vmatpush1.msra.mxu0 %v1900
    %2745 = vmatprep.subr.mxu0 0.0
    %2746 = vmatpush1.msra.mxu0 %v1903
    %2747 = vmatprep.subr.mxu0 0.0
    %2748 = vmatpush1.msra.mxu0 %v1906
    %2749 = vmatprep.subr.mxu0 0.0
    %2750 = vmatpush1.msra.mxu0 %v1909
    %2751 = vmatprep.subr.mxu0 0.0
    %2752 = vmatpush1.msra.mxu0 %v1912
    %2753 = vmatprep.subr.mxu0 0.0
    %2754 = vmatpush1.msra.mxu0 %v1915
    %2755 = vmatprep.subr.mxu0 0.0
    %2756 = vmatpush1.msra.mxu0 %v1918
    %2757 = vmatprep.subr.mxu0 0.0
    %2758 = vmatpush1.msra.mxu0 %v1921
    %2759 = vmatprep.subr.mxu0 0.0
    %2760 = vmatpush1.msra.mxu0 0.0
    %2761 = vmatprep.subr.mxu0 0.0
    %2762 = vmatpush1.msra.mxu0 0.0
    %2763 = vmatprep.subr.mxu0 0.0
    %2764 = vmatpush1.msra.mxu0 0.0
    %2765 = vmatprep.subr.mxu0 0.0
    %2766 = vmatpush1.msra.mxu0 0.0
    %2767 = vmatprep.subr.mxu0 0.0
    %2768 = vmatpush1.msra.mxu0 0.0
    %2769 = vmatprep.subr.mxu0 0.0
    %2770 = vmatpush1.msra.mxu0 0.0
    %2771 = vmatprep.subr.mxu0 0.0
    %2772 = vmatpush1.msra.mxu0 0.0
    %2773 = vmatprep.subr.mxu0 0.0
    %2774 = vmatpush1.msra.mxu0 0.0
    %2775 = vmatprep.subr.mxu0 0.0
    %2776 = vmatpush1.msra.mxu0 0.0
    %2777 = vmatprep.subr.mxu0 0.0
    %2778 = vmatpush1.msra.mxu0 0.0
    %2779 = vmatprep.subr.mxu0 0.0
    %2780 = vmatpush1.msra.mxu0 0.0
    %2781 = vmatprep.subr.mxu0 0.0
    %2782 = vmatpush1.msra.mxu0 0.0
    %2783 = vmatprep.subr.mxu0 0.0
    %2784 = vmatpush1.msra.mxu0 0.0
    %2785 = vmatprep.subr.mxu0 0.0
    %2786 = vmatpush1.msra.mxu0 0.0
    %2787 = vmatprep.subr.mxu0 0.0
    %2788 = vmatpush1.msra.mxu0 0.0
    %2789 = vmatprep.subr.mxu0 0.0
    %2790 = vmatpush1.msra.mxu0 0.0
    %2791 = vmatprep.mubr.f32.mxu0 0.0
    %2792 = vmatmul.mubr.f32.gmra.mrb[0].mxu0 %v2638
    %v2793 = vpop.f32.mrb[0].mxu0
    %v2794 = vadd.f32 %v2118, %v2793
    %v2795 = vpop.f32.mrb[0].mxu0
    %2796 = vdwg.mxu0
    %v2797 = vadd.f32 %v2653, %v2723
    %v2798 = vxor.u32 %v2797, 2147483648
    %v2799 = vmul.f32 %v2798, 1.442695
    %v2800 = vpow.pop %v2799
    %v2801 = vadd.f32 %v2800, 1.0
    %v2802 = vrcp.pop %v2801
    %v2803 = vmul.f32 1.0, %v2802
    %v2804 = vadd.f32 %v2654, %v2725
    %v2805 = vxor.u32 %v2804, 2147483648
    %v2806 = vmul.f32 %v2805, 1.442695
    %v2807 = vpow.pop %v2806
    %v2808 = vadd.f32 %v2807, 1.0
    %v2809 = vrcp.pop %v2808
    %v2810 = vmul.f32 1.0, %v2809
    %v2811 = vmul.f32 %v2803, %v2794
    %v2812 = vadd.f32 %v2655, %v2811
    %v2813 = vtanh.pop %v2812
    %v2814 = vsub.f32 1.0, %v2810
    %v2815 = vmul.f32 %v2814, %v2813
    %v2816 = vmul.f32 %v2810, %v2638
    %v2817 = vadd.f32 %v2815, %v2816
    %2818 = vst [vmem:[#allocation2 + $0x3] sm:$0x1] %v2817
    %2819 = vst [vmem:[#allocation2 + $0xa] sm:$0x2] %v2817
    %v2820 = vrot.slane %v2007, 4
    %v2821 = vrot.slane %v2009, 4
    %v2822 = vrot.slane %v2084, 4
    %v2826 = vrot.slane %v2013, 3
    %v2827 = vrot.slane %v2015, 3
    %v2828 = vrot.slane %v2089, 3
    %v2832 = vsel %vm389, %v2820, %v2826
    %v2833 = vsel %vm389, %v2821, %v2827
    %v2834 = vsel %vm389, %v2822, %v2828
    %2835 = vmatprep.subr.mxu0 %v1875
    %2836 = vmatpush1.msra.mxu0 %v1874
    %2837 = vmatprep.subr.mxu0 %v1878
    %2838 = vmatpush1.msra.mxu0 %v1877
    %2839 = vmatprep.subr.mxu0 %v1881
    %2840 = vmatpush1.msra.mxu0 %v1880
    %2841 = vmatprep.subr.mxu0 %v1884
    %2842 = vmatpush1.msra.mxu0 %v1883
    %2843 = vmatprep.subr.mxu0 %v1887
    %2844 = vmatpush1.msra.mxu0 %v1886
    %2845 = vmatprep.subr.mxu0 %v1890
    %2846 = vmatpush1.msra.mxu0 %v1889
    %2847 = vmatprep.subr.mxu0 %v1893
    %2848 = vmatpush1.msra.mxu0 %v1892
    %2849 = vmatprep.subr.mxu0 %v1896
    %2850 = vmatpush1.msra.mxu0 %v1895
    %2851 = vmatprep.subr.mxu0 %v1899
    %2852 = vmatpush1.msra.mxu0 %v1898
    %2853 = vmatprep.subr.mxu0 %v1902
    %2854 = vmatpush1.msra.mxu0 %v1901
    %2855 = vmatprep.subr.mxu0 %v1905
    %2856 = vmatpush1.msra.mxu0 %v1904
    %2857 = vmatprep.subr.mxu0 %v1908
    %2858 = vmatpush1.msra.mxu0 %v1907
    %2859 = vmatprep.subr.mxu0 %v1911
    %2860 = vmatpush1.msra.mxu0 %v1910
    %2861 = vmatprep.subr.mxu0 %v1914
    %2862 = vmatpush1.msra.mxu0 %v1913
    %2863 = vmatprep.subr.mxu0 %v1917
    %2864 = vmatpush1.msra.mxu0 %v1916
    %2865 = vmatprep.subr.mxu0 %v1920
    %2866 = vmatpush1.msra.mxu0 %v1919
    %2867 = vmatprep.subr.mxu0 0.0
    %2868 = vmatpush1.msra.mxu0 0.0
    %2869 = vmatprep.subr.mxu0 0.0
    %2870 = vmatpush1.msra.mxu0 0.0
    %2871 = vmatprep.subr.mxu0 0.0
    %2872 = vmatpush1.msra.mxu0 0.0
    %2873 = vmatprep.subr.mxu0 0.0
    %2874 = vmatpush1.msra.mxu0 0.0
    %2875 = vmatprep.subr.mxu0 0.0
    %2876 = vmatpush1.msra.mxu0 0.0
    %2877 = vmatprep.subr.mxu0 0.0
    %2878 = vmatpush1.msra.mxu0 0.0
    %2879 = vmatprep.subr.mxu0 0.0
    %2880 = vmatpush1.msra.mxu0 0.0
    %2881 = vmatprep.subr.mxu0 0.0
    %2882 = vmatpush1.msra.mxu0 0.0
    %2883 = vmatprep.subr.mxu0 0.0
    %2884 = vmatpush1.msra.mxu0 0.0
    %2885 = vmatprep.subr.mxu0 0.0
    %2886 = vmatpush1.msra.mxu0 0.0
    %2887 = vmatprep.subr.mxu0 0.0
    %2888 = vmatpush1.msra.mxu0 0.0
    %2889 = vmatprep.subr.mxu0 0.0
    %2890 = vmatpush1.msra.mxu0 0.0
    %2891 = vmatprep.subr.mxu0 0.0
    %2892 = vmatpush1.msra.mxu0 0.0
    %2893 = vmatprep.subr.mxu0 0.0
    %2894 = vmatpush1.msra.mxu0 0.0
    %2895 = vmatprep.subr.mxu0 0.0
    %2896 = vmatpush1.msra.mxu0 0.0
    %2897 = vmatprep.subr.mxu0 0.0
    %2898 = vmatpush1.msra.mxu0 0.0
    %2899 = vmatprep.mubr.f32.mxu0 0.0
    %2900 = vmatmul.mubr.f32.gmra.mrb[0].mxu0 %v2817
    %v2901 = vpop.f32.mrb[0].mxu0
    %v2902 = vadd.f32 %v2110, %v2901
    %v2903 = vpop.f32.mrb[0].mxu0
    %v2904 = vadd.f32 %v2114, %v2903
    %2905 = vdwg.mxu0
    %2906 = vmatprep.subr.mxu0 0.0
    %2907 = vmatpush1.msra.mxu0 %v1876
    %2908 = vmatprep.subr.mxu0 0.0
    %2909 = vmatpush1.msra.mxu0 %v1879
    %2910 = vmatprep.subr.mxu0 0.0
    %2911 = vmatpush1.msra.mxu0 %v1882
    %2912 = vmatprep.subr.mxu0 0.0
    %2913 = vmatpush1.msra.mxu0 %v1885
    %2914 = vmatprep.subr.mxu0 0.0
    %2915 = vmatpush1.msra.mxu0 %v1888
    %2916 = vmatprep.subr.mxu0 0.0
    %2917 = vmatpush1.msra.mxu0 %v1891
    %2918 = vmatprep.subr.mxu0 0.0
    %2919 = vmatpush1.msra.mxu0 %v1894
    %2920 = vmatprep.subr.mxu0 0.0
    %2921 = vmatpush1.msra.mxu0 %v1897
    %2922 = vmatprep.subr.mxu0 0.0
    %2923 = vmatpush1.msra.mxu0 %v1900
    %2924 = vmatprep.subr.mxu0 0.0
    %2925 = vmatpush1.msra.mxu0 %v1903
    %2926 = vmatprep.subr.mxu0 0.0
    %2927 = vmatpush1.msra.mxu0 %v1906
    %2928 = vmatprep.subr.mxu0 0.0
    %2929 = vmatpush1.msra.mxu0 %v1909
    %2930 = vmatprep.subr.mxu0 0.0
    %2931 = vmatpush1.msra.mxu0 %v1912
    %2932 = vmatprep.subr.mxu0 0.0
    %2933 = vmatpush1.msra.mxu0 %v1915
    %2934 = vmatprep.subr.mxu0 0.0
    %2935 = vmatpush1.msra.mxu0 %v1918
    %2936 = vmatprep.subr.mxu0 0.0
    %2937 = vmatpush1.msra.mxu0 %v1921
    %2938 = vmatprep.subr.mxu0 0.0
    %2939 = vmatpush1.msra.mxu0 0.0
    %2940 = vmatprep.subr.mxu0 0.0
    %2941 = vmatpush1.msra.mxu0 0.0
    %2942 = vmatprep.subr.mxu0 0.0
    %2943 = vmatpush1.msra.mxu0 0.0
    %2944 = vmatprep.subr.mxu0 0.0
    %2945 = vmatpush1.msra.mxu0 0.0
    %2946 = vmatprep.subr.mxu0 0.0
    %2947 = vmatpush1.msra.mxu0 0.0
    %2948 = vmatprep.subr.mxu0 0.0
    %2949 = vmatpush1.msra.mxu0 0.0
    %2950 = vmatprep.subr.mxu0 0.0
    %2951 = vmatpush1.msra.mxu0 0.0
    %2952 = vmatprep.subr.mxu0 0.0
    %2953 = vmatpush1.msra.mxu0 0.0
    %2954 = vmatprep.subr.mxu0 0.0
    %2955 = vmatpush1.msra.mxu0 0.0
    %2956 = vmatprep.subr.mxu0 0.0
    %2957 = vmatpush1.msra.mxu0 0.0
    %2958 = vmatprep.subr.mxu0 0.0
    %2959 = vmatpush1.msra.mxu0 0.0
    %2960 = vmatprep.subr.mxu0 0.0
    %2961 = vmatpush1.msra.mxu0 0.0
    %2962 = vmatprep.subr.mxu0 0.0
    %2963 = vmatpush1.msra.mxu0 0.0
    %2964 = vmatprep.subr.mxu0 0.0
    %2965 = vmatpush1.msra.mxu0 0.0
    %2966 = vmatprep.subr.mxu0 0.0
    %2967 = vmatpush1.msra.mxu0 0.0
    %2968 = vmatprep.subr.mxu0 0.0
    %2969 = vmatpush1.msra.mxu0 0.0
    %2970 = vmatprep.mubr.f32.mxu0 0.0
    %2971 = vmatmul.mubr.f32.gmra.mrb[0].mxu0 %v2817
    %v2972 = vpop.f32.mrb[0].mxu0
    %v2973 = vadd.f32 %v2118, %v2972
    %v2974 = vpop.f32.mrb[0].mxu0
    %2975 = vdwg.mxu0
    %v2976 = vadd.f32 %v2832, %v2902
    %v2977 = vxor.u32 %v2976, 2147483648
    %v2978 = vmul.f32 %v2977, 1.442695
    %v2979 = vpow.pop %v2978
    %v2980 = vadd.f32 %v2979, 1.0
    %v2981 = vrcp.pop %v2980
    %v2982 = vmul.f32 1.0, %v2981
    %v2983 = vadd.f32 %v2833, %v2904
    %v2984 = vxor.u32 %v2983, 2147483648
    %v2985 = vmul.f32 %v2984, 1.442695
    %v2986 = vpow.pop %v2985
    %v2987 = vadd.f32 %v2986, 1.0
    %v2988 = vrcp.pop %v2987
    %v2989 = vmul.f32 1.0, %v2988
    %v2990 = vmul.f32 %v2982, %v2973
    %v2991 = vadd.f32 %v2834, %v2990
    %v2992 = vtanh.pop %v2991
    %v2993 = vsub.f32 1.0, %v2989
    %v2994 = vmul.f32 %v2993, %v2992
    %v2995 = vmul.f32 %v2989, %v2817
    %v2996 = vadd.f32 %v2994, %v2995
    %2997 = vst [vmem:[#allocation2 + $0x4] sm:$0x1] %v2996
    %2998 = vst [vmem:[#allocation2 + $0xb] sm:$0x2] %v2996
    %v2999 = vrot.slane %v2007, 5
    %v3000 = vrot.slane %v2009, 5
    %v3001 = vrot.slane %v2084, 5
    %v3005 = vrot.slane %v2013, 4
    %v3006 = vrot.slane %v2015, 4
    %v3007 = vrot.slane %v2089, 4
    %v3011 = vsel %vm389, %v2999, %v3005
    %v3012 = vsel %vm389, %v3000, %v3006
    %v3013 = vsel %vm389, %v3001, %v3007
    %3014 = vmatprep.subr.mxu0 %v1875
    %3015 = vmatpush1.msra.mxu0 %v1874
    %3016 = vmatprep.subr.mxu0 %v1878
    %3017 = vmatpush1.msra.mxu0 %v1877
    %3018 = vmatprep.subr.mxu0 %v1881
    %3019 = vmatpush1.msra.mxu0 %v1880
    %3020 = vmatprep.subr.mxu0 %v1884
    %3021 = vmatpush1.msra.mxu0 %v1883
    %3022 = vmatprep.subr.mxu0 %v1887
    %3023 = vmatpush1.msra.mxu0 %v1886
    %3024 = vmatprep.subr.mxu0 %v1890
    %3025 = vmatpush1.msra.mxu0 %v1889
    %3026 = vmatprep.subr.mxu0 %v1893
    %3027 = vmatpush1.msra.mxu0 %v1892
    %3028 = vmatprep.subr.mxu0 %v1896
    %3029 = vmatpush1.msra.mxu0 %v1895
    %3030 = vmatprep.subr.mxu0 %v1899
    %3031 = vmatpush1.msra.mxu0 %v1898
    %3032 = vmatprep.subr.mxu0 %v1902
    %3033 = vmatpush1.msra.mxu0 %v1901
    %3034 = vmatprep.subr.mxu0 %v1905
    %3035 = vmatpush1.msra.mxu0 %v1904
    %3036 = vmatprep.subr.mxu0 %v1908
    %3037 = vmatpush1.msra.mxu0 %v1907
    %3038 = vmatprep.subr.mxu0 %v1911
    %3039 = vmatpush1.msra.mxu0 %v1910
    %3040 = vmatprep.subr.mxu0 %v1914
    %3041 = vmatpush1.msra.mxu0 %v1913
    %3042 = vmatprep.subr.mxu0 %v1917
    %3043 = vmatpush1.msra.mxu0 %v1916
    %3044 = vmatprep.subr.mxu0 %v1920
    %3045 = vmatpush1.msra.mxu0 %v1919
    %3046 = vmatprep.subr.mxu0 0.0
    %3047 = vmatpush1.msra.mxu0 0.0
    %3048 = vmatprep.subr.mxu0 0.0
    %3049 = vmatpush1.msra.mxu0 0.0
    %3050 = vmatprep.subr.mxu0 0.0
    %3051 = vmatpush1.msra.mxu0 0.0
    %3052 = vmatprep.subr.mxu0 0.0
    %3053 = vmatpush1.msra.mxu0 0.0
    %3054 = vmatprep.subr.mxu0 0.0
    %3055 = vmatpush1.msra.mxu0 0.0
    %3056 = vmatprep.subr.mxu0 0.0
    %3057 = vmatpush1.msra.mxu0 0.0
    %3058 = vmatprep.subr.mxu0 0.0
    %3059 = vmatpush1.msra.mxu0 0.0
    %3060 = vmatprep.subr.mxu0 0.0
    %3061 = vmatpush1.msra.mxu0 0.0
    %3062 = vmatprep.subr.mxu0 0.0
    %3063 = vmatpush1.msra.mxu0 0.0
    %3064 = vmatprep.subr.mxu0 0.0
    %3065 = vmatpush1.msra.mxu0 0.0
    %3066 = vmatprep.subr.mxu0 0.0
    %3067 = vmatpush1.msra.mxu0 0.0
    %3068 = vmatprep.subr.mxu0 0.0
    %3069 = vmatpush1.msra.mxu0 0.0
    %3070 = vmatprep.subr.mxu0 0.0
    %3071 = vmatpush1.msra.mxu0 0.0
    %3072 = vmatprep.subr.mxu0 0.0
    %3073 = vmatpush1.msra.mxu0 0.0
    %3074 = vmatprep.subr.mxu0 0.0
    %3075 = vmatpush1.msra.mxu0 0.0
    %3076 = vmatprep.subr.mxu0 0.0
    %3077 = vmatpush1.msra.mxu0 0.0
    %3078 = vmatprep.mubr.f32.mxu0 0.0
    %3079 = vmatmul.mubr.f32.gmra.mrb[0].mxu0 %v2996
    %v3080 = vpop.f32.mrb[0].mxu0
    %v3081 = vadd.f32 %v2110, %v3080
    %v3082 = vpop.f32.mrb[0].mxu0
    %v3083 = vadd.f32 %v2114, %v3082
    %3084 = vdwg.mxu0
    %3085 = vmatprep.subr.mxu0 0.0
    %3086 = vmatpush1.msra.mxu0 %v1876
    %3087 = vmatprep.subr.mxu0 0.0
    %3088 = vmatpush1.msra.mxu0 %v1879
    %3089 = vmatprep.subr.mxu0 0.0
    %3090 = vmatpush1.msra.mxu0 %v1882
    %3091 = vmatprep.subr.mxu0 0.0
    %3092 = vmatpush1.msra.mxu0 %v1885
    %3093 = vmatprep.subr.mxu0 0.0
    %3094 = vmatpush1.msra.mxu0 %v1888
    %3095 = vmatprep.subr.mxu0 0.0
    %3096 = vmatpush1.msra.mxu0 %v1891
    %3097 = vmatprep.subr.mxu0 0.0
    %3098 = vmatpush1.msra.mxu0 %v1894
    %3099 = vmatprep.subr.mxu0 0.0
    %3100 = vmatpush1.msra.mxu0 %v1897
    %3101 = vmatprep.subr.mxu0 0.0
    %3102 = vmatpush1.msra.mxu0 %v1900
    %3103 = vmatprep.subr.mxu0 0.0
    %3104 = vmatpush1.msra.mxu0 %v1903
    %3105 = vmatprep.subr.mxu0 0.0
    %3106 = vmatpush1.msra.mxu0 %v1906
    %3107 = vmatprep.subr.mxu0 0.0
    %3108 = vmatpush1.msra.mxu0 %v1909
    %3109 = vmatprep.subr.mxu0 0.0
    %3110 = vmatpush1.msra.mxu0 %v1912
    %3111 = vmatprep.subr.mxu0 0.0
    %3112 = vmatpush1.msra.mxu0 %v1915
    %3113 = vmatprep.subr.mxu0 0.0
    %3114 = vmatpush1.msra.mxu0 %v1918
    %3115 = vmatprep.subr.mxu0 0.0
    %3116 = vmatpush1.msra.mxu0 %v1921
    %3117 = vmatprep.subr.mxu0 0.0
    %3118 = vmatpush1.msra.mxu0 0.0
    %3119 = vmatprep.subr.mxu0 0.0
    %3120 = vmatpush1.msra.mxu0 0.0
    %3121 = vmatprep.subr.mxu0 0.0
    %3122 = vmatpush1.msra.mxu0 0.0
    %3123 = vmatprep.subr.mxu0 0.0
    %3124 = vmatpush1.msra.mxu0 0.0
    %3125 = vmatprep.subr.mxu0 0.0
    %3126 = vmatpush1.msra.mxu0 0.0
    %3127 = vmatprep.subr.mxu0 0.0
    %3128 = vmatpush1.msra.mxu0 0.0
    %3129 = vmatprep.subr.mxu0 0.0
    %3130 = vmatpush1.msra.mxu0 0.0
    %3131 = vmatprep.subr.mxu0 0.0
    %3132 = vmatpush1.msra.mxu0 0.0
    %3133 = vmatprep.subr.mxu0 0.0
    %3134 = vmatpush1.msra.mxu0 0.0
    %3135 = vmatprep.subr.mxu0 0.0
    %3136 = vmatpush1.msra.mxu0 0.0
    %3137 = vmatprep.subr.mxu0 0.0
    %3138 = vmatpush1.msra.mxu0 0.0
    %3139 = vmatprep.subr.mxu0 0.0
    %3140 = vmatpush1.msra.mxu0 0.0
    %3141 = vmatprep.subr.mxu0 0.0
    %3142 = vmatpush1.msra.mxu0 0.0
    %3143 = vmatprep.subr.mxu0 0.0
    %3144 = vmatpush1.msra.mxu0 0.0
    %3145 = vmatprep.subr.mxu0 0.0
    %3146 = vmatpush1.msra.mxu0 0.0
    %3147 = vmatprep.subr.mxu0 0.0
    %3148 = vmatpush1.msra.mxu0 0.0
    %3149 = vmatprep.mubr.f32.mxu0 0.0
    %3150 = vmatmul.mubr.f32.gmra.mrb[0].mxu0 %v2996
    %v3151 = vpop.f32.mrb[0].mxu0
    %v3152 = vadd.f32 %v2118, %v3151
    %v3153 = vpop.f32.mrb[0].mxu0
    %3154 = vdwg.mxu0
    %v3155 = vadd.f32 %v3011, %v3081
    %v3156 = vxor.u32 %v3155, 2147483648
    %v3157 = vmul.f32 %v3156, 1.442695
    %v3158 = vpow.pop %v3157
    %v3159 = vadd.f32 %v3158, 1.0
    %v3160 = vrcp.pop %v3159
    %v3161 = vmul.f32 1.0, %v3160
    %v3162 = vadd.f32 %v3012, %v3083
    %v3163 = vxor.u32 %v3162, 2147483648
    %v3164 = vmul.f32 %v3163, 1.442695
    %v3165 = vpow.pop %v3164
    %v3166 = vadd.f32 %v3165, 1.0
    %v3167 = vrcp.pop %v3166
    %v3168 = vmul.f32 1.0, %v3167
    %v3169 = vmul.f32 %v3161, %v3152
    %v3170 = vadd.f32 %v3013, %v3169
    %v3171 = vtanh.pop %v3170
    %v3172 = vsub.f32 1.0, %v3168
    %v3173 = vmul.f32 %v3172, %v3171
    %v3174 = vmul.f32 %v3168, %v2996
    %v3175 = vadd.f32 %v3173, %v3174
    %3176 = vst [vmem:[#allocation2 + $0x5] sm:$0x1] %v3175
    %3177 = vst [vmem:[#allocation2 + $0xc] sm:$0x2] %v3175
    %v3178 = vrot.slane %v2007, 6
    %v3179 = vrot.slane %v2009, 6
    %v3180 = vrot.slane %v2084, 6
    %v3184 = vrot.slane %v2013, 5
    %v3185 = vrot.slane %v2015, 5
    %v3186 = vrot.slane %v2089, 5
    %v3190 = vsel %vm389, %v3178, %v3184
    %v3191 = vsel %vm389, %v3179, %v3185
    %v3192 = vsel %vm389, %v3180, %v3186
    %3193 = vmatprep.subr.mxu0 %v1875
    %3194 = vmatpush1.msra.mxu0 %v1874
    %3195 = vmatprep.subr.mxu0 %v1878
    %3196 = vmatpush1.msra.mxu0 %v1877
    %3197 = vmatprep.subr.mxu0 %v1881
    %3198 = vmatpush1.msra.mxu0 %v1880
    %3199 = vmatprep.subr.mxu0 %v1884
    %3200 = vmatpush1.msra.mxu0 %v1883
    %3201 = vmatprep.subr.mxu0 %v1887
    %3202 = vmatpush1.msra.mxu0 %v1886
    %3203 = vmatprep.subr.mxu0 %v1890
    %3204 = vmatpush1.msra.mxu0 %v1889
    %3205 = vmatprep.subr.mxu0 %v1893
    %3206 = vmatpush1.msra.mxu0 %v1892
    %3207 = vmatprep.subr.mxu0 %v1896
    %3208 = vmatpush1.msra.mxu0 %v1895
    %3209 = vmatprep.subr.mxu0 %v1899
    %3210 = vmatpush1.msra.mxu0 %v1898
    %3211 = vmatprep.subr.mxu0 %v1902
    %3212 = vmatpush1.msra.mxu0 %v1901
    %3213 = vmatprep.subr.mxu0 %v1905
    %3214 = vmatpush1.msra.mxu0 %v1904
    %3215 = vmatprep.subr.mxu0 %v1908
    %3216 = vmatpush1.msra.mxu0 %v1907
    %3217 = vmatprep.subr.mxu0 %v1911
    %3218 = vmatpush1.msra.mxu0 %v1910
    %3219 = vmatprep.subr.mxu0 %v1914
    %3220 = vmatpush1.msra.mxu0 %v1913
    %3221 = vmatprep.subr.mxu0 %v1917
    %3222 = vmatpush1.msra.mxu0 %v1916
    %3223 = vmatprep.subr.mxu0 %v1920
    %3224 = vmatpush1.msra.mxu0 %v1919
    %3225 = vmatprep.subr.mxu0 0.0
    %3226 = vmatpush1.msra.mxu0 0.0
    %3227 = vmatprep.subr.mxu0 0.0
    %3228 = vmatpush1.msra.mxu0 0.0
    %3229 = vmatprep.subr.mxu0 0.0
    %3230 = vmatpush1.msra.mxu0 0.0
    %3231 = vmatprep.subr.mxu0 0.0
    %3232 = vmatpush1.msra.mxu0 0.0
    %3233 = vmatprep.subr.mxu0 0.0
    %3234 = vmatpush1.msra.mxu0 0.0
    %3235 = vmatprep.subr.mxu0 0.0
    %3236 = vmatpush1.msra.mxu0 0.0
    %3237 = vmatprep.subr.mxu0 0.0
    %3238 = vmatpush1.msra.mxu0 0.0
    %3239 = vmatprep.subr.mxu0 0.0
    %3240 = vmatpush1.msra.mxu0 0.0
    %3241 = vmatprep.subr.mxu0 0.0
    %3242 = vmatpush1.msra.mxu0 0.0
    %3243 = vmatprep.subr.mxu0 0.0
    %3244 = vmatpush1.msra.mxu0 0.0
    %3245 = vmatprep.subr.mxu0 0.0
    %3246 = vmatpush1.msra.mxu0 0.0
    %3247 = vmatprep.subr.mxu0 0.0
    %3248 = vmatpush1.msra.mxu0 0.0
    %3249 = vmatprep.subr.mxu0 0.0
    %3250 = vmatpush1.msra.mxu0 0.0
    %3251 = vmatprep.subr.mxu0 0.0
    %3252 = vmatpush1.msra.mxu0 0.0
    %3253 = vmatprep.subr.mxu0 0.0
    %3254 = vmatpush1.msra.mxu0 0.0
    %3255 = vmatprep.subr.mxu0 0.0
    %3256 = vmatpush1.msra.mxu0 0.0
    %3257 = vmatprep.mubr.f32.mxu0 0.0
    %3258 = vmatmul.mubr.f32.gmra.mrb[0].mxu0 %v3175
    %v3259 = vpop.f32.mrb[0].mxu0
    %v3260 = vadd.f32 %v2110, %v3259
    %v3261 = vpop.f32.mrb[0].mxu0
    %v3262 = vadd.f32 %v2114, %v3261
    %3263 = vdwg.mxu0
    %3264 = vmatprep.subr.mxu0 0.0
    %3265 = vmatpush1.msra.mxu0 %v1876
    %3266 = vmatprep.subr.mxu0 0.0
    %3267 = vmatpush1.msra.mxu0 %v1879
    %3268 = vmatprep.subr.mxu0 0.0
    %3269 = vmatpush1.msra.mxu0 %v1882
    %3270 = vmatprep.subr.mxu0 0.0
    %3271 = vmatpush1.msra.mxu0 %v1885
    %3272 = vmatprep.subr.mxu0 0.0
    %3273 = vmatpush1.msra.mxu0 %v1888
    %3274 = vmatprep.subr.mxu0 0.0
    %3275 = vmatpush1.msra.mxu0 %v1891
    %3276 = vmatprep.subr.mxu0 0.0
    %3277 = vmatpush1.msra.mxu0 %v1894
    %3278 = vmatprep.subr.mxu0 0.0
    %3279 = vmatpush1.msra.mxu0 %v1897
    %3280 = vmatprep.subr.mxu0 0.0
    %3281 = vmatpush1.msra.mxu0 %v1900
    %3282 = vmatprep.subr.mxu0 0.0
    %3283 = vmatpush1.msra.mxu0 %v1903
    %3284 = vmatprep.subr.mxu0 0.0
    %3285 = vmatpush1.msra.mxu0 %v1906
    %3286 = vmatprep.subr.mxu0 0.0
    %3287 = vmatpush1.msra.mxu0 %v1909
    %3288 = vmatprep.subr.mxu0 0.0
    %3289 = vmatpush1.msra.mxu0 %v1912
    %3290 = vmatprep.subr.mxu0 0.0
    %3291 = vmatpush1.msra.mxu0 %v1915
    %3292 = vmatprep.subr.mxu0 0.0
    %3293 = vmatpush1.msra.mxu0 %v1918
    %3294 = vmatprep.subr.mxu0 0.0
    %3295 = vmatpush1.msra.mxu0 %v1921
    %3296 = vmatprep.subr.mxu0 0.0
    %3297 = vmatpush1.msra.mxu0 0.0
    %3298 = vmatprep.subr.mxu0 0.0
    %3299 = vmatpush1.msra.mxu0 0.0
    %3300 = vmatprep.subr.mxu0 0.0
    %3301 = vmatpush1.msra.mxu0 0.0
    %3302 = vmatprep.subr.mxu0 0.0
    %3303 = vmatpush1.msra.mxu0 0.0
    %3304 = vmatprep.subr.mxu0 0.0
    %3305 = vmatpush1.msra.mxu0 0.0
    %3306 = vmatprep.subr.mxu0 0.0
    %3307 = vmatpush1.msra.mxu0 0.0
    %3308 = vmatprep.subr.mxu0 0.0
    %3309 = vmatpush1.msra.mxu0 0.0
    %3310 = vmatprep.subr.mxu0 0.0
    %3311 = vmatpush1.msra.mxu0 0.0
    %3312 = vmatprep.subr.mxu0 0.0
    %3313 = vmatpush1.msra.mxu0 0.0
    %3314 = vmatprep.subr.mxu0 0.0
    %3315 = vmatpush1.msra.mxu0 0.0
    %3316 = vmatprep.subr.mxu0 0.0
    %3317 = vmatpush1.msra.mxu0 0.0
    %3318 = vmatprep.subr.mxu0 0.0
    %3319 = vmatpush1.msra.mxu0 0.0
    %3320 = vmatprep.subr.mxu0 0.0
    %3321 = vmatpush1.msra.mxu0 0.0
    %3322 = vmatprep.subr.mxu0 0.0
    %3323 = vmatpush1.msra.mxu0 0.0
    %3324 = vmatprep.subr.mxu0 0.0
    %3325 = vmatpush1.msra.mxu0 0.0
    %3326 = vmatprep.subr.mxu0 0.0
    %3327 = vmatpush1.msra.mxu0 0.0
    %3328 = vmatprep.mubr.f32.mxu0 0.0
    %3329 = vmatmul.mubr.f32.gmra.mrb[0].mxu0 %v3175
    %v3330 = vpop.f32.mrb[0].mxu0
    %v3331 = vadd.f32 %v2118, %v3330
    %v3332 = vpop.f32.mrb[0].mxu0
    %3333 = vdwg.mxu0
    %v3334 = vadd.f32 %v3190, %v3260
    %v3335 = vxor.u32 %v3334, 2147483648
    %v3336 = vmul.f32 %v3335, 1.442695
    %v3337 = vpow.pop %v3336
    %v3338 = vadd.f32 %v3337, 1.0
    %v3339 = vrcp.pop %v3338
    %v3340 = vmul.f32 1.0, %v3339
    %v3341 = vadd.f32 %v3191, %v3262
    %v3342 = vxor.u32 %v3341, 2147483648
    %v3343 = vmul.f32 %v3342, 1.442695
    %v3344 = vpow.pop %v3343
    %v3345 = vadd.f32 %v3344, 1.0
    %v3346 = vrcp.pop %v3345
    %v3347 = vmul.f32 1.0, %v3346
    %v3348 = vmul.f32 %v3340, %v3331
    %v3349 = vadd.f32 %v3192, %v3348
    %v3350 = vtanh.pop %v3349
    %v3351 = vsub.f32 1.0, %v3347
    %v3352 = vmul.f32 %v3351, %v3350
    %v3353 = vmul.f32 %v3347, %v3175
    %v3354 = vadd.f32 %v3352, %v3353
    %3355 = vst [vmem:[#allocation2 + $0x6] sm:$0x1] %v3354
    %3356 = vst [vmem:[#allocation2 + $0xd] sm:$0x2] %v3354
    %v3357 = vrot.slane %v2007, 7
    %v3358 = vrot.slane %v2009, 7
    %v3359 = vrot.slane %v2084, 7
    %v3363 = vrot.slane %v2013, 6
    %v3364 = vrot.slane %v2015, 6
    %v3365 = vrot.slane %v2089, 6
    %v3369 = vsel %vm389, %v3357, %v3363
    %v3370 = vsel %vm389, %v3358, %v3364
    %v3371 = vsel %vm389, %v3359, %v3365
    %3372 = vmatprep.subr.mxu0 %v1875
    %3373 = vmatpush1.msra.mxu0 %v1874
    %3374 = vmatprep.subr.mxu0 %v1878
    %3375 = vmatpush1.msra.mxu0 %v1877
    %3376 = vmatprep.subr.mxu0 %v1881
    %3377 = vmatpush1.msra.mxu0 %v1880
    %3378 = vmatprep.subr.mxu0 %v1884
    %3379 = vmatpush1.msra.mxu0 %v1883
    %3380 = vmatprep.subr.mxu0 %v1887
    %3381 = vmatpush1.msra.mxu0 %v1886
    %3382 = vmatprep.subr.mxu0 %v1890
    %3383 = vmatpush1.msra.mxu0 %v1889
    %3384 = vmatprep.subr.mxu0 %v1893
    %3385 = vmatpush1.msra.mxu0 %v1892
    %3386 = vmatprep.subr.mxu0 %v1896
    %3387 = vmatpush1.msra.mxu0 %v1895
    %3388 = vmatprep.subr.mxu0 %v1899
    %3389 = vmatpush1.msra.mxu0 %v1898
    %3390 = vmatprep.subr.mxu0 %v1902
    %3391 = vmatpush1.msra.mxu0 %v1901
    %3392 = vmatprep.subr.mxu0 %v1905
    %3393 = vmatpush1.msra.mxu0 %v1904
    %3394 = vmatprep.subr.mxu0 %v1908
    %3395 = vmatpush1.msra.mxu0 %v1907
    %3396 = vmatprep.subr.mxu0 %v1911
    %3397 = vmatpush1.msra.mxu0 %v1910
    %3398 = vmatprep.subr.mxu0 %v1914
    %3399 = vmatpush1.msra.mxu0 %v1913
    %3400 = vmatprep.subr.mxu0 %v1917
    %3401 = vmatpush1.msra.mxu0 %v1916
    %3402 = vmatprep.subr.mxu0 %v1920
    %3403 = vmatpush1.msra.mxu0 %v1919
    %3404 = vmatprep.subr.mxu0 0.0
    %3405 = vmatpush1.msra.mxu0 0.0
    %3406 = vmatprep.subr.mxu0 0.0
    %3407 = vmatpush1.msra.mxu0 0.0
    %3408 = vmatprep.subr.mxu0 0.0
    %3409 = vmatpush1.msra.mxu0 0.0
    %3410 = vmatprep.subr.mxu0 0.0
    %3411 = vmatpush1.msra.mxu0 0.0
    %3412 = vmatprep.subr.mxu0 0.0
    %3413 = vmatpush1.msra.mxu0 0.0
    %3414 = vmatprep.subr.mxu0 0.0
    %3415 = vmatpush1.msra.mxu0 0.0
    %3416 = vmatprep.subr.mxu0 0.0
    %3417 = vmatpush1.msra.mxu0 0.0
    %3418 = vmatprep.subr.mxu0 0.0
    %3419 = vmatpush1.msra.mxu0 0.0
    %3420 = vmatprep.subr.mxu0 0.0
    %3421 = vmatpush1.msra.mxu0 0.0
    %3422 = vmatprep.subr.mxu0 0.0
    %3423 = vmatpush1.msra.mxu0 0.0
    %3424 = vmatprep.subr.mxu0 0.0
    %3425 = vmatpush1.msra.mxu0 0.0
    %3426 = vmatprep.subr.mxu0 0.0
    %3427 = vmatpush1.msra.mxu0 0.0
    %3428 = vmatprep.subr.mxu0 0.0
    %3429 = vmatpush1.msra.mxu0 0.0
    %3430 = vmatprep.subr.mxu0 0.0
    %3431 = vmatpush1.msra.mxu0 0.0
    %3432 = vmatprep.subr.mxu0 0.0
    %3433 = vmatpush1.msra.mxu0 0.0
    %3434 = vmatprep.subr.mxu0 0.0
    %3435 = vmatpush1.msra.mxu0 0.0
    %3436 = vmatprep.mubr.f32.mxu0 0.0
    %3437 = vmatmul.mubr.f32.gmra.mrb[0].mxu0 %v3354
    %v3438 = vpop.f32.mrb[0].mxu0
    %v3439 = vadd.f32 %v2110, %v3438
    %v3440 = vpop.f32.mrb[0].mxu0
    %v3441 = vadd.f32 %v2114, %v3440
    %3442 = vdwg.mxu0
    %3443 = vmatprep.subr.mxu0 0.0
    %3444 = vmatpush1.msra.mxu0 %v1876
    %3445 = vmatprep.subr.mxu0 0.0
    %3446 = vmatpush1.msra.mxu0 %v1879
    %3447 = vmatprep.subr.mxu0 0.0
    %3448 = vmatpush1.msra.mxu0 %v1882
    %3449 = vmatprep.subr.mxu0 0.0
    %3450 = vmatpush1.msra.mxu0 %v1885
    %3451 = vmatprep.subr.mxu0 0.0
    %3452 = vmatpush1.msra.mxu0 %v1888
    %3453 = vmatprep.subr.mxu0 0.0
    %3454 = vmatpush1.msra.mxu0 %v1891
    %3455 = vmatprep.subr.mxu0 0.0
    %3456 = vmatpush1.msra.mxu0 %v1894
    %3457 = vmatprep.subr.mxu0 0.0
    %3458 = vmatpush1.msra.mxu0 %v1897
    %3459 = vmatprep.subr.mxu0 0.0
    %3460 = vmatpush1.msra.mxu0 %v1900
    %3461 = vmatprep.subr.mxu0 0.0
    %3462 = vmatpush1.msra.mxu0 %v1903
    %3463 = vmatprep.subr.mxu0 0.0
    %3464 = vmatpush1.msra.mxu0 %v1906
    %3465 = vmatprep.subr.mxu0 0.0
    %3466 = vmatpush1.msra.mxu0 %v1909
    %3467 = vmatprep.subr.mxu0 0.0
    %3468 = vmatpush1.msra.mxu0 %v1912
    %3469 = vmatprep.subr.mxu0 0.0
    %3470 = vmatpush1.msra.mxu0 %v1915
    %3471 = vmatprep.subr.mxu0 0.0
    %3472 = vmatpush1.msra.mxu0 %v1918
    %3473 = vmatprep.subr.mxu0 0.0
    %3474 = vmatpush1.msra.mxu0 %v1921
    %3475 = vmatprep.subr.mxu0 0.0
    %3476 = vmatpush1.msra.mxu0 0.0
    %3477 = vmatprep.subr.mxu0 0.0
    %3478 = vmatpush1.msra.mxu0 0.0
    %3479 = vmatprep.subr.mxu0 0.0
    %3480 = vmatpush1.msra.mxu0 0.0
    %3481 = vmatprep.subr.mxu0 0.0
    %3482 = vmatpush1.msra.mxu0 0.0
    %3483 = vmatprep.subr.mxu0 0.0
    %3484 = vmatpush1.msra.mxu0 0.0
    %3485 = vmatprep.subr.mxu0 0.0
    %3486 = vmatpush1.msra.mxu0 0.0
    %3487 = vmatprep.subr.mxu0 0.0
    %3488 = vmatpush1.msra.mxu0 0.0
    %3489 = vmatprep.subr.mxu0 0.0
    %3490 = vmatpush1.msra.mxu0 0.0
    %3491 = vmatprep.subr.mxu0 0.0
    %3492 = vmatpush1.msra.mxu0 0.0
    %3493 = vmatprep.subr.mxu0 0.0
    %3494 = vmatpush1.msra.mxu0 0.0
    %3495 = vmatprep.subr.mxu0 0.0
    %3496 = vmatpush1.msra.mxu0 0.0
    %3497 = vmatprep.subr.mxu0 0.0
    %3498 = vmatpush1.msra.mxu0 0.0
    %3499 = vmatprep.subr.mxu0 0.0
    %3500 = vmatpush1.msra.mxu0 0.0
    %3501 = vmatprep.subr.mxu0 0.0
    %3502 = vmatpush1.msra.mxu0 0.0
    %3503 = vmatprep.subr.mxu0 0.0
    %3504 = vmatpush1.msra.mxu0 0.0
    %3505 = vmatprep.subr.mxu0 0.0
    %3506 = vmatpush1.msra.mxu0 0.0
    %3507 = vmatprep.mubr.f32.mxu0 0.0
    %3508 = vmatmul.mubr.f32.gmra.mrb[0].mxu0 %v3354
    %v3509 = vpop.f32.mrb[0].mxu0
    %v3510 = vadd.f32 %v2118, %v3509
    %v3511 = vpop.f32.mrb[0].mxu0
    %3512 = vdwg.mxu0
    %v3513 = vadd.f32 %v3369, %v3439
    %v3514 = vxor.u32 %v3513, 2147483648
    %v3515 = vmul.f32 %v3514, 1.442695
    %v3516 = vpow.pop %v3515
    %v3517 = vadd.f32 %v3516, 1.0
    %v3518 = vrcp.pop %v3517
    %v3519 = vmul.f32 1.0, %v3518
    %v3520 = vadd.f32 %v3370, %v3441
    %v3521 = vxor.u32 %v3520, 2147483648
    %v3522 = vmul.f32 %v3521, 1.442695
    %v3523 = vpow.pop %v3522
    %v3524 = vadd.f32 %v3523, 1.0
    %v3525 = vrcp.pop %v3524
    %v3526 = vmul.f32 1.0, %v3525
    %v3527 = vmul.f32 %v3519, %v3510
    %v3528 = vadd.f32 %v3371, %v3527
    %v3529 = vtanh.pop %v3528
    %v3530 = vsub.f32 1.0, %v3526
    %v3531 = vmul.f32 %v3530, %v3529
    %v3532 = vmul.f32 %v3526, %v3354
    %v3533 = vadd.f32 %v3531, %v3532
    %3534 = vst [vmem:[#allocation2 + $0x7] sm:$0x1] %v3533
    %3535 = vst [vmem:[#allocation2 + $0xe] sm:$0x2] %v3533
    %s3536 = scalar_lea.vmem [#allocation16], 2
    %3537 = vst [vmem:[%s3536] sm:$0x3] %v3533
    %v3538 = vld [vmem:[#allocation2] sm:$0xff]
    %v3539 = vld [vmem:[#allocation2 + $0x8] sm:$0xff]
    %v3540 = vld [vmem:[#allocation14] sm:$0xff]
    %v3541 = vld [vmem:[#allocation14 + $0x8] sm:$0xff]
    %v3542 = vld [vmem:[#allocation14 + $0x10] sm:$0xff]
    %v3543 = vld [vmem:[#allocation14 + $0x18] sm:$0xff]
    %v3544 = vld [vmem:[#allocation14 + $0x20] sm:$0xff]
    %v3545 = vld [vmem:[#allocation14 + $0x28] sm:$0xff]
    %v3546 = vld [vmem:[#allocation14 + $0x30] sm:$0xff]
    %v3547 = vld [vmem:[#allocation14 + $0x38] sm:$0xff]
    %v3548 = vld [vmem:[#allocation14 + $0x40] sm:$0xff]
    %v3549 = vld [vmem:[#allocation14 + $0x48] sm:$0xff]
    %v3550 = vld [vmem:[#allocation14 + $0x50] sm:$0xff]
    %v3551 = vld [vmem:[#allocation14 + $0x58] sm:$0xff]
    %v3552 = vld [vmem:[#allocation14 + $0x60] sm:$0xff]
    %v3553 = vld [vmem:[#allocation14 + $0x68] sm:$0xff]
    %v3554 = vld [vmem:[#allocation14 + $0x70] sm:$0xff]
    %v3555 = vld [vmem:[#allocation14 + $0x78] sm:$0xff]
    %v3556 = vld [vmem:[%s11] sm:$0x1]
    %v3558 = vlaneseq
    %v3559 = vshrl.u32 %v3558, 7
    %v3560 = vsub.s32 0, %v3559
    %v3561 = vrot.slane %v3556, %v3560
    %3563 = vmatprep.subr.mxu0 0.0
    %3564 = vmatpush1.msra.mxu0 %v3540
    %3565 = vmatprep.subr.mxu0 0.0
    %3566 = vmatpush1.msra.mxu0 %v3541
    %3567 = vmatprep.subr.mxu0 0.0
    %3568 = vmatpush1.msra.mxu0 %v3542
    %3569 = vmatprep.subr.mxu0 0.0
    %3570 = vmatpush1.msra.mxu0 %v3543
    %3571 = vmatprep.subr.mxu0 0.0
    %3572 = vmatpush1.msra.mxu0 %v3544
    %3573 = vmatprep.subr.mxu0 0.0
    %3574 = vmatpush1.msra.mxu0 %v3545
    %3575 = vmatprep.subr.mxu0 0.0
    %3576 = vmatpush1.msra.mxu0 %v3546
    %3577 = vmatprep.subr.mxu0 0.0
    %3578 = vmatpush1.msra.mxu0 %v3547
    %3579 = vmatprep.subr.mxu0 0.0
    %3580 = vmatpush1.msra.mxu0 %v3548
    %3581 = vmatprep.subr.mxu0 0.0
    %3582 = vmatpush1.msra.mxu0 %v3549
    %3583 = vmatprep.subr.mxu0 0.0
    %3584 = vmatpush1.msra.mxu0 %v3550
    %3585 = vmatprep.subr.mxu0 0.0
    %3586 = vmatpush1.msra.mxu0 %v3551
    %3587 = vmatprep.subr.mxu0 0.0
    %3588 = vmatpush1.msra.mxu0 %v3552
    %3589 = vmatprep.subr.mxu0 0.0
    %3590 = vmatpush1.msra.mxu0 %v3553
    %3591 = vmatprep.subr.mxu0 0.0
    %3592 = vmatpush1.msra.mxu0 %v3554
    %3593 = vmatprep.subr.mxu0 0.0
    %3594 = vmatpush1.msra.mxu0 %v3555
    %3595 = vmatprep.subr.mxu0 0.0
    %3596 = vmatpush1.msra.mxu0 0.0
    %3597 = vmatprep.subr.mxu0 0.0
    %3598 = vmatpush1.msra.mxu0 0.0
    %3599 = vmatprep.subr.mxu0 0.0
    %3600 = vmatpush1.msra.mxu0 0.0
    %3601 = vmatprep.subr.mxu0 0.0
    %3602 = vmatpush1.msra.mxu0 0.0
    %3603 = vmatprep.subr.mxu0 0.0
    %3604 = vmatpush1.msra.mxu0 0.0
    %3605 = vmatprep.subr.mxu0 0.0
    %3606 = vmatpush1.msra.mxu0 0.0
    %3607 = vmatprep.subr.mxu0 0.0
    %3608 = vmatpush1.msra.mxu0 0.0
    %3609 = vmatprep.subr.mxu0 0.0
    %3610 = vmatpush1.msra.mxu0 0.0
    %3611 = vmatprep.subr.mxu0 0.0
    %3612 = vmatpush1.msra.mxu0 0.0
    %3613 = vmatprep.subr.mxu0 0.0
    %3614 = vmatpush1.msra.mxu0 0.0
    %3615 = vmatprep.subr.mxu0 0.0
    %3616 = vmatpush1.msra.mxu0 0.0
    %3617 = vmatprep.subr.mxu0 0.0
    %3618 = vmatpush1.msra.mxu0 0.0
    %3619 = vmatprep.subr.mxu0 0.0
    %3620 = vmatpush1.msra.mxu0 0.0
    %3621 = vmatprep.subr.mxu0 0.0
    %3622 = vmatpush1.msra.mxu0 0.0
    %3623 = vmatprep.subr.mxu0 0.0
    %3624 = vmatpush1.msra.mxu0 0.0
    %3625 = vmatprep.subr.mxu0 0.0
    %3626 = vmatpush1.msra.mxu0 0.0
    %3627 = vmatprep.mubr.f32.mxu0 0.0
    %3628 = vmatmul.mubr.f32.gmra.mrb[0].mxu0 %v3538
    %v3629 = vpop.f32.mrb[0].mxu0
    %v3630 = vadd.f32 %v3561, %v3629
    %v3631 = vpop.f32.mrb[0].mxu0
    %3632 = vmatprep.mubr.f32.mxu0 0.0
    %3633 = vmatmul.mubr.f32.gmra.mrb[0].mxu0 %v3539
    %v3634 = vpop.f32.mrb[0].mxu0
    %v3635 = vadd.f32 %v3561, %v3634
    %v3636 = vpop.f32.mrb[0].mxu0
    %3637 = vdwg.mxu0
    %3638 = vst [vmem:[#allocation15] sm:$0xff] %v3630
    %3639 = vst [vmem:[#allocation15 + $0x8] sm:$0xff] %v3635
    // Predicated region
    $region78: #{tpu_custom_call.1} parent=1 // pred_check
      _
    $region79: #{tpu_custom_call.1} parent=1 // pred_check_branch
      %3641 = sbr.rel (0) target = $region81
    $region80: #{tpu_custom_call.1} parent=1 // pred_region
      %s3643 = ssub.s32 256, 256
      %3644 = vsyncadd [#allocation5], %s3643
      %s3645 = sshll.u32 [#allocation15], 4
      %s3646 = int_to_ptr.vmem [resolvable:$true] %s3645
      %3651 = dma.vmem_to_hbm [thread:$0]  %s3646, 256, %s12, [#allocation5], 128, 128, 8
    $region81: #{tpu_custom_call.1} parent=1 // pred_fallthru
      _
    // Predicated region
    $region82: #{tpu_custom_call.1} parent=1 // pred_check
      _
    $region83: #{tpu_custom_call.1} parent=1 // pred_check_branch
      %3653 = sbr.rel (0) target = $region85
    $region84: #{tpu_custom_call.1} parent=1 // pred_region
      %s3655 = ssub.s32 64, 64
      %3656 = vsyncadd [#allocation17], %s3655
      %s3657 = sshll.u32 [#allocation16], 4
      %s3658 = int_to_ptr.vmem [resolvable:$true] %s3657
      %3663 = dma.vmem_to_hbm [thread:$0]  %s3658, 64, %s13, [#allocation17], 32, 32, 2
    $region85: #{tpu_custom_call.1} parent=1 // pred_fallthru
      _
    // Predicated region
    $region86: #{tpu_custom_call.1} parent=1 // pred_check
      _
    $region87: #{tpu_custom_call.1} parent=1 // pred_check_branch
      %3665 = sbr.rel (0) target = $region89
    $region88: #{tpu_custom_call.1} parent=1 // pred_region
      %3666 = dma.done [#allocation5], 256
    $region89: #{tpu_custom_call.1} parent=1 // pred_fallthru
      _
    // Predicated region
    $region90: #{tpu_custom_call.1} parent=1 // pred_check
      _
    $region91: #{tpu_custom_call.1} parent=1 // pred_check_branch
      %3668 = sbr.rel (0) target = $region93
    $region92: #{tpu_custom_call.1} parent=1 // pred_region
      %3669 = dma.done [#allocation17], 64
    $region93: #{tpu_custom_call.1} parent=1 // pred_fallthru
      _
    %3670 = vsyncpa [#allocation4], 1
    %3671 = vsyncpa [#allocation7], 1
    %3672 = vsyncpa [#allocation10], 1
    %3673 = vsyncpa [#allocation13], 1
    %3674 = vsyncpa [#allocation5], 1
    %3675 = vsyncpa [#allocation17], 1

</llo_original>
